<compile_context>
chip_gen: v6e
topology: v6e:2x2x1
jax: 0.10.0
libtpu: 0.0.40
codegen_flags: <defaults>
</compile_context>

<pallas_src>
import math

import jax
import jax.numpy as jnp
import numpy as np
from jax.experimental import pallas as pl
from jax.experimental.pallas import tpu as pltpu

# ----------------------------- configuration (plays the role of `args`) ------
D_MODEL = 32            # args.attn_enc_hidden_size
N_HEADS = 4             # args.attn_enc_heads
DIM_PER_HEAD = D_MODEL // N_HEADS
D_FF = 64               # args.attn_enc_filter_size
N_LAYERS = 2            # args.attn_enc_num_layers
SEQ = 8
BATCH = 2
EPS = 1e-6
EMB_SCALE = math.sqrt(D_MODEL)          # args.encoder_emb_scale == 'sqrt'
INV_SQRT_DH = 1.0 / math.sqrt(DIM_PER_HEAD)

assert D_MODEL % N_HEADS == 0
# RoPE pairs (2i, 2i+1) must never straddle a head boundary:
assert DIM_PER_HEAD % 2 == 0


# ----------------------------- in-kernel helpers -----------------------------
def _layer_norm(h, g, b):
    mu = jnp.mean(h, axis=-1, keepdims=True)
    var = jnp.mean((h - mu) ** 2, axis=-1, keepdims=True)
    return (h - mu) * jax.lax.rsqrt(var + EPS) * g + b


# ----------------------------- fused encoder kernel --------------------------
def encoder_kernel(lens_ref,                         # SMEM (B,) int32 (prefetch)
                   x_ref,                            # (1, S, D) f32
                   cos_ref, sin_ref,                 # (S, D) f32
                   rot_ref,                          # (2D, 2D) bf16 rotate-pairs
                   ln1_g, ln1_b,                     # (L, 1, D) f32
                   wqkv, bqkv,                       # (L, D, 3D) bf16 / (L,1,3D) f32
                   wo, bo,                           # (L, D, D) bf16 / (L,1,D) f32
                   ln2_g, ln2_b,                     # (L, 1, D) f32
                   w1, b1,                           # (L, D, F) bf16 / (L,1,F) f32
                   w2, b2,                           # (L, F, D) bf16 / (L,1,D) f32
                   lnf_g, lnf_b,                     # (1, D) f32
                   out_ref,                          # (1, S, D) f32
                   ctx_ref):                         # scratch VMEM (S, D) f32
    b = pl.program_id(0)
    S = out_ref.shape[1]
    D = out_ref.shape[2]

    # embedding scale (dropout == identity)
    x = x_ref[0] * EMB_SCALE                                      # (S, D) f32

    # additive key-padding mask, built once from scalar-prefetched lengths
    length = lens_ref[b]
    kpos = jax.lax.broadcasted_iota(jnp.int32, (1, S), 1)
    mask_add = jnp.where(kpos < length, jnp.float32(0.0), jnp.float32(-1e18))

    cos = cos_ref[...]
    sin = sin_ref[...]
    rot = rot_ref[...]

    for l in range(N_LAYERS):                         # unrolled (N_LAYERS == 2)
        # --- pre-attention LayerNorm + fused QKV projection (one MXU push) ---
        xn = _layer_norm(x, ln1_g[l], ln1_b[l]).astype(jnp.bfloat16)
        qkv = jnp.dot(xn, wqkv[l], preferred_element_type=jnp.float32) + bqkv[l]

        # --- RoPE: rotate-pairs for [q | k] as a single tiny MXU matmul ---
        qk2 = jnp.dot(qkv[:, :2 * D].astype(jnp.bfloat16), rot,
                      preferred_element_type=jnp.float32)          # (S, 2D)
        q = (qkv[:, :D] * cos + qk2[:, :D] * sin) * INV_SQRT_DH    # scale commutes
        k = qkv[:, D:2 * D] * cos + qk2[:, D:2 * D] * sin
        qb = q.astype(jnp.bfloat16)
        kb = k.astype(jnp.bfloat16)
        vb = qkv[:, 2 * D:].astype(jnp.bfloat16)

        # --- per-head attention ---
        for h in range(N_HEADS):
            sl = slice(h * DIM_PER_HEAD, (h + 1) * DIM_PER_HEAD)
            s = jax.lax.dot_general(qb[:, sl], kb[:, sl],
                                    (((1,), (1,)), ((), ())),      # q @ k^T (NT)
                                    preferred_element_type=jnp.float32)
            s = s + mask_add                                       # (S, S)
            s = s - jnp.max(s, axis=-1, keepdims=True)
            p = jnp.exp(s)
            # TODO(synk): pl.reciprocal(l_sum, approx=True) would move this to
            # the EUP; exact divide kept for interpreter compatibility (it is
            # noise at an (S,1) = (8,1) denominator anyway).
            p = p / jnp.sum(p, axis=-1, keepdims=True)
            ctx_ref[:, sl] = jnp.dot(p.astype(jnp.bfloat16), vb[:, sl],
                                     preferred_element_type=jnp.float32)

        attn = jnp.dot(ctx_ref[...].astype(jnp.bfloat16), wo[l],
                       preferred_element_type=jnp.float32) + bo[l]
        res = attn + x                                             # residual

        # --- PositionwiseFeedForward (pre-LN, residual) ---
        hn = _layer_norm(res, ln2_g[l], ln2_b[l]).astype(jnp.bfloat16)
        inter = jnp.maximum(
            jnp.dot(hn, w1[l], preferred_element_type=jnp.float32) + b1[l], 0.0)
        ffn = jnp.dot(inter.astype(jnp.bfloat16), w2[l],
                      preferred_element_type=jnp.float32) + b2[l]
        x = ffn + res

    # --- final LayerNorm of AttnEncoderXL ---
    out_ref[0] = _layer_norm(x, lnf_g[...], lnf_b[...]).astype(out_ref.dtype)


# ----------------------------- host-side helpers ------------------------------
def rope_cos_sin(seq_len, dim_per_head, n_heads):
    """Reproduces sinusoidal_position_embedding + the [1::2]/[::2] slicing."""
    position = np.arange(seq_len, dtype=np.float32)[:, None]
    ids = np.arange(dim_per_head // 2, dtype=np.float32)
    theta = np.power(10000.0, -2.0 * ids / dim_per_head).astype(np.float32)
    emb = position * theta                                          # (S, dh/2)
    pos_emb = np.concatenate([np.sin(emb), np.cos(emb)], axis=-1)   # (S, dh)
    cos_pos = np.repeat(pos_emb[:, 1::2], 2, axis=-1)               # (S, dh)
    sin_pos = np.repeat(pos_emb[:, 0::2], 2, axis=-1)               # (S, dh)
    return (jnp.asarray(np.tile(cos_pos, (1, n_heads)), jnp.float32),
            jnp.asarray(np.tile(sin_pos, (1, n_heads)), jnp.float32))


def make_pair_rotation(n):
    """R such that (x @ R)[2i] = -x[2i+1], (x @ R)[2i+1] = x[2i]."""
    r = np.zeros((n, n), dtype=np.float32)
    ev = np.arange(0, n, 2)
    r[ev + 1, ev] = -1.0
    r[ev, ev + 1] = 1.0
    return jnp.asarray(r, dtype=jnp.bfloat16)


def stack_layer_params(params):
    """Stack per-layer dicts along a leading layer axis; weights -> bf16."""
    def stk(name, dtype=None):
        a = jnp.stack([p[name] for p in params], axis=0)
        return a.astype(dtype) if dtype is not None else a
    wqkv = jnp.stack(
        [jnp.concatenate([p["wq"], p["wk"], p["wv"]], axis=1) for p in params]
    ).astype(jnp.bfloat16)                                          # (L, D, 3D)
    bqkv = jnp.stack(
        [jnp.concatenate([p["bq"], p["bk"], p["bv"]], axis=1) for p in params])
    return dict(
        ln1_g=stk("ln1_g"), ln1_b=stk("ln1_b"),
        wqkv=wqkv, bqkv=bqkv,
        wo=stk("wo", jnp.bfloat16), bo=stk("bo"),
        ln2_g=stk("ln2_g"), ln2_b=stk("ln2_b"),
        w1=stk("w1", jnp.bfloat16), b1=stk("b1"),
        w2=stk("w2", jnp.bfloat16), b2=stk("b2"),
    )


@jax.jit
def attn_encoder_xl(src, lengths, distances, params, final_g, final_b):
    """src: (t, b, d_model); lengths: (b,); distances unused for rel_pos=='rope'."""
    del distances
    t, b, d = src.shape
    x = jnp.transpose(src, (1, 0, 2))                   # (B, S, D)
    cos, sin = rope_cos_sin(t, DIM_PER_HEAD, N_HEADS)
    rot = make_pair_rotation(2 * d)
    sp = stack_layer_params(params)

    def rep(shape):
        n = len(shape)
        return pl.BlockSpec(shape, lambda i, lens, _n=n: (0,) * _n)

    grid_spec = pltpu.PrefetchScalarGridSpec(
        num_scalar_prefetch=1,                          # lengths -> SMEM
        grid=(b,),
        in_specs=[
            pl.BlockSpec((1, t, d), lambda i, lens: (i, 0, 0)),    # x
            rep((t, d)), rep((t, d)),                              # cos, sin
            rep((2 * d, 2 * d)),                                   # rot
            rep((N_LAYERS, 1, d)), rep((N_LAYERS, 1, d)),          # ln1 g,b
            rep((N_LAYERS, d, 3 * d)), rep((N_LAYERS, 1, 3 * d)),  # wqkv, bqkv
            rep((N_LAYERS, d, d)), rep((N_LAYERS, 1, d)),          # wo, bo
            rep((N_LAYERS, 1, d)), rep((N_LAYERS, 1, d)),          # ln2 g,b
            rep((N_LAYERS, d, D_FF)), rep((N_LAYERS, 1, D_FF)),    # w1, b1
            rep((N_LAYERS, D_FF, d)), rep((N_LAYERS, 1, d)),       # w2, b2
            rep((1, d)), rep((1, d)),                              # final LN g,b
        ],
        out_specs=pl.BlockSpec((1, t, d), lambda i, lens: (i, 0, 0)),
        scratch_shapes=[pltpu.VMEM((t, d), jnp.float32)],          # ctx scratch
    )
    out = pl.pallas_call(
        encoder_kernel,
        out_shape=jax.ShapeDtypeStruct((b, t, d), jnp.float32),
        grid_spec=grid_spec,
        compiler_params=pltpu.CompilerParams(
            dimension_semantics=("parallel",)),                    # v7x: 2 TCs
    )(lengths.astype(jnp.int32), x, cos, sin, rot,
      sp["ln1_g"], sp["ln1_b"], sp["wqkv"], sp["bqkv"], sp["wo"], sp["bo"],
      sp["ln2_g"], sp["ln2_b"], sp["w1"], sp["b1"], sp["w2"], sp["b2"],
      final_g, final_b)
    return jnp.transpose(out, (1, 0, 2))


# ----------------------------- pure-JAX reference ------------------------------
def reference_forward(src, lengths, params, final_g, final_b):
    t, b, d = src.shape
    out = jnp.transpose(src, (1, 0, 2)) * math.sqrt(d)
    pad = (~(jnp.arange(t)[None, :] < lengths[:, None]))[:, None, None, :]
    cos, sin = rope_cos_sin(t, DIM_PER_HEAD, N_HEADS)

    def ln(h, g, bb):
        mu = jnp.mean(h, axis=-1, keepdims=True)
        var = jnp.mean((h - mu) ** 2, axis=-1, keepdims=True)
        return (h - mu) * jax.lax.rsqrt(var + EPS) * g + bb

    def rot(tt):
        te = tt[..., 0::2]
        to = tt[..., 1::2]
        return jnp.stack([-to, te], axis=-1).reshape(tt.shape)

    for p in params:
        x = out
        xn = ln(x, p["ln1_g"], p["ln1_b"])
        q = xn @ p["wq"] + p["bq"]
        k = xn @ p["wk"] + p["bk"]
        v = xn @ p["wv"] + p["bv"]
        q = q / math.sqrt(DIM_PER_HEAD)
        q = q * cos + rot(q) * sin
        k = k * cos + rot(k) * sin
        qh = q.reshape(b, t, N_HEADS, DIM_PER_HEAD).transpose(0, 2, 1, 3)
        kh = k.reshape(b, t, N_HEADS, DIM_PER_HEAD).transpose(0, 2, 1, 3)
        vh = v.reshape(b, t, N_HEADS, DIM_PER_HEAD).transpose(0, 2, 1, 3)
        s = jnp.einsum("bhqd,bhkd->bhqk", qh, kh)
        s = jnp.where(pad, jnp.float32(-1e18), s)
        attn = jax.nn.softmax(s, axis=-1)
        ctx = jnp.einsum("bhqk,bhkd->bhqd", attn, vh)
        ctx = ctx.transpose(0, 2, 1, 3).reshape(b, t, d)
        res = ctx @ p["wo"] + p["bo"] + x
        hn = ln(res, p["ln2_g"], p["ln2_b"])
        inter = jax.nn.relu(hn @ p["w1"] + p["b1"])
        out = inter @ p["w2"] + p["b2"] + res
    out = ln(out, final_g, final_b)
    return jnp.transpose(out, (1, 0, 2))


# ----------------------------- deterministic params ----------------------------
def init_params(key):
    def nrm(k, shape, scale=0.1):
        return scale * jax.random.normal(k, shape, jnp.float32)

    params = []
    for _ in range(N_LAYERS):
        key, *ks = jax.random.split(key, 13)
        ks = iter(ks)
        params.append({
            "ln1_g": jnp.ones((1, D_MODEL), jnp.float32),
            "ln1_b": jnp.zeros((1, D_MODEL), jnp.float32),
            "wq": nrm(next(ks), (D_MODEL, D_MODEL)),
            "bq": nrm(next(ks), (1, D_MODEL), 0.02),
            "wk": nrm(next(ks), (D_MODEL, D_MODEL)),
            "bk": nrm(next(ks), (1, D_MODEL), 0.02),
            "wv": nrm(next(ks), (D_MODEL, D_MODEL)),
            "bv": nrm(next(ks), (1, D_MODEL), 0.02),
            "wo": nrm(next(ks), (D_MODEL, D_MODEL)),
            "bo": nrm(next(ks), (1, D_MODEL), 0.02),
            "ln2_g": jnp.ones((1, D_MODEL), jnp.float32),
            "ln2_b": jnp.zeros((1, D_MODEL), jnp.float32),
            "w1": nrm(next(ks), (D_MODEL, D_FF)),
            "b1": nrm(next(ks), (1, D_FF), 0.02),
            "w2": nrm(next(ks), (D_FF, D_MODEL)),
            "b2": nrm(next(ks), (1, D_MODEL), 0.02),
        })
    final_g = jnp.ones((1, D_MODEL), jnp.float32)
    final_b = jnp.zeros((1, D_MODEL), jnp.float32)
    return params, final_g, final_b


if __name__ == "__main__":
    key = jax.random.PRNGKey(0)
    k_src, k_par = jax.random.split(key)
    src = jax.random.normal(k_src, (SEQ, BATCH, D_MODEL), jnp.float32)   # (t, b, h)
    lengths = jnp.array([SEQ, SEQ - 3], dtype=jnp.int32)                 # (b,)
    distances = jnp.zeros((BATCH, SEQ, SEQ), dtype=jnp.int32)            # unused (rope)
    params, final_g, final_b = init_params(k_par)

    out = attn_encoder_xl(src, lengths, distances, params, final_g, final_b)
    out = jax.block_until_ready(out)

    ref = reference_forward(src, lengths, params, final_g, final_b)
    assert out.shape == (SEQ, BATCH, D_MODEL)
    assert bool(jnp.all(jnp.isfinite(out)))
    np.testing.assert_allclose(np.asarray(out), np.asarray(ref), atol=1e-2, rtol=1e-2)
    print("KERNEL_OK")
</pallas_src>

<mosaic_0001>
module attributes {stable_mosaic.version = 11 : i64} {
  func.func @encoder_kernel(%arg0: i32, %arg1: memref<2xi32, #tpu.memory_space<smem>>, %arg2: memref<1x8x32xf32, #tpu.memory_space<vmem>>, %arg3: memref<8x32xf32, #tpu.memory_space<vmem>>, %arg4: memref<8x32xf32, #tpu.memory_space<vmem>>, %arg5: memref<64x64xbf16, #tpu.memory_space<vmem>>, %arg6: memref<2x1x32xf32, #tpu.memory_space<vmem>>, %arg7: memref<2x1x32xf32, #tpu.memory_space<vmem>>, %arg8: memref<2x32x96xbf16, #tpu.memory_space<vmem>>, %arg9: memref<2x1x96xf32, #tpu.memory_space<vmem>>, %arg10: memref<2x32x32xbf16, #tpu.memory_space<vmem>>, %arg11: memref<2x1x32xf32, #tpu.memory_space<vmem>>, %arg12: memref<2x1x32xf32, #tpu.memory_space<vmem>>, %arg13: memref<2x1x32xf32, #tpu.memory_space<vmem>>, %arg14: memref<2x32x64xbf16, #tpu.memory_space<vmem>>, %arg15: memref<2x1x64xf32, #tpu.memory_space<vmem>>, %arg16: memref<2x64x32xbf16, #tpu.memory_space<vmem>>, %arg17: memref<2x1x32xf32, #tpu.memory_space<vmem>>, %arg18: memref<1x32xf32, #tpu.memory_space<vmem>>, %arg19: memref<1x32xf32, #tpu.memory_space<vmem>>, %arg20: memref<1x8x32xf32, #tpu.memory_space<vmem>>, %arg21: memref<8x32xf32, #tpu.memory_space<vmem>>) attributes {dimension_semantics = [#tpu.dimension_semantics<parallel>], iteration_bounds = array<i64: 2>, scalar_prefetch = 1 : i64, scratch_operands = 1 : i64, tpu.core_type = #tpu.core_type<tc>, window_params = [{transform_indices = @transform_0, window_bounds = array<i64: 1, 8, 32>}, {pipeline_mode = #tpu.pipeline_mode<synchronous>, transform_indices = @transform_1, window_bounds = array<i64: 8, 32>}, {pipeline_mode = #tpu.pipeline_mode<synchronous>, transform_indices = @transform_2, window_bounds = array<i64: 8, 32>}, {pipeline_mode = #tpu.pipeline_mode<synchronous>, transform_indices = @transform_3, window_bounds = array<i64: 64, 64>}, {pipeline_mode = #tpu.pipeline_mode<synchronous>, transform_indices = @transform_4, window_bounds = array<i64: 2, 1, 32>}, {pipeline_mode = #tpu.pipeline_mode<synchronous>, transform_indices = @transform_5, window_bounds = array<i64: 2, 1, 32>}, {pipeline_mode = #tpu.pipeline_mode<synchronous>, transform_indices = @transform_6, window_bounds = array<i64: 2, 32, 96>}, {pipeline_mode = #tpu.pipeline_mode<synchronous>, transform_indices = @transform_7, window_bounds = array<i64: 2, 1, 96>}, {pipeline_mode = #tpu.pipeline_mode<synchronous>, transform_indices = @transform_8, window_bounds = array<i64: 2, 32, 32>}, {pipeline_mode = #tpu.pipeline_mode<synchronous>, transform_indices = @transform_9, window_bounds = array<i64: 2, 1, 32>}, {pipeline_mode = #tpu.pipeline_mode<synchronous>, transform_indices = @transform_10, window_bounds = array<i64: 2, 1, 32>}, {pipeline_mode = #tpu.pipeline_mode<synchronous>, transform_indices = @transform_11, window_bounds = array<i64: 2, 1, 32>}, {pipeline_mode = #tpu.pipeline_mode<synchronous>, transform_indices = @transform_12, window_bounds = array<i64: 2, 32, 64>}, {pipeline_mode = #tpu.pipeline_mode<synchronous>, transform_indices = @transform_13, window_bounds = array<i64: 2, 1, 64>}, {pipeline_mode = #tpu.pipeline_mode<synchronous>, transform_indices = @transform_14, window_bounds = array<i64: 2, 64, 32>}, {pipeline_mode = #tpu.pipeline_mode<synchronous>, transform_indices = @transform_15, window_bounds = array<i64: 2, 1, 32>}, {pipeline_mode = #tpu.pipeline_mode<synchronous>, transform_indices = @transform_16, window_bounds = array<i64: 1, 32>}, {pipeline_mode = #tpu.pipeline_mode<synchronous>, transform_indices = @transform_17, window_bounds = array<i64: 1, 32>}, {transform_indices = @transform_18, window_bounds = array<i64: 1, 8, 32>}]} {
    %c0 = arith.constant 0 : index
    %c0_0 = arith.constant 0 : index
    %c0_1 = arith.constant 0 : index
    %0 = vector.load %arg2[%c0, %c0_0, %c0_1] : memref<1x8x32xf32, #tpu.memory_space<vmem>>, vector<1x8x32xf32>
    %1 = vector.shape_cast %0 : vector<1x8x32xf32> to vector<8x32xf32>
    %cst = arith.constant 5.65685415 : f32
    %2 = vector.broadcast %cst : f32 to vector<8x32xf32>
    %3 = arith.mulf %1, %2 : vector<8x32xf32>
    %4 = arith.index_cast %arg0 : i32 to index
    %5 = memref.load %arg1[%4] : memref<2xi32, #tpu.memory_space<smem>>
    %6 = tpu.iota {dimensions = array<i32: 1>} : vector<1x8xi32>
    %7 = vector.broadcast %5 : i32 to vector<1x8xi32>
    %8 = arith.cmpi slt, %6, %7 : vector<1x8xi32>
    %cst_2 = arith.constant 0.000000e+00 : f32
    %cst_3 = arith.constant -9.99999984E+17 : f32
    %9 = vector.broadcast %cst_2 : f32 to vector<1x8xf32>
    %10 = vector.broadcast %cst_3 : f32 to vector<1x8xf32>
    %11 = arith.select %8, %9, %10 : vector<1x8xi1>, vector<1x8xf32>
    %c0_4 = arith.constant 0 : index
    %c0_5 = arith.constant 0 : index
    %12 = vector.load %arg3[%c0_4, %c0_5] : memref<8x32xf32, #tpu.memory_space<vmem>>, vector<8x32xf32>
    %c0_6 = arith.constant 0 : index
    %c0_7 = arith.constant 0 : index
    %13 = vector.load %arg4[%c0_6, %c0_7] : memref<8x32xf32, #tpu.memory_space<vmem>>, vector<8x32xf32>
    %c0_8 = arith.constant 0 : index
    %c0_9 = arith.constant 0 : index
    %14 = vector.load %arg5[%c0_8, %c0_9] : memref<64x64xbf16, #tpu.memory_space<vmem>>, vector<64x64xbf16>
    %c0_10 = arith.constant 0 : index
    %c0_11 = arith.constant 0 : index
    %c0_12 = arith.constant 0 : index
    %15 = vector.load %arg6[%c0_10, %c0_11, %c0_12] : memref<2x1x32xf32, #tpu.memory_space<vmem>>, vector<1x1x32xf32>
    %16 = vector.shape_cast %15 : vector<1x1x32xf32> to vector<1x32xf32>
    %c0_13 = arith.constant 0 : index
    %c0_14 = arith.constant 0 : index
    %c0_15 = arith.constant 0 : index
    %17 = vector.load %arg7[%c0_13, %c0_14, %c0_15] : memref<2x1x32xf32, #tpu.memory_space<vmem>>, vector<1x1x32xf32>
    %18 = vector.shape_cast %17 : vector<1x1x32xf32> to vector<1x32xf32>
    %cst_16 = arith.constant dense<0.000000e+00> : vector<8xf32>
    %19 = vector.multi_reduction <add>, %3, %cst_16 [1] : vector<8x32xf32> to vector<8xf32>
    %20 = vector.shape_cast %19 : vector<8xf32> to vector<8x1xf32>
    %cst_17 = arith.constant 3.200000e+01 : f32
    %21 = vector.broadcast %cst_17 : f32 to vector<8x1xf32>
    %22 = arith.divf %20, %21 : vector<8x1xf32>
    %23 = vector.broadcast %22 : vector<8x1xf32> to vector<8x32xf32>
    %24 = arith.subf %3, %23 : vector<8x32xf32>
    %25 = arith.mulf %24, %24 : vector<8x32xf32>
    %cst_18 = arith.constant dense<0.000000e+00> : vector<8xf32>
    %26 = vector.multi_reduction <add>, %25, %cst_18 [1] : vector<8x32xf32> to vector<8xf32>
    %27 = vector.shape_cast %26 : vector<8xf32> to vector<8x1xf32>
    %cst_19 = arith.constant 3.200000e+01 : f32
    %28 = vector.broadcast %cst_19 : f32 to vector<8x1xf32>
    %29 = arith.divf %27, %28 : vector<8x1xf32>
    %30 = vector.broadcast %22 : vector<8x1xf32> to vector<8x32xf32>
    %31 = arith.subf %3, %30 : vector<8x32xf32>
    %cst_20 = arith.constant 9.99999997E-7 : f32
    %32 = vector.broadcast %cst_20 : f32 to vector<8x1xf32>
    %33 = arith.addf %29, %32 : vector<8x1xf32>
    %34 = math.rsqrt %33 : vector<8x1xf32>
    %35 = vector.broadcast %34 : vector<8x1xf32> to vector<8x32xf32>
    %36 = arith.mulf %31, %35 : vector<8x32xf32>
    %37 = vector.broadcast %16 : vector<1x32xf32> to vector<8x32xf32>
    %38 = arith.mulf %36, %37 : vector<8x32xf32>
    %39 = vector.broadcast %18 : vector<1x32xf32> to vector<8x32xf32>
    %40 = arith.addf %38, %39 : vector<8x32xf32>
    %41 = arith.truncf %40 : vector<8x32xf32> to vector<8x32xbf16>
    %c0_21 = arith.constant 0 : index
    %c0_22 = arith.constant 0 : index
    %c0_23 = arith.constant 0 : index
    %42 = vector.load %arg8[%c0_21, %c0_22, %c0_23] : memref<2x32x96xbf16, #tpu.memory_space<vmem>>, vector<1x32x96xbf16>
    %43 = vector.shape_cast %42 : vector<1x32x96xbf16> to vector<32x96xbf16>
    %cst_24 = arith.constant dense<0.000000e+00> : vector<8x96xf32>
    %44 = tpu.matmul %41, %43, %cst_24 {dimension_numbers = #tpu.dot_dimension_numbers<[1], [0], [0], [1], [0, 0, 1, 1], [], []>} : vector<8x32xbf16>, vector<32x96xbf16>, vector<8x96xf32> -> vector<8x96xf32>
    %c0_25 = arith.constant 0 : index
    %c0_26 = arith.constant 0 : index
    %c0_27 = arith.constant 0 : index
    %45 = vector.load %arg9[%c0_25, %c0_26, %c0_27] : memref<2x1x96xf32, #tpu.memory_space<vmem>>, vector<1x1x96xf32>
    %46 = vector.shape_cast %45 : vector<1x1x96xf32> to vector<1x96xf32>
    %47 = vector.broadcast %46 : vector<1x96xf32> to vector<8x96xf32>
    %48 = arith.addf %44, %47 : vector<8x96xf32>
    %49 = vector.extract_strided_slice %48 {offsets = [0, 0], sizes = [8, 64], strides = [1, 1]} : vector<8x96xf32> to vector<8x64xf32>
    %50 = arith.truncf %49 : vector<8x64xf32> to vector<8x64xbf16>
    %cst_28 = arith.constant dense<0.000000e+00> : vector<8x64xf32>
    %51 = tpu.matmul %50, %14, %cst_28 {dimension_numbers = #tpu.dot_dimension_numbers<[1], [0], [0], [1], [0, 0, 1, 1], [], []>} : vector<8x64xbf16>, vector<64x64xbf16>, vector<8x64xf32> -> vector<8x64xf32>
    %52 = vector.extract_strided_slice %48 {offsets = [0, 0], sizes = [8, 32], strides = [1, 1]} : vector<8x96xf32> to vector<8x32xf32>
    %53 = arith.mulf %52, %12 : vector<8x32xf32>
    %54 = vector.extract_strided_slice %51 {offsets = [0, 0], sizes = [8, 32], strides = [1, 1]} : vector<8x64xf32> to vector<8x32xf32>
    %55 = arith.mulf %54, %13 : vector<8x32xf32>
    %56 = arith.addf %53, %55 : vector<8x32xf32>
    %cst_29 = arith.constant 0.353553385 : f32
    %57 = vector.broadcast %cst_29 : f32 to vector<8x32xf32>
    %58 = arith.mulf %56, %57 : vector<8x32xf32>
    %59 = vector.extract_strided_slice %48 {offsets = [0, 32], sizes = [8, 32], strides = [1, 1]} : vector<8x96xf32> to vector<8x32xf32>
    %60 = arith.mulf %59, %12 : vector<8x32xf32>
    %61 = vector.extract_strided_slice %51 {offsets = [0, 32], sizes = [8, 32], strides = [1, 1]} : vector<8x64xf32> to vector<8x32xf32>
    %62 = arith.mulf %61, %13 : vector<8x32xf32>
    %63 = arith.addf %60, %62 : vector<8x32xf32>
    %64 = arith.truncf %58 : vector<8x32xf32> to vector<8x32xbf16>
    %65 = arith.truncf %63 : vector<8x32xf32> to vector<8x32xbf16>
    %66 = vector.extract_strided_slice %48 {offsets = [0, 64], sizes = [8, 32], strides = [1, 1]} : vector<8x96xf32> to vector<8x32xf32>
    %67 = arith.truncf %66 : vector<8x32xf32> to vector<8x32xbf16>
    %68 = vector.extract_strided_slice %64 {offsets = [0, 0], sizes = [8, 8], strides = [1, 1]} : vector<8x32xbf16> to vector<8x8xbf16>
    %69 = vector.extract_strided_slice %65 {offsets = [0, 0], sizes = [8, 8], strides = [1, 1]} : vector<8x32xbf16> to vector<8x8xbf16>
    %cst_30 = arith.constant dense<0.000000e+00> : vector<8x8xf32>
    %70 = tpu.matmul %68, %69, %cst_30 {dimension_numbers = #tpu.dot_dimension_numbers<[1], [1], [0], [0], [0, 0, 1, 0], [], []>} : vector<8x8xbf16>, vector<8x8xbf16>, vector<8x8xf32> -> vector<8x8xf32>
    %71 = vector.broadcast %11 : vector<1x8xf32> to vector<8x8xf32>
    %72 = arith.addf %70, %71 : vector<8x8xf32>
    %cst_31 = arith.constant dense<0xFF800000> : vector<8xf32>
    %73 = vector.multi_reduction <maximumf>, %72, %cst_31 [1] : vector<8x8xf32> to vector<8xf32>
    %74 = vector.shape_cast %73 : vector<8xf32> to vector<8x1xf32>
    %75 = vector.broadcast %74 : vector<8x1xf32> to vector<8x8xf32>
    %76 = arith.subf %72, %75 : vector<8x8xf32>
    %77 = math.exp %76 : vector<8x8xf32>
    %cst_32 = arith.constant dense<0.000000e+00> : vector<8xf32>
    %78 = vector.multi_reduction <add>, %77, %cst_32 [1] : vector<8x8xf32> to vector<8xf32>
    %79 = vector.shape_cast %78 : vector<8xf32> to vector<8x1xf32>
    %80 = vector.broadcast %79 : vector<8x1xf32> to vector<8x8xf32>
    %81 = arith.divf %77, %80 : vector<8x8xf32>
    %82 = arith.truncf %81 : vector<8x8xf32> to vector<8x8xbf16>
    %83 = vector.extract_strided_slice %67 {offsets = [0, 0], sizes = [8, 8], strides = [1, 1]} : vector<8x32xbf16> to vector<8x8xbf16>
    %cst_33 = arith.constant dense<0.000000e+00> : vector<8x8xf32>
    %84 = tpu.matmul %82, %83, %cst_33 {dimension_numbers = #tpu.dot_dimension_numbers<[1], [0], [0], [1], [0, 0, 1, 1], [], []>} : vector<8x8xbf16>, vector<8x8xbf16>, vector<8x8xf32> -> vector<8x8xf32>
    %c0_34 = arith.constant 0 : index
    %c0_35 = arith.constant 0 : index
    %85 = vector.load %arg21[%c0_34, %c0_35] : memref<8x32xf32, #tpu.memory_space<vmem>>, vector<8x8xf32>
    tpu.vector_store %arg21[%c0_34, %c0_35], %84 {strides = array<i32>} : memref<8x32xf32, #tpu.memory_space<vmem>>, vector<8x8xf32>,
    %86 = vector.extract_strided_slice %64 {offsets = [0, 8], sizes = [8, 8], strides = [1, 1]} : vector<8x32xbf16> to vector<8x8xbf16>
    %87 = vector.extract_strided_slice %65 {offsets = [0, 8], sizes = [8, 8], strides = [1, 1]} : vector<8x32xbf16> to vector<8x8xbf16>
    %cst_36 = arith.constant dense<0.000000e+00> : vector<8x8xf32>
    %88 = tpu.matmul %86, %87, %cst_36 {dimension_numbers = #tpu.dot_dimension_numbers<[1], [1], [0], [0], [0, 0, 1, 0], [], []>} : vector<8x8xbf16>, vector<8x8xbf16>, vector<8x8xf32> -> vector<8x8xf32>
    %89 = vector.broadcast %11 : vector<1x8xf32> to vector<8x8xf32>
    %90 = arith.addf %88, %89 : vector<8x8xf32>
    %cst_37 = arith.constant dense<0xFF800000> : vector<8xf32>
    %91 = vector.multi_reduction <maximumf>, %90, %cst_37 [1] : vector<8x8xf32> to vector<8xf32>
    %92 = vector.shape_cast %91 : vector<8xf32> to vector<8x1xf32>
    %93 = vector.broadcast %92 : vector<8x1xf32> to vector<8x8xf32>
    %94 = arith.subf %90, %93 : vector<8x8xf32>
    %95 = math.exp %94 : vector<8x8xf32>
    %cst_38 = arith.constant dense<0.000000e+00> : vector<8xf32>
    %96 = vector.multi_reduction <add>, %95, %cst_38 [1] : vector<8x8xf32> to vector<8xf32>
    %97 = vector.shape_cast %96 : vector<8xf32> to vector<8x1xf32>
    %98 = vector.broadcast %97 : vector<8x1xf32> to vector<8x8xf32>
    %99 = arith.divf %95, %98 : vector<8x8xf32>
    %100 = arith.truncf %99 : vector<8x8xf32> to vector<8x8xbf16>
    %101 = vector.extract_strided_slice %67 {offsets = [0, 8], sizes = [8, 8], strides = [1, 1]} : vector<8x32xbf16> to vector<8x8xbf16>
    %cst_39 = arith.constant dense<0.000000e+00> : vector<8x8xf32>
    %102 = tpu.matmul %100, %101, %cst_39 {dimension_numbers = #tpu.dot_dimension_numbers<[1], [0], [0], [1], [0, 0, 1, 1], [], []>} : vector<8x8xbf16>, vector<8x8xbf16>, vector<8x8xf32> -> vector<8x8xf32>
    %c0_40 = arith.constant 0 : index
    %c8 = arith.constant 8 : index
    %103 = vector.load %arg21[%c0_40, %c8] : memref<8x32xf32, #tpu.memory_space<vmem>>, vector<8x8xf32>
    tpu.vector_store %arg21[%c0_40, %c8], %102 {strides = array<i32>} : memref<8x32xf32, #tpu.memory_space<vmem>>, vector<8x8xf32>,
    %104 = vector.extract_strided_slice %64 {offsets = [0, 16], sizes = [8, 8], strides = [1, 1]} : vector<8x32xbf16> to vector<8x8xbf16>
    %105 = vector.extract_strided_slice %65 {offsets = [0, 16], sizes = [8, 8], strides = [1, 1]} : vector<8x32xbf16> to vector<8x8xbf16>
    %cst_41 = arith.constant dense<0.000000e+00> : vector<8x8xf32>
    %106 = tpu.matmul %104, %105, %cst_41 {dimension_numbers = #tpu.dot_dimension_numbers<[1], [1], [0], [0], [0, 0, 1, 0], [], []>} : vector<8x8xbf16>, vector<8x8xbf16>, vector<8x8xf32> -> vector<8x8xf32>
    %107 = vector.broadcast %11 : vector<1x8xf32> to vector<8x8xf32>
    %108 = arith.addf %106, %107 : vector<8x8xf32>
    %cst_42 = arith.constant dense<0xFF800000> : vector<8xf32>
    %109 = vector.multi_reduction <maximumf>, %108, %cst_42 [1] : vector<8x8xf32> to vector<8xf32>
    %110 = vector.shape_cast %109 : vector<8xf32> to vector<8x1xf32>
    %111 = vector.broadcast %110 : vector<8x1xf32> to vector<8x8xf32>
    %112 = arith.subf %108, %111 : vector<8x8xf32>
    %113 = math.exp %112 : vector<8x8xf32>
    %cst_43 = arith.constant dense<0.000000e+00> : vector<8xf32>
    %114 = vector.multi_reduction <add>, %113, %cst_43 [1] : vector<8x8xf32> to vector<8xf32>
    %115 = vector.shape_cast %114 : vector<8xf32> to vector<8x1xf32>
    %116 = vector.broadcast %115 : vector<8x1xf32> to vector<8x8xf32>
    %117 = arith.divf %113, %116 : vector<8x8xf32>
    %118 = arith.truncf %117 : vector<8x8xf32> to vector<8x8xbf16>
    %119 = vector.extract_strided_slice %67 {offsets = [0, 16], sizes = [8, 8], strides = [1, 1]} : vector<8x32xbf16> to vector<8x8xbf16>
    %cst_44 = arith.constant dense<0.000000e+00> : vector<8x8xf32>
    %120 = tpu.matmul %118, %119, %cst_44 {dimension_numbers = #tpu.dot_dimension_numbers<[1], [0], [0], [1], [0, 0, 1, 1], [], []>} : vector<8x8xbf16>, vector<8x8xbf16>, vector<8x8xf32> -> vector<8x8xf32>
    %c0_45 = arith.constant 0 : index
    %c16 = arith.constant 16 : index
    %121 = vector.load %arg21[%c0_45, %c16] : memref<8x32xf32, #tpu.memory_space<vmem>>, vector<8x8xf32>
    tpu.vector_store %arg21[%c0_45, %c16], %120 {strides = array<i32>} : memref<8x32xf32, #tpu.memory_space<vmem>>, vector<8x8xf32>,
    %122 = vector.extract_strided_slice %64 {offsets = [0, 24], sizes = [8, 8], strides = [1, 1]} : vector<8x32xbf16> to vector<8x8xbf16>
    %123 = vector.extract_strided_slice %65 {offsets = [0, 24], sizes = [8, 8], strides = [1, 1]} : vector<8x32xbf16> to vector<8x8xbf16>
    %cst_46 = arith.constant dense<0.000000e+00> : vector<8x8xf32>
    %124 = tpu.matmul %122, %123, %cst_46 {dimension_numbers = #tpu.dot_dimension_numbers<[1], [1], [0], [0], [0, 0, 1, 0], [], []>} : vector<8x8xbf16>, vector<8x8xbf16>, vector<8x8xf32> -> vector<8x8xf32>
    %125 = vector.broadcast %11 : vector<1x8xf32> to vector<8x8xf32>
    %126 = arith.addf %124, %125 : vector<8x8xf32>
    %cst_47 = arith.constant dense<0xFF800000> : vector<8xf32>
    %127 = vector.multi_reduction <maximumf>, %126, %cst_47 [1] : vector<8x8xf32> to vector<8xf32>
    %128 = vector.shape_cast %127 : vector<8xf32> to vector<8x1xf32>
    %129 = vector.broadcast %128 : vector<8x1xf32> to vector<8x8xf32>
    %130 = arith.subf %126, %129 : vector<8x8xf32>
    %131 = math.exp %130 : vector<8x8xf32>
    %cst_48 = arith.constant dense<0.000000e+00> : vector<8xf32>
    %132 = vector.multi_reduction <add>, %131, %cst_48 [1] : vector<8x8xf32> to vector<8xf32>
    %133 = vector.shape_cast %132 : vector<8xf32> to vector<8x1xf32>
    %134 = vector.broadcast %133 : vector<8x1xf32> to vector<8x8xf32>
    %135 = arith.divf %131, %134 : vector<8x8xf32>
    %136 = arith.truncf %135 : vector<8x8xf32> to vector<8x8xbf16>
    %137 = vector.extract_strided_slice %67 {offsets = [0, 24], sizes = [8, 8], strides = [1, 1]} : vector<8x32xbf16> to vector<8x8xbf16>
    %cst_49 = arith.constant dense<0.000000e+00> : vector<8x8xf32>
    %138 = tpu.matmul %136, %137, %cst_49 {dimension_numbers = #tpu.dot_dimension_numbers<[1], [0], [0], [1], [0, 0, 1, 1], [], []>} : vector<8x8xbf16>, vector<8x8xbf16>, vector<8x8xf32> -> vector<8x8xf32>
    %c0_50 = arith.constant 0 : index
    %c24 = arith.constant 24 : index
    %139 = vector.load %arg21[%c0_50, %c24] : memref<8x32xf32, #tpu.memory_space<vmem>>, vector<8x8xf32>
    tpu.vector_store %arg21[%c0_50, %c24], %138 {strides = array<i32>} : memref<8x32xf32, #tpu.memory_space<vmem>>, vector<8x8xf32>,
    %c0_51 = arith.constant 0 : index
    %c0_52 = arith.constant 0 : index
    %140 = vector.load %arg21[%c0_51, %c0_52] : memref<8x32xf32, #tpu.memory_space<vmem>>, vector<8x32xf32>
    %141 = arith.truncf %140 : vector<8x32xf32> to vector<8x32xbf16>
    %c0_53 = arith.constant 0 : index
    %c0_54 = arith.constant 0 : index
    %c0_55 = arith.constant 0 : index
    %142 = vector.load %arg10[%c0_53, %c0_54, %c0_55] : memref<2x32x32xbf16, #tpu.memory_space<vmem>>, vector<1x32x32xbf16>
    %143 = vector.shape_cast %142 : vector<1x32x32xbf16> to vector<32x32xbf16>
    %cst_56 = arith.constant dense<0.000000e+00> : vector<8x32xf32>
    %144 = tpu.matmul %141, %143, %cst_56 {dimension_numbers = #tpu.dot_dimension_numbers<[1], [0], [0], [1], [0, 0, 1, 1], [], []>} : vector<8x32xbf16>, vector<32x32xbf16>, vector<8x32xf32> -> vector<8x32xf32>
    %c0_57 = arith.constant 0 : index
    %c0_58 = arith.constant 0 : index
    %c0_59 = arith.constant 0 : index
    %145 = vector.load %arg11[%c0_57, %c0_58, %c0_59] : memref<2x1x32xf32, #tpu.memory_space<vmem>>, vector<1x1x32xf32>
    %146 = vector.shape_cast %145 : vector<1x1x32xf32> to vector<1x32xf32>
    %147 = vector.broadcast %146 : vector<1x32xf32> to vector<8x32xf32>
    %148 = arith.addf %144, %147 : vector<8x32xf32>
    %149 = arith.addf %148, %3 : vector<8x32xf32>
    %c0_60 = arith.constant 0 : index
    %c0_61 = arith.constant 0 : index
    %c0_62 = arith.constant 0 : index
    %150 = vector.load %arg12[%c0_60, %c0_61, %c0_62] : memref<2x1x32xf32, #tpu.memory_space<vmem>>, vector<1x1x32xf32>
    %151 = vector.shape_cast %150 : vector<1x1x32xf32> to vector<1x32xf32>
    %c0_63 = arith.constant 0 : index
    %c0_64 = arith.constant 0 : index
    %c0_65 = arith.constant 0 : index
    %152 = vector.load %arg13[%c0_63, %c0_64, %c0_65] : memref<2x1x32xf32, #tpu.memory_space<vmem>>, vector<1x1x32xf32>
    %153 = vector.shape_cast %152 : vector<1x1x32xf32> to vector<1x32xf32>
    %cst_66 = arith.constant dense<0.000000e+00> : vector<8xf32>
    %154 = vector.multi_reduction <add>, %149, %cst_66 [1] : vector<8x32xf32> to vector<8xf32>
    %155 = vector.shape_cast %154 : vector<8xf32> to vector<8x1xf32>
    %cst_67 = arith.constant 3.200000e+01 : f32
    %156 = vector.broadcast %cst_67 : f32 to vector<8x1xf32>
    %157 = arith.divf %155, %156 : vector<8x1xf32>
    %158 = vector.broadcast %157 : vector<8x1xf32> to vector<8x32xf32>
    %159 = arith.subf %149, %158 : vector<8x32xf32>
    %160 = arith.mulf %159, %159 : vector<8x32xf32>
    %cst_68 = arith.constant dense<0.000000e+00> : vector<8xf32>
    %161 = vector.multi_reduction <add>, %160, %cst_68 [1] : vector<8x32xf32> to vector<8xf32>
    %162 = vector.shape_cast %161 : vector<8xf32> to vector<8x1xf32>
    %cst_69 = arith.constant 3.200000e+01 : f32
    %163 = vector.broadcast %cst_69 : f32 to vector<8x1xf32>
    %164 = arith.divf %162, %163 : vector<8x1xf32>
    %165 = vector.broadcast %157 : vector<8x1xf32> to vector<8x32xf32>
    %166 = arith.subf %149, %165 : vector<8x32xf32>
    %cst_70 = arith.constant 9.99999997E-7 : f32
    %167 = vector.broadcast %cst_70 : f32 to vector<8x1xf32>
    %168 = arith.addf %164, %167 : vector<8x1xf32>
    %169 = math.rsqrt %168 : vector<8x1xf32>
    %170 = vector.broadcast %169 : vector<8x1xf32> to vector<8x32xf32>
    %171 = arith.mulf %166, %170 : vector<8x32xf32>
    %172 = vector.broadcast %151 : vector<1x32xf32> to vector<8x32xf32>
    %173 = arith.mulf %171, %172 : vector<8x32xf32>
    %174 = vector.broadcast %153 : vector<1x32xf32> to vector<8x32xf32>
    %175 = arith.addf %173, %174 : vector<8x32xf32>
    %176 = arith.truncf %175 : vector<8x32xf32> to vector<8x32xbf16>
    %c0_71 = arith.constant 0 : index
    %c0_72 = arith.constant 0 : index
    %c0_73 = arith.constant 0 : index
    %177 = vector.load %arg14[%c0_71, %c0_72, %c0_73] : memref<2x32x64xbf16, #tpu.memory_space<vmem>>, vector<1x32x64xbf16>
    %178 = vector.shape_cast %177 : vector<1x32x64xbf16> to vector<32x64xbf16>
    %cst_74 = arith.constant dense<0.000000e+00> : vector<8x64xf32>
    %179 = tpu.matmul %176, %178, %cst_74 {dimension_numbers = #tpu.dot_dimension_numbers<[1], [0], [0], [1], [0, 0, 1, 1], [], []>} : vector<8x32xbf16>, vector<32x64xbf16>, vector<8x64xf32> -> vector<8x64xf32>
    %c0_75 = arith.constant 0 : index
    %c0_76 = arith.constant 0 : index
    %c0_77 = arith.constant 0 : index
    %180 = vector.load %arg15[%c0_75, %c0_76, %c0_77] : memref<2x1x64xf32, #tpu.memory_space<vmem>>, vector<1x1x64xf32>
    %181 = vector.shape_cast %180 : vector<1x1x64xf32> to vector<1x64xf32>
    %182 = vector.broadcast %181 : vector<1x64xf32> to vector<8x64xf32>
    %183 = arith.addf %179, %182 : vector<8x64xf32>
    %cst_78 = arith.constant 0.000000e+00 : f32
    %184 = vector.broadcast %cst_78 : f32 to vector<8x64xf32>
    %185 = arith.maximumf %183, %184 : vector<8x64xf32>
    %186 = arith.truncf %185 : vector<8x64xf32> to vector<8x64xbf16>
    %c0_79 = arith.constant 0 : index
    %c0_80 = arith.constant 0 : index
    %c0_81 = arith.constant 0 : index
    %187 = vector.load %arg16[%c0_79, %c0_80, %c0_81] : memref<2x64x32xbf16, #tpu.memory_space<vmem>>, vector<1x64x32xbf16>
    %188 = vector.shape_cast %187 : vector<1x64x32xbf16> to vector<64x32xbf16>
    %cst_82 = arith.constant dense<0.000000e+00> : vector<8x32xf32>
    %189 = tpu.matmul %186, %188, %cst_82 {dimension_numbers = #tpu.dot_dimension_numbers<[1], [0], [0], [1], [0, 0, 1, 1], [], []>} : vector<8x64xbf16>, vector<64x32xbf16>, vector<8x32xf32> -> vector<8x32xf32>
    %c0_83 = arith.constant 0 : index
    %c0_84 = arith.constant 0 : index
    %c0_85 = arith.constant 0 : index
    %190 = vector.load %arg17[%c0_83, %c0_84, %c0_85] : memref<2x1x32xf32, #tpu.memory_space<vmem>>, vector<1x1x32xf32>
    %191 = vector.shape_cast %190 : vector<1x1x32xf32> to vector<1x32xf32>
    %192 = vector.broadcast %191 : vector<1x32xf32> to vector<8x32xf32>
    %193 = arith.addf %189, %192 : vector<8x32xf32>
    %194 = arith.addf %193, %149 : vector<8x32xf32>
    %c1 = arith.constant 1 : index
    %c0_86 = arith.constant 0 : index
    %c0_87 = arith.constant 0 : index
    %195 = vector.load %arg6[%c1, %c0_86, %c0_87] : memref<2x1x32xf32, #tpu.memory_space<vmem>>, vector<1x1x32xf32>
    %196 = vector.shape_cast %195 : vector<1x1x32xf32> to vector<1x32xf32>
    %c1_88 = arith.constant 1 : index
    %c0_89 = arith.constant 0 : index
    %c0_90 = arith.constant 0 : index
    %197 = vector.load %arg7[%c1_88, %c0_89, %c0_90] : memref<2x1x32xf32, #tpu.memory_space<vmem>>, vector<1x1x32xf32>
    %198 = vector.shape_cast %197 : vector<1x1x32xf32> to vector<1x32xf32>
    %cst_91 = arith.constant dense<0.000000e+00> : vector<8xf32>
    %199 = vector.multi_reduction <add>, %194, %cst_91 [1] : vector<8x32xf32> to vector<8xf32>
    %200 = vector.shape_cast %199 : vector<8xf32> to vector<8x1xf32>
    %cst_92 = arith.constant 3.200000e+01 : f32
    %201 = vector.broadcast %cst_92 : f32 to vector<8x1xf32>
    %202 = arith.divf %200, %201 : vector<8x1xf32>
    %203 = vector.broadcast %202 : vector<8x1xf32> to vector<8x32xf32>
    %204 = arith.subf %194, %203 : vector<8x32xf32>
    %205 = arith.mulf %204, %204 : vector<8x32xf32>
    %cst_93 = arith.constant dense<0.000000e+00> : vector<8xf32>
    %206 = vector.multi_reduction <add>, %205, %cst_93 [1] : vector<8x32xf32> to vector<8xf32>
    %207 = vector.shape_cast %206 : vector<8xf32> to vector<8x1xf32>
    %cst_94 = arith.constant 3.200000e+01 : f32
    %208 = vector.broadcast %cst_94 : f32 to vector<8x1xf32>
    %209 = arith.divf %207, %208 : vector<8x1xf32>
    %210 = vector.broadcast %202 : vector<8x1xf32> to vector<8x32xf32>
    %211 = arith.subf %194, %210 : vector<8x32xf32>
    %cst_95 = arith.constant 9.99999997E-7 : f32
    %212 = vector.broadcast %cst_95 : f32 to vector<8x1xf32>
    %213 = arith.addf %209, %212 : vector<8x1xf32>
    %214 = math.rsqrt %213 : vector<8x1xf32>
    %215 = vector.broadcast %214 : vector<8x1xf32> to vector<8x32xf32>
    %216 = arith.mulf %211, %215 : vector<8x32xf32>
    %217 = vector.broadcast %196 : vector<1x32xf32> to vector<8x32xf32>
    %218 = arith.mulf %216, %217 : vector<8x32xf32>
    %219 = vector.broadcast %198 : vector<1x32xf32> to vector<8x32xf32>
    %220 = arith.addf %218, %219 : vector<8x32xf32>
    %221 = arith.truncf %220 : vector<8x32xf32> to vector<8x32xbf16>
    %c1_96 = arith.constant 1 : index
    %c0_97 = arith.constant 0 : index
    %c0_98 = arith.constant 0 : index
    %222 = vector.load %arg8[%c1_96, %c0_97, %c0_98] : memref<2x32x96xbf16, #tpu.memory_space<vmem>>, vector<1x32x96xbf16>
    %223 = vector.shape_cast %222 : vector<1x32x96xbf16> to vector<32x96xbf16>
    %cst_99 = arith.constant dense<0.000000e+00> : vector<8x96xf32>
    %224 = tpu.matmul %221, %223, %cst_99 {dimension_numbers = #tpu.dot_dimension_numbers<[1], [0], [0], [1], [0, 0, 1, 1], [], []>} : vector<8x32xbf16>, vector<32x96xbf16>, vector<8x96xf32> -> vector<8x96xf32>
    %c1_100 = arith.constant 1 : index
    %c0_101 = arith.constant 0 : index
    %c0_102 = arith.constant 0 : index
    %225 = vector.load %arg9[%c1_100, %c0_101, %c0_102] : memref<2x1x96xf32, #tpu.memory_space<vmem>>, vector<1x1x96xf32>
    %226 = vector.shape_cast %225 : vector<1x1x96xf32> to vector<1x96xf32>
    %227 = vector.broadcast %226 : vector<1x96xf32> to vector<8x96xf32>
    %228 = arith.addf %224, %227 : vector<8x96xf32>
    %229 = vector.extract_strided_slice %228 {offsets = [0, 0], sizes = [8, 64], strides = [1, 1]} : vector<8x96xf32> to vector<8x64xf32>
    %230 = arith.truncf %229 : vector<8x64xf32> to vector<8x64xbf16>
    %cst_103 = arith.constant dense<0.000000e+00> : vector<8x64xf32>
    %231 = tpu.matmul %230, %14, %cst_103 {dimension_numbers = #tpu.dot_dimension_numbers<[1], [0], [0], [1], [0, 0, 1, 1], [], []>} : vector<8x64xbf16>, vector<64x64xbf16>, vector<8x64xf32> -> vector<8x64xf32>
    %232 = vector.extract_strided_slice %228 {offsets = [0, 0], sizes = [8, 32], strides = [1, 1]} : vector<8x96xf32> to vector<8x32xf32>
    %233 = arith.mulf %232, %12 : vector<8x32xf32>
    %234 = vector.extract_strided_slice %231 {offsets = [0, 0], sizes = [8, 32], strides = [1, 1]} : vector<8x64xf32> to vector<8x32xf32>
    %235 = arith.mulf %234, %13 : vector<8x32xf32>
    %236 = arith.addf %233, %235 : vector<8x32xf32>
    %cst_104 = arith.constant 0.353553385 : f32
    %237 = vector.broadcast %cst_104 : f32 to vector<8x32xf32>
    %238 = arith.mulf %236, %237 : vector<8x32xf32>
    %239 = vector.extract_strided_slice %228 {offsets = [0, 32], sizes = [8, 32], strides = [1, 1]} : vector<8x96xf32> to vector<8x32xf32>
    %240 = arith.mulf %239, %12 : vector<8x32xf32>
    %241 = vector.extract_strided_slice %231 {offsets = [0, 32], sizes = [8, 32], strides = [1, 1]} : vector<8x64xf32> to vector<8x32xf32>
    %242 = arith.mulf %241, %13 : vector<8x32xf32>
    %243 = arith.addf %240, %242 : vector<8x32xf32>
    %244 = arith.truncf %238 : vector<8x32xf32> to vector<8x32xbf16>
    %245 = arith.truncf %243 : vector<8x32xf32> to vector<8x32xbf16>
    %246 = vector.extract_strided_slice %228 {offsets = [0, 64], sizes = [8, 32], strides = [1, 1]} : vector<8x96xf32> to vector<8x32xf32>
    %247 = arith.truncf %246 : vector<8x32xf32> to vector<8x32xbf16>
    %248 = vector.extract_strided_slice %244 {offsets = [0, 0], sizes = [8, 8], strides = [1, 1]} : vector<8x32xbf16> to vector<8x8xbf16>
    %249 = vector.extract_strided_slice %245 {offsets = [0, 0], sizes = [8, 8], strides = [1, 1]} : vector<8x32xbf16> to vector<8x8xbf16>
    %cst_105 = arith.constant dense<0.000000e+00> : vector<8x8xf32>
    %250 = tpu.matmul %248, %249, %cst_105 {dimension_numbers = #tpu.dot_dimension_numbers<[1], [1], [0], [0], [0, 0, 1, 0], [], []>} : vector<8x8xbf16>, vector<8x8xbf16>, vector<8x8xf32> -> vector<8x8xf32>
    %251 = vector.broadcast %11 : vector<1x8xf32> to vector<8x8xf32>
    %252 = arith.addf %250, %251 : vector<8x8xf32>
    %cst_106 = arith.constant dense<0xFF800000> : vector<8xf32>
    %253 = vector.multi_reduction <maximumf>, %252, %cst_106 [1] : vector<8x8xf32> to vector<8xf32>
    %254 = vector.shape_cast %253 : vector<8xf32> to vector<8x1xf32>
    %255 = vector.broadcast %254 : vector<8x1xf32> to vector<8x8xf32>
    %256 = arith.subf %252, %255 : vector<8x8xf32>
    %257 = math.exp %256 : vector<8x8xf32>
    %cst_107 = arith.constant dense<0.000000e+00> : vector<8xf32>
    %258 = vector.multi_reduction <add>, %257, %cst_107 [1] : vector<8x8xf32> to vector<8xf32>
    %259 = vector.shape_cast %258 : vector<8xf32> to vector<8x1xf32>
    %260 = vector.broadcast %259 : vector<8x1xf32> to vector<8x8xf32>
    %261 = arith.divf %257, %260 : vector<8x8xf32>
    %262 = arith.truncf %261 : vector<8x8xf32> to vector<8x8xbf16>
    %263 = vector.extract_strided_slice %247 {offsets = [0, 0], sizes = [8, 8], strides = [1, 1]} : vector<8x32xbf16> to vector<8x8xbf16>
    %cst_108 = arith.constant dense<0.000000e+00> : vector<8x8xf32>
    %264 = tpu.matmul %262, %263, %cst_108 {dimension_numbers = #tpu.dot_dimension_numbers<[1], [0], [0], [1], [0, 0, 1, 1], [], []>} : vector<8x8xbf16>, vector<8x8xbf16>, vector<8x8xf32> -> vector<8x8xf32>
    %c0_109 = arith.constant 0 : index
    %c0_110 = arith.constant 0 : index
    %265 = vector.load %arg21[%c0_109, %c0_110] : memref<8x32xf32, #tpu.memory_space<vmem>>, vector<8x8xf32>
    tpu.vector_store %arg21[%c0_109, %c0_110], %264 {strides = array<i32>} : memref<8x32xf32, #tpu.memory_space<vmem>>, vector<8x8xf32>,
    %266 = vector.extract_strided_slice %244 {offsets = [0, 8], sizes = [8, 8], strides = [1, 1]} : vector<8x32xbf16> to vector<8x8xbf16>
    %267 = vector.extract_strided_slice %245 {offsets = [0, 8], sizes = [8, 8], strides = [1, 1]} : vector<8x32xbf16> to vector<8x8xbf16>
    %cst_111 = arith.constant dense<0.000000e+00> : vector<8x8xf32>
    %268 = tpu.matmul %266, %267, %cst_111 {dimension_numbers = #tpu.dot_dimension_numbers<[1], [1], [0], [0], [0, 0, 1, 0], [], []>} : vector<8x8xbf16>, vector<8x8xbf16>, vector<8x8xf32> -> vector<8x8xf32>
    %269 = vector.broadcast %11 : vector<1x8xf32> to vector<8x8xf32>
    %270 = arith.addf %268, %269 : vector<8x8xf32>
    %cst_112 = arith.constant dense<0xFF800000> : vector<8xf32>
    %271 = vector.multi_reduction <maximumf>, %270, %cst_112 [1] : vector<8x8xf32> to vector<8xf32>
    %272 = vector.shape_cast %271 : vector<8xf32> to vector<8x1xf32>
    %273 = vector.broadcast %272 : vector<8x1xf32> to vector<8x8xf32>
    %274 = arith.subf %270, %273 : vector<8x8xf32>
    %275 = math.exp %274 : vector<8x8xf32>
    %cst_113 = arith.constant dense<0.000000e+00> : vector<8xf32>
    %276 = vector.multi_reduction <add>, %275, %cst_113 [1] : vector<8x8xf32> to vector<8xf32>
    %277 = vector.shape_cast %276 : vector<8xf32> to vector<8x1xf32>
    %278 = vector.broadcast %277 : vector<8x1xf32> to vector<8x8xf32>
    %279 = arith.divf %275, %278 : vector<8x8xf32>
    %280 = arith.truncf %279 : vector<8x8xf32> to vector<8x8xbf16>
    %281 = vector.extract_strided_slice %247 {offsets = [0, 8], sizes = [8, 8], strides = [1, 1]} : vector<8x32xbf16> to vector<8x8xbf16>
    %cst_114 = arith.constant dense<0.000000e+00> : vector<8x8xf32>
    %282 = tpu.matmul %280, %281, %cst_114 {dimension_numbers = #tpu.dot_dimension_numbers<[1], [0], [0], [1], [0, 0, 1, 1], [], []>} : vector<8x8xbf16>, vector<8x8xbf16>, vector<8x8xf32> -> vector<8x8xf32>
    %c0_115 = arith.constant 0 : index
    %c8_116 = arith.constant 8 : index
    %283 = vector.load %arg21[%c0_115, %c8_116] : memref<8x32xf32, #tpu.memory_space<vmem>>, vector<8x8xf32>
    tpu.vector_store %arg21[%c0_115, %c8_116], %282 {strides = array<i32>} : memref<8x32xf32, #tpu.memory_space<vmem>>, vector<8x8xf32>,
    %284 = vector.extract_strided_slice %244 {offsets = [0, 16], sizes = [8, 8], strides = [1, 1]} : vector<8x32xbf16> to vector<8x8xbf16>
    %285 = vector.extract_strided_slice %245 {offsets = [0, 16], sizes = [8, 8], strides = [1, 1]} : vector<8x32xbf16> to vector<8x8xbf16>
    %cst_117 = arith.constant dense<0.000000e+00> : vector<8x8xf32>
    %286 = tpu.matmul %284, %285, %cst_117 {dimension_numbers = #tpu.dot_dimension_numbers<[1], [1], [0], [0], [0, 0, 1, 0], [], []>} : vector<8x8xbf16>, vector<8x8xbf16>, vector<8x8xf32> -> vector<8x8xf32>
    %287 = vector.broadcast %11 : vector<1x8xf32> to vector<8x8xf32>
    %288 = arith.addf %286, %287 : vector<8x8xf32>
    %cst_118 = arith.constant dense<0xFF800000> : vector<8xf32>
    %289 = vector.multi_reduction <maximumf>, %288, %cst_118 [1] : vector<8x8xf32> to vector<8xf32>
    %290 = vector.shape_cast %289 : vector<8xf32> to vector<8x1xf32>
    %291 = vector.broadcast %290 : vector<8x1xf32> to vector<8x8xf32>
    %292 = arith.subf %288, %291 : vector<8x8xf32>
    %293 = math.exp %292 : vector<8x8xf32>
    %cst_119 = arith.constant dense<0.000000e+00> : vector<8xf32>
    %294 = vector.multi_reduction <add>, %293, %cst_119 [1] : vector<8x8xf32> to vector<8xf32>
    %295 = vector.shape_cast %294 : vector<8xf32> to vector<8x1xf32>
    %296 = vector.broadcast %295 : vector<8x1xf32> to vector<8x8xf32>
    %297 = arith.divf %293, %296 : vector<8x8xf32>
    %298 = arith.truncf %297 : vector<8x8xf32> to vector<8x8xbf16>
    %299 = vector.extract_strided_slice %247 {offsets = [0, 16], sizes = [8, 8], strides = [1, 1]} : vector<8x32xbf16> to vector<8x8xbf16>
    %cst_120 = arith.constant dense<0.000000e+00> : vector<8x8xf32>
    %300 = tpu.matmul %298, %299, %cst_120 {dimension_numbers = #tpu.dot_dimension_numbers<[1], [0], [0], [1], [0, 0, 1, 1], [], []>} : vector<8x8xbf16>, vector<8x8xbf16>, vector<8x8xf32> -> vector<8x8xf32>
    %c0_121 = arith.constant 0 : index
    %c16_122 = arith.constant 16 : index
    %301 = vector.load %arg21[%c0_121, %c16_122] : memref<8x32xf32, #tpu.memory_space<vmem>>, vector<8x8xf32>
    tpu.vector_store %arg21[%c0_121, %c16_122], %300 {strides = array<i32>} : memref<8x32xf32, #tpu.memory_space<vmem>>, vector<8x8xf32>,
    %302 = vector.extract_strided_slice %244 {offsets = [0, 24], sizes = [8, 8], strides = [1, 1]} : vector<8x32xbf16> to vector<8x8xbf16>
    %303 = vector.extract_strided_slice %245 {offsets = [0, 24], sizes = [8, 8], strides = [1, 1]} : vector<8x32xbf16> to vector<8x8xbf16>
    %cst_123 = arith.constant dense<0.000000e+00> : vector<8x8xf32>
    %304 = tpu.matmul %302, %303, %cst_123 {dimension_numbers = #tpu.dot_dimension_numbers<[1], [1], [0], [0], [0, 0, 1, 0], [], []>} : vector<8x8xbf16>, vector<8x8xbf16>, vector<8x8xf32> -> vector<8x8xf32>
    %305 = vector.broadcast %11 : vector<1x8xf32> to vector<8x8xf32>
    %306 = arith.addf %304, %305 : vector<8x8xf32>
    %cst_124 = arith.constant dense<0xFF800000> : vector<8xf32>
    %307 = vector.multi_reduction <maximumf>, %306, %cst_124 [1] : vector<8x8xf32> to vector<8xf32>
    %308 = vector.shape_cast %307 : vector<8xf32> to vector<8x1xf32>
    %309 = vector.broadcast %308 : vector<8x1xf32> to vector<8x8xf32>
    %310 = arith.subf %306, %309 : vector<8x8xf32>
    %311 = math.exp %310 : vector<8x8xf32>
    %cst_125 = arith.constant dense<0.000000e+00> : vector<8xf32>
    %312 = vector.multi_reduction <add>, %311, %cst_125 [1] : vector<8x8xf32> to vector<8xf32>
    %313 = vector.shape_cast %312 : vector<8xf32> to vector<8x1xf32>
    %314 = vector.broadcast %313 : vector<8x1xf32> to vector<8x8xf32>
    %315 = arith.divf %311, %314 : vector<8x8xf32>
    %316 = arith.truncf %315 : vector<8x8xf32> to vector<8x8xbf16>
    %317 = vector.extract_strided_slice %247 {offsets = [0, 24], sizes = [8, 8], strides = [1, 1]} : vector<8x32xbf16> to vector<8x8xbf16>
    %cst_126 = arith.constant dense<0.000000e+00> : vector<8x8xf32>
    %318 = tpu.matmul %316, %317, %cst_126 {dimension_numbers = #tpu.dot_dimension_numbers<[1], [0], [0], [1], [0, 0, 1, 1], [], []>} : vector<8x8xbf16>, vector<8x8xbf16>, vector<8x8xf32> -> vector<8x8xf32>
    %c0_127 = arith.constant 0 : index
    %c24_128 = arith.constant 24 : index
    %319 = vector.load %arg21[%c0_127, %c24_128] : memref<8x32xf32, #tpu.memory_space<vmem>>, vector<8x8xf32>
    tpu.vector_store %arg21[%c0_127, %c24_128], %318 {strides = array<i32>} : memref<8x32xf32, #tpu.memory_space<vmem>>, vector<8x8xf32>,
    %c0_129 = arith.constant 0 : index
    %c0_130 = arith.constant 0 : index
    %320 = vector.load %arg21[%c0_129, %c0_130] : memref<8x32xf32, #tpu.memory_space<vmem>>, vector<8x32xf32>
    %321 = arith.truncf %320 : vector<8x32xf32> to vector<8x32xbf16>
    %c1_131 = arith.constant 1 : index
    %c0_132 = arith.constant 0 : index
    %c0_133 = arith.constant 0 : index
    %322 = vector.load %arg10[%c1_131, %c0_132, %c0_133] : memref<2x32x32xbf16, #tpu.memory_space<vmem>>, vector<1x32x32xbf16>
    %323 = vector.shape_cast %322 : vector<1x32x32xbf16> to vector<32x32xbf16>
    %cst_134 = arith.constant dense<0.000000e+00> : vector<8x32xf32>
    %324 = tpu.matmul %321, %323, %cst_134 {dimension_numbers = #tpu.dot_dimension_numbers<[1], [0], [0], [1], [0, 0, 1, 1], [], []>} : vector<8x32xbf16>, vector<32x32xbf16>, vector<8x32xf32> -> vector<8x32xf32>
    %c1_135 = arith.constant 1 : index
    %c0_136 = arith.constant 0 : index
    %c0_137 = arith.constant 0 : index
    %325 = vector.load %arg11[%c1_135, %c0_136, %c0_137] : memref<2x1x32xf32, #tpu.memory_space<vmem>>, vector<1x1x32xf32>
    %326 = vector.shape_cast %325 : vector<1x1x32xf32> to vector<1x32xf32>
    %327 = vector.broadcast %326 : vector<1x32xf32> to vector<8x32xf32>
    %328 = arith.addf %324, %327 : vector<8x32xf32>
    %329 = arith.addf %328, %194 : vector<8x32xf32>
    %c1_138 = arith.constant 1 : index
    %c0_139 = arith.constant 0 : index
    %c0_140 = arith.constant 0 : index
    %330 = vector.load %arg12[%c1_138, %c0_139, %c0_140] : memref<2x1x32xf32, #tpu.memory_space<vmem>>, vector<1x1x32xf32>
    %331 = vector.shape_cast %330 : vector<1x1x32xf32> to vector<1x32xf32>
    %c1_141 = arith.constant 1 : index
    %c0_142 = arith.constant 0 : index
    %c0_143 = arith.constant 0 : index
    %332 = vector.load %arg13[%c1_141, %c0_142, %c0_143] : memref<2x1x32xf32, #tpu.memory_space<vmem>>, vector<1x1x32xf32>
    %333 = vector.shape_cast %332 : vector<1x1x32xf32> to vector<1x32xf32>
    %cst_144 = arith.constant dense<0.000000e+00> : vector<8xf32>
    %334 = vector.multi_reduction <add>, %329, %cst_144 [1] : vector<8x32xf32> to vector<8xf32>
    %335 = vector.shape_cast %334 : vector<8xf32> to vector<8x1xf32>
    %cst_145 = arith.constant 3.200000e+01 : f32
    %336 = vector.broadcast %cst_145 : f32 to vector<8x1xf32>
    %337 = arith.divf %335, %336 : vector<8x1xf32>
    %338 = vector.broadcast %337 : vector<8x1xf32> to vector<8x32xf32>
    %339 = arith.subf %329, %338 : vector<8x32xf32>
    %340 = arith.mulf %339, %339 : vector<8x32xf32>
    %cst_146 = arith.constant dense<0.000000e+00> : vector<8xf32>
    %341 = vector.multi_reduction <add>, %340, %cst_146 [1] : vector<8x32xf32> to vector<8xf32>
    %342 = vector.shape_cast %341 : vector<8xf32> to vector<8x1xf32>
    %cst_147 = arith.constant 3.200000e+01 : f32
    %343 = vector.broadcast %cst_147 : f32 to vector<8x1xf32>
    %344 = arith.divf %342, %343 : vector<8x1xf32>
    %345 = vector.broadcast %337 : vector<8x1xf32> to vector<8x32xf32>
    %346 = arith.subf %329, %345 : vector<8x32xf32>
    %cst_148 = arith.constant 9.99999997E-7 : f32
    %347 = vector.broadcast %cst_148 : f32 to vector<8x1xf32>
    %348 = arith.addf %344, %347 : vector<8x1xf32>
    %349 = math.rsqrt %348 : vector<8x1xf32>
    %350 = vector.broadcast %349 : vector<8x1xf32> to vector<8x32xf32>
    %351 = arith.mulf %346, %350 : vector<8x32xf32>
    %352 = vector.broadcast %331 : vector<1x32xf32> to vector<8x32xf32>
    %353 = arith.mulf %351, %352 : vector<8x32xf32>
    %354 = vector.broadcast %333 : vector<1x32xf32> to vector<8x32xf32>
    %355 = arith.addf %353, %354 : vector<8x32xf32>
    %356 = arith.truncf %355 : vector<8x32xf32> to vector<8x32xbf16>
    %c1_149 = arith.constant 1 : index
    %c0_150 = arith.constant 0 : index
    %c0_151 = arith.constant 0 : index
    %357 = vector.load %arg14[%c1_149, %c0_150, %c0_151] : memref<2x32x64xbf16, #tpu.memory_space<vmem>>, vector<1x32x64xbf16>
    %358 = vector.shape_cast %357 : vector<1x32x64xbf16> to vector<32x64xbf16>
    %cst_152 = arith.constant dense<0.000000e+00> : vector<8x64xf32>
    %359 = tpu.matmul %356, %358, %cst_152 {dimension_numbers = #tpu.dot_dimension_numbers<[1], [0], [0], [1], [0, 0, 1, 1], [], []>} : vector<8x32xbf16>, vector<32x64xbf16>, vector<8x64xf32> -> vector<8x64xf32>
    %c1_153 = arith.constant 1 : index
    %c0_154 = arith.constant 0 : index
    %c0_155 = arith.constant 0 : index
    %360 = vector.load %arg15[%c1_153, %c0_154, %c0_155] : memref<2x1x64xf32, #tpu.memory_space<vmem>>, vector<1x1x64xf32>
    %361 = vector.shape_cast %360 : vector<1x1x64xf32> to vector<1x64xf32>
    %362 = vector.broadcast %361 : vector<1x64xf32> to vector<8x64xf32>
    %363 = arith.addf %359, %362 : vector<8x64xf32>
    %cst_156 = arith.constant 0.000000e+00 : f32
    %364 = vector.broadcast %cst_156 : f32 to vector<8x64xf32>
    %365 = arith.maximumf %363, %364 : vector<8x64xf32>
    %366 = arith.truncf %365 : vector<8x64xf32> to vector<8x64xbf16>
    %c1_157 = arith.constant 1 : index
    %c0_158 = arith.constant 0 : index
    %c0_159 = arith.constant 0 : index
    %367 = vector.load %arg16[%c1_157, %c0_158, %c0_159] : memref<2x64x32xbf16, #tpu.memory_space<vmem>>, vector<1x64x32xbf16>
    %368 = vector.shape_cast %367 : vector<1x64x32xbf16> to vector<64x32xbf16>
    %cst_160 = arith.constant dense<0.000000e+00> : vector<8x32xf32>
    %369 = tpu.matmul %366, %368, %cst_160 {dimension_numbers = #tpu.dot_dimension_numbers<[1], [0], [0], [1], [0, 0, 1, 1], [], []>} : vector<8x64xbf16>, vector<64x32xbf16>, vector<8x32xf32> -> vector<8x32xf32>
    %c1_161 = arith.constant 1 : index
    %c0_162 = arith.constant 0 : index
    %c0_163 = arith.constant 0 : index
    %370 = vector.load %arg17[%c1_161, %c0_162, %c0_163] : memref<2x1x32xf32, #tpu.memory_space<vmem>>, vector<1x1x32xf32>
    %371 = vector.shape_cast %370 : vector<1x1x32xf32> to vector<1x32xf32>
    %372 = vector.broadcast %371 : vector<1x32xf32> to vector<8x32xf32>
    %373 = arith.addf %369, %372 : vector<8x32xf32>
    %374 = arith.addf %373, %329 : vector<8x32xf32>
    %c0_164 = arith.constant 0 : index
    %c0_165 = arith.constant 0 : index
    %375 = vector.load %arg18[%c0_164, %c0_165] : memref<1x32xf32, #tpu.memory_space<vmem>>, vector<1x32xf32>
    %c0_166 = arith.constant 0 : index
    %c0_167 = arith.constant 0 : index
    %376 = vector.load %arg19[%c0_166, %c0_167] : memref<1x32xf32, #tpu.memory_space<vmem>>, vector<1x32xf32>
    %cst_168 = arith.constant dense<0.000000e+00> : vector<8xf32>
    %377 = vector.multi_reduction <add>, %374, %cst_168 [1] : vector<8x32xf32> to vector<8xf32>
    %378 = vector.shape_cast %377 : vector<8xf32> to vector<8x1xf32>
    %cst_169 = arith.constant 3.200000e+01 : f32
    %379 = vector.broadcast %cst_169 : f32 to vector<8x1xf32>
    %380 = arith.divf %378, %379 : vector<8x1xf32>
    %381 = vector.broadcast %380 : vector<8x1xf32> to vector<8x32xf32>
    %382 = arith.subf %374, %381 : vector<8x32xf32>
    %383 = arith.mulf %382, %382 : vector<8x32xf32>
    %cst_170 = arith.constant dense<0.000000e+00> : vector<8xf32>
    %384 = vector.multi_reduction <add>, %383, %cst_170 [1] : vector<8x32xf32> to vector<8xf32>
    %385 = vector.shape_cast %384 : vector<8xf32> to vector<8x1xf32>
    %cst_171 = arith.constant 3.200000e+01 : f32
    %386 = vector.broadcast %cst_171 : f32 to vector<8x1xf32>
    %387 = arith.divf %385, %386 : vector<8x1xf32>
    %388 = vector.broadcast %380 : vector<8x1xf32> to vector<8x32xf32>
    %389 = arith.subf %374, %388 : vector<8x32xf32>
    %cst_172 = arith.constant 9.99999997E-7 : f32
    %390 = vector.broadcast %cst_172 : f32 to vector<8x1xf32>
    %391 = arith.addf %387, %390 : vector<8x1xf32>
    %392 = math.rsqrt %391 : vector<8x1xf32>
    %393 = vector.broadcast %392 : vector<8x1xf32> to vector<8x32xf32>
    %394 = arith.mulf %389, %393 : vector<8x32xf32>
    %395 = vector.broadcast %375 : vector<1x32xf32> to vector<8x32xf32>
    %396 = arith.mulf %394, %395 : vector<8x32xf32>
    %397 = vector.broadcast %376 : vector<1x32xf32> to vector<8x32xf32>
    %398 = arith.addf %396, %397 : vector<8x32xf32>
    %c0_173 = arith.constant 0 : index
    %c0_174 = arith.constant 0 : index
    %c0_175 = arith.constant 0 : index
    %399 = vector.load %arg20[%c0_173, %c0_174, %c0_175] : memref<1x8x32xf32, #tpu.memory_space<vmem>>, vector<1x8x32xf32>
    %400 = vector.shape_cast %399 : vector<1x8x32xf32> to vector<8x32xf32>
    %401 = vector.shape_cast %398 : vector<8x32xf32> to vector<1x8x32xf32>
    tpu.vector_store %arg20[%c0_173, %c0_174, %c0_175], %401 {strides = array<i32>} : memref<1x8x32xf32, #tpu.memory_space<vmem>>, vector<1x8x32xf32>,
    return
  }
  func.func @transform_0(%arg0: i32, %arg1: memref<2xi32, #tpu.memory_space<smem>>) -> (i32, i32, i32) {
    %c0_i32 = arith.constant 0 : i32
    %c0_i32_0 = arith.constant 0 : i32
    %c0_i32_1 = arith.constant 0 : i32
    return %arg0, %c0_i32, %c0_i32_0 : i32, i32, i32
  }
  func.func @transform_1(%arg0: i32, %arg1: memref<2xi32, #tpu.memory_space<smem>>) -> (i32, i32) {
    %c0_i32 = arith.constant 0 : i32
    %c0_i32_0 = arith.constant 0 : i32
    %c0_i32_1 = arith.constant 0 : i32
    return %c0_i32, %c0_i32_0 : i32, i32
  }
  func.func @transform_2(%arg0: i32, %arg1: memref<2xi32, #tpu.memory_space<smem>>) -> (i32, i32) {
    %c0_i32 = arith.constant 0 : i32
    %c0_i32_0 = arith.constant 0 : i32
    %c0_i32_1 = arith.constant 0 : i32
    return %c0_i32, %c0_i32_0 : i32, i32
  }
  func.func @transform_3(%arg0: i32, %arg1: memref<2xi32, #tpu.memory_space<smem>>) -> (i32, i32) {
    %c0_i32 = arith.constant 0 : i32
    %c0_i32_0 = arith.constant 0 : i32
    %c0_i32_1 = arith.constant 0 : i32
    return %c0_i32, %c0_i32_0 : i32, i32
  }
  func.func @transform_4(%arg0: i32, %arg1: memref<2xi32, #tpu.memory_space<smem>>) -> (i32, i32, i32) {
    %c0_i32 = arith.constant 0 : i32
    %c0_i32_0 = arith.constant 0 : i32
    %c0_i32_1 = arith.constant 0 : i32
    %c0_i32_2 = arith.constant 0 : i32
    return %c0_i32, %c0_i32_0, %c0_i32_1 : i32, i32, i32
  }
  func.func @transform_5(%arg0: i32, %arg1: memref<2xi32, #tpu.memory_space<smem>>) -> (i32, i32, i32) {
    %c0_i32 = arith.constant 0 : i32
    %c0_i32_0 = arith.constant 0 : i32
    %c0_i32_1 = arith.constant 0 : i32
    %c0_i32_2 = arith.constant 0 : i32
    return %c0_i32, %c0_i32_0, %c0_i32_1 : i32, i32, i32
  }
  func.func @transform_6(%arg0: i32, %arg1: memref<2xi32, #tpu.memory_space<smem>>) -> (i32, i32, i32) {
    %c0_i32 = arith.constant 0 : i32
    %c0_i32_0 = arith.constant 0 : i32
    %c0_i32_1 = arith.constant 0 : i32
    %c0_i32_2 = arith.constant 0 : i32
    return %c0_i32, %c0_i32_0, %c0_i32_1 : i32, i32, i32
  }
  func.func @transform_7(%arg0: i32, %arg1: memref<2xi32, #tpu.memory_space<smem>>) -> (i32, i32, i32) {
    %c0_i32 = arith.constant 0 : i32
    %c0_i32_0 = arith.constant 0 : i32
    %c0_i32_1 = arith.constant 0 : i32
    %c0_i32_2 = arith.constant 0 : i32
    return %c0_i32, %c0_i32_0, %c0_i32_1 : i32, i32, i32
  }
  func.func @transform_8(%arg0: i32, %arg1: memref<2xi32, #tpu.memory_space<smem>>) -> (i32, i32, i32) {
    %c0_i32 = arith.constant 0 : i32
    %c0_i32_0 = arith.constant 0 : i32
    %c0_i32_1 = arith.constant 0 : i32
    %c0_i32_2 = arith.constant 0 : i32
    return %c0_i32, %c0_i32_0, %c0_i32_1 : i32, i32, i32
  }
  func.func @transform_9(%arg0: i32, %arg1: memref<2xi32, #tpu.memory_space<smem>>) -> (i32, i32, i32) {
    %c0_i32 = arith.constant 0 : i32
    %c0_i32_0 = arith.constant 0 : i32
    %c0_i32_1 = arith.constant 0 : i32
    %c0_i32_2 = arith.constant 0 : i32
    return %c0_i32, %c0_i32_0, %c0_i32_1 : i32, i32, i32
  }
  func.func @transform_10(%arg0: i32, %arg1: memref<2xi32, #tpu.memory_space<smem>>) -> (i32, i32, i32) {
    %c0_i32 = arith.constant 0 : i32
    %c0_i32_0 = arith.constant 0 : i32
    %c0_i32_1 = arith.constant 0 : i32
    %c0_i32_2 = arith.constant 0 : i32
    return %c0_i32, %c0_i32_0, %c0_i32_1 : i32, i32, i32
  }
  func.func @transform_11(%arg0: i32, %arg1: memref<2xi32, #tpu.memory_space<smem>>) -> (i32, i32, i32) {
    %c0_i32 = arith.constant 0 : i32
    %c0_i32_0 = arith.constant 0 : i32
    %c0_i32_1 = arith.constant 0 : i32
    %c0_i32_2 = arith.constant 0 : i32
    return %c0_i32, %c0_i32_0, %c0_i32_1 : i32, i32, i32
  }
  func.func @transform_12(%arg0: i32, %arg1: memref<2xi32, #tpu.memory_space<smem>>) -> (i32, i32, i32) {
    %c0_i32 = arith.constant 0 : i32
    %c0_i32_0 = arith.constant 0 : i32
    %c0_i32_1 = arith.constant 0 : i32
    %c0_i32_2 = arith.constant 0 : i32
    return %c0_i32, %c0_i32_0, %c0_i32_1 : i32, i32, i32
  }
  func.func @transform_13(%arg0: i32, %arg1: memref<2xi32, #tpu.memory_space<smem>>) -> (i32, i32, i32) {
    %c0_i32 = arith.constant 0 : i32
    %c0_i32_0 = arith.constant 0 : i32
    %c0_i32_1 = arith.constant 0 : i32
    %c0_i32_2 = arith.constant 0 : i32
    return %c0_i32, %c0_i32_0, %c0_i32_1 : i32, i32, i32
  }
  func.func @transform_14(%arg0: i32, %arg1: memref<2xi32, #tpu.memory_space<smem>>) -> (i32, i32, i32) {
    %c0_i32 = arith.constant 0 : i32
    %c0_i32_0 = arith.constant 0 : i32
    %c0_i32_1 = arith.constant 0 : i32
    %c0_i32_2 = arith.constant 0 : i32
    return %c0_i32, %c0_i32_0, %c0_i32_1 : i32, i32, i32
  }
  func.func @transform_15(%arg0: i32, %arg1: memref<2xi32, #tpu.memory_space<smem>>) -> (i32, i32, i32) {
    %c0_i32 = arith.constant 0 : i32
    %c0_i32_0 = arith.constant 0 : i32
    %c0_i32_1 = arith.constant 0 : i32
    %c0_i32_2 = arith.constant 0 : i32
    return %c0_i32, %c0_i32_0, %c0_i32_1 : i32, i32, i32
  }
  func.func @transform_16(%arg0: i32, %arg1: memref<2xi32, #tpu.memory_space<smem>>) -> (i32, i32) {
    %c0_i32 = arith.constant 0 : i32
    %c0_i32_0 = arith.constant 0 : i32
    %c0_i32_1 = arith.constant 0 : i32
    return %c0_i32, %c0_i32_0 : i32, i32
  }
  func.func @transform_17(%arg0: i32, %arg1: memref<2xi32, #tpu.memory_space<smem>>) -> (i32, i32) {
    %c0_i32 = arith.constant 0 : i32
    %c0_i32_0 = arith.constant 0 : i32
    %c0_i32_1 = arith.constant 0 : i32
    return %c0_i32, %c0_i32_0 : i32, i32
  }
  func.func @transform_18(%arg0: i32, %arg1: memref<2xi32, #tpu.memory_space<smem>>) -> (i32, i32, i32) {
    %c0_i32 = arith.constant 0 : i32
    %c0_i32_0 = arith.constant 0 : i32
    %c0_i32_1 = arith.constant 0 : i32
    return %arg0, %c0_i32, %c0_i32_0 : i32, i32, i32
  }
}

</mosaic_0001>

<llo_original>
// kernel: attn_encoder_xl.1
$region0: #{attn_encoder_xl.1}
  #allocation0 [shape = 'u32[]', space=smem, size = 0x4, offset = 0x4, fixed_abs, tag = 'smem constant byte address 0x4 - core index']
  #allocation1 [shape = 'u32[144,128]{1,0:T(1,128)}', space=vmem, size = 0x12000, scoped, tag = 'internal scratch']
  #allocation2 [shape = 'f32[8,32]{1,0:T(8,128)}', space=vmem, size = 0x1000, scoped, tag = 'scratch operand']
  #allocation3 [shape = 's32[1]{0}', space=sflag, size = 0x4, scoped, tag = 'scoped memory for attn_encoder_xl.1']
  #allocation4 [shape = 'u8[512]{0}', space=smem, size = 0x200, scoped, tag = 'prefetched SMEM operand 0']
  %s0 = inlined_call_operand.vmem [shape: s32[2], index: 0, kind: input, shape index: {}]
  %s1 = inlined_call_operand.vmem [shape: f32[2,8,32], index: 1, kind: input, shape index: {}]
  %s2 = inlined_call_operand.vmem [shape: f32[8,32], index: 2, kind: input, shape index: {}]
  %s3 = inlined_call_operand.vmem [shape: f32[8,32], index: 3, kind: input, shape index: {}]
  %s4 = inlined_call_operand.vmem [shape: bf16[64,64], index: 4, kind: input, shape index: {}]
  %s5 = inlined_call_operand.vmem [shape: f32[2,1,32], index: 5, kind: input, shape index: {}]
  %s6 = inlined_call_operand.vmem [shape: f32[2,1,32], index: 6, kind: input, shape index: {}]
  %s7 = inlined_call_operand.vmem [shape: bf16[2,32,96], index: 7, kind: input, shape index: {}]
  %s8 = inlined_call_operand.vmem [shape: f32[2,1,96], index: 8, kind: input, shape index: {}]
  %s9 = inlined_call_operand.vmem [shape: bf16[2,32,32], index: 9, kind: input, shape index: {}]
  %s10 = inlined_call_operand.vmem [shape: f32[2,1,32], index: 10, kind: input, shape index: {}]
  %s11 = inlined_call_operand.vmem [shape: f32[2,1,32], index: 11, kind: input, shape index: {}]
  %s12 = inlined_call_operand.vmem [shape: f32[2,1,32], index: 12, kind: input, shape index: {}]
  %s13 = inlined_call_operand.vmem [shape: bf16[2,32,64], index: 13, kind: input, shape index: {}]
  %s14 = inlined_call_operand.vmem [shape: f32[2,1,64], index: 14, kind: input, shape index: {}]
  %s15 = inlined_call_operand.vmem [shape: bf16[2,64,32], index: 15, kind: input, shape index: {}]
  %s16 = inlined_call_operand.vmem [shape: f32[2,1,32], index: 16, kind: input, shape index: {}]
  %s17 = inlined_call_operand.vmem [shape: f32[1,32], index: 17, kind: input, shape index: {}]
  %s18 = inlined_call_operand.vmem [shape: f32[1,32], index: 18, kind: input, shape index: {}]
  %s19 = inlined_call_operand.vmem [shape: f32[2,8,32], index: 19, kind: output, shape index: {}]
  %s20 = sld [smem:[#allocation0]]
  $region105: #{attn_encoder_xl.1} parent=0
    _
  %s22 = ssub.s32 1, %s20
  %s23 = scalar_select 0, %s22, %s20
  %s24 = sshll.u32 %s0, 4
  %s25 = int_to_ptr.vmem [resolvable:$true] %s24
  %27 = dma.vmem_to_smem %s25, 16, [#allocation4], [#allocation3]
  %28 = dma.done [#allocation3], 16
  %29 = sfence
  loop: start=0, step=1, limit=4
  $region2: #{attn_encoder_xl.1} parent=0 // loop_pre_header
    _
  $region3: #{attn_encoder_xl.1} parent=0 // loop_header
    %s31 = sphi 0, %s35
    %p32 = scmp.ge.s32.totalorder %s31, 4
    %s41 = sphi 0, %s43
    %s44 = sphi 0, %s41
    %s45 = sphi 0, %s44
    %s61 = sphi 0, %s45
    %s65 = sphi 0, %s65
    %s67 = sphi 0, %s65
    %s68 = sphi 0, %s67
    %s82 = sphi 0, %s68
    %s86 = sphi 0, %s86
    %s88 = sphi 0, %s86
    %s89 = sphi 0, %s88
    %s103 = sphi 0, %s89
    %s107 = sphi 0, %s107
    %s109 = sphi 0, %s107
    %s110 = sphi 0, %s109
    %s124 = sphi 0, %s110
    %s128 = sphi 0, %s128
    %s130 = sphi 0, %s128
    %s131 = sphi 0, %s130
    %s145 = sphi 0, %s131
    %s149 = sphi 0, %s149
    %s151 = sphi 0, %s149
    %s152 = sphi 0, %s151
    %s166 = sphi 0, %s152
    %s170 = sphi 0, %s170
    %s172 = sphi 0, %s170
    %s173 = sphi 0, %s172
    %s187 = sphi 0, %s173
    %s191 = sphi 0, %s191
    %s193 = sphi 0, %s191
    %s194 = sphi 0, %s193
    %s208 = sphi 0, %s194
    %s212 = sphi 0, %s212
    %s214 = sphi 0, %s212
    %s215 = sphi 0, %s214
    %s229 = sphi 0, %s215
    %s233 = sphi 0, %s233
    %s235 = sphi 0, %s233
    %s236 = sphi 0, %s235
    %s250 = sphi 0, %s236
    %s254 = sphi 0, %s254
    %s256 = sphi 0, %s254
    %s257 = sphi 0, %s256
    %s271 = sphi 0, %s257
    %s275 = sphi 0, %s275
    %s277 = sphi 0, %s275
    %s278 = sphi 0, %s277
    %s292 = sphi 0, %s278
    %s296 = sphi 0, %s296
    %s298 = sphi 0, %s296
    %s299 = sphi 0, %s298
    %s313 = sphi 0, %s299
    %s317 = sphi 0, %s317
    %s319 = sphi 0, %s317
    %s320 = sphi 0, %s319
    %s334 = sphi 0, %s320
    %s338 = sphi 0, %s338
    %s340 = sphi 0, %s338
    %s341 = sphi 0, %s340
    %s355 = sphi 0, %s341
    %s359 = sphi 0, %s359
    %s361 = sphi 0, %s359
    %s362 = sphi 0, %s361
    %s376 = sphi 0, %s362
    %s380 = sphi 0, %s380
    %s382 = sphi 0, %s380
    %s383 = sphi 0, %s382
    %s397 = sphi 0, %s383
    %s401 = sphi 0, %s401
    %s403 = sphi 0, %s401
    %s404 = sphi 0, %s403
    %s418 = sphi 0, %s404
    %s424 = sphi 0, %s426
    %s427 = sphi 0, %s424
    %s428 = sphi 0, %s427
    %s444 = sphi 0, %s428
  $region4: #{attn_encoder_xl.1} parent=0 // loop_header_branch
    %34 = sbr.rel (%p32) target = $region8
  $region5: #{attn_encoder_xl.1} parent=0 // loop_body
    %s36 = ssub.s32 %s31, 1
    %s37 = ssub.s32 %s31, 2
    %s38 = sadd.s32 %s31, 1
    %s39 = ssub.s32 %s31, %s38
    %p40 = scmp.eq.s32.totalorder %s39, 0
    %s42 = sadd.s32 %s41, 1
    %s43 = scalar_select %p40, %s41, %s42
    %p46 = pneg %p40
    %p47 = scmp.eq.s32.totalorder %s31, 1
    %p48 = por %p46, %p47
    %p49 = scmp.ne.s32.totalorder %s41, %s44
    %p50 = scmp.eq.s32.totalorder %s31, 0
    %p51 = por %p49, %p50
    %p52 = scmp.ne.s32.totalorder %s41, %s44
    %p53 = scmp.eq.s32.totalorder %s36, 1
    %p54 = por %p52, %p53
    %p55 = scmp.ne.s32.totalorder %s44, %s45
    %p56 = scmp.eq.s32.totalorder %s36, 0
    %p57 = por %p55, %p56
    %p58 = scmp.ne.s32.totalorder %s44, %s45
    %p59 = scmp.eq.s32.totalorder %s37, 1
    %p60 = por %p58, %p59
    %p62 = scmp.ne.s32.totalorder %s45, %s61
    %p63 = scmp.eq.s32.totalorder %s37, 0
    %p64 = por %p62, %p63
    %s66 = sadd.s32 %s65, 1
    %p69 = scmp.eq.s32.totalorder %s31, 1
    %p70 = scmp.ne.s32.totalorder %s65, %s67
    %p71 = scmp.eq.s32.totalorder %s31, 0
    %p72 = por %p70, %p71
    %p73 = scmp.ne.s32.totalorder %s65, %s67
    %p74 = scmp.eq.s32.totalorder %s36, 1
    %p75 = por %p73, %p74
    %p76 = scmp.ne.s32.totalorder %s67, %s68
    %p77 = scmp.eq.s32.totalorder %s36, 0
    %p78 = por %p76, %p77
    %p79 = scmp.ne.s32.totalorder %s67, %s68
    %p80 = scmp.eq.s32.totalorder %s37, 1
    %p81 = por %p79, %p80
    %p83 = scmp.ne.s32.totalorder %s68, %s82
    %p84 = scmp.eq.s32.totalorder %s37, 0
    %p85 = por %p83, %p84
    %s87 = sadd.s32 %s86, 1
    %p90 = scmp.eq.s32.totalorder %s31, 1
    %p91 = scmp.ne.s32.totalorder %s86, %s88
    %p92 = scmp.eq.s32.totalorder %s31, 0
    %p93 = por %p91, %p92
    %p94 = scmp.ne.s32.totalorder %s86, %s88
    %p95 = scmp.eq.s32.totalorder %s36, 1
    %p96 = por %p94, %p95
    %p97 = scmp.ne.s32.totalorder %s88, %s89
    %p98 = scmp.eq.s32.totalorder %s36, 0
    %p99 = por %p97, %p98
    %p100 = scmp.ne.s32.totalorder %s88, %s89
    %p101 = scmp.eq.s32.totalorder %s37, 1
    %p102 = por %p100, %p101
    %p104 = scmp.ne.s32.totalorder %s89, %s103
    %p105 = scmp.eq.s32.totalorder %s37, 0
    %p106 = por %p104, %p105
    %s108 = sadd.s32 %s107, 1
    %p111 = scmp.eq.s32.totalorder %s31, 1
    %p112 = scmp.ne.s32.totalorder %s107, %s109
    %p113 = scmp.eq.s32.totalorder %s31, 0
    %p114 = por %p112, %p113
    %p115 = scmp.ne.s32.totalorder %s107, %s109
    %p116 = scmp.eq.s32.totalorder %s36, 1
    %p117 = por %p115, %p116
    %p118 = scmp.ne.s32.totalorder %s109, %s110
    %p119 = scmp.eq.s32.totalorder %s36, 0
    %p120 = por %p118, %p119
    %p121 = scmp.ne.s32.totalorder %s109, %s110
    %p122 = scmp.eq.s32.totalorder %s37, 1
    %p123 = por %p121, %p122
    %p125 = scmp.ne.s32.totalorder %s110, %s124
    %p126 = scmp.eq.s32.totalorder %s37, 0
    %p127 = por %p125, %p126
    %s129 = sadd.s32 %s128, 1
    %p132 = scmp.eq.s32.totalorder %s31, 1
    %p133 = scmp.ne.s32.totalorder %s128, %s130
    %p134 = scmp.eq.s32.totalorder %s31, 0
    %p135 = por %p133, %p134
    %p136 = scmp.ne.s32.totalorder %s128, %s130
    %p137 = scmp.eq.s32.totalorder %s36, 1
    %p138 = por %p136, %p137
    %p139 = scmp.ne.s32.totalorder %s130, %s131
    %p140 = scmp.eq.s32.totalorder %s36, 0
    %p141 = por %p139, %p140
    %p142 = scmp.ne.s32.totalorder %s130, %s131
    %p143 = scmp.eq.s32.totalorder %s37, 1
    %p144 = por %p142, %p143
    %p146 = scmp.ne.s32.totalorder %s131, %s145
    %p147 = scmp.eq.s32.totalorder %s37, 0
    %p148 = por %p146, %p147
    %s150 = sadd.s32 %s149, 1
    %p153 = scmp.eq.s32.totalorder %s31, 1
    %p154 = scmp.ne.s32.totalorder %s149, %s151
    %p155 = scmp.eq.s32.totalorder %s31, 0
    %p156 = por %p154, %p155
    %p157 = scmp.ne.s32.totalorder %s149, %s151
    %p158 = scmp.eq.s32.totalorder %s36, 1
    %p159 = por %p157, %p158
    %p160 = scmp.ne.s32.totalorder %s151, %s152
    %p161 = scmp.eq.s32.totalorder %s36, 0
    %p162 = por %p160, %p161
    %p163 = scmp.ne.s32.totalorder %s151, %s152
    %p164 = scmp.eq.s32.totalorder %s37, 1
    %p165 = por %p163, %p164
    %p167 = scmp.ne.s32.totalorder %s152, %s166
    %p168 = scmp.eq.s32.totalorder %s37, 0
    %p169 = por %p167, %p168
    %s171 = sadd.s32 %s170, 1
    %p174 = scmp.eq.s32.totalorder %s31, 1
    %p175 = scmp.ne.s32.totalorder %s170, %s172
    %p176 = scmp.eq.s32.totalorder %s31, 0
    %p177 = por %p175, %p176
    %p178 = scmp.ne.s32.totalorder %s170, %s172
    %p179 = scmp.eq.s32.totalorder %s36, 1
    %p180 = por %p178, %p179
    %p181 = scmp.ne.s32.totalorder %s172, %s173
    %p182 = scmp.eq.s32.totalorder %s36, 0
    %p183 = por %p181, %p182
    %p184 = scmp.ne.s32.totalorder %s172, %s173
    %p185 = scmp.eq.s32.totalorder %s37, 1
    %p186 = por %p184, %p185
    %p188 = scmp.ne.s32.totalorder %s173, %s187
    %p189 = scmp.eq.s32.totalorder %s37, 0
    %p190 = por %p188, %p189
    %s192 = sadd.s32 %s191, 1
    %p195 = scmp.eq.s32.totalorder %s31, 1
    %p196 = scmp.ne.s32.totalorder %s191, %s193
    %p197 = scmp.eq.s32.totalorder %s31, 0
    %p198 = por %p196, %p197
    %p199 = scmp.ne.s32.totalorder %s191, %s193
    %p200 = scmp.eq.s32.totalorder %s36, 1
    %p201 = por %p199, %p200
    %p202 = scmp.ne.s32.totalorder %s193, %s194
    %p203 = scmp.eq.s32.totalorder %s36, 0
    %p204 = por %p202, %p203
    %p205 = scmp.ne.s32.totalorder %s193, %s194
    %p206 = scmp.eq.s32.totalorder %s37, 1
    %p207 = por %p205, %p206
    %p209 = scmp.ne.s32.totalorder %s194, %s208
    %p210 = scmp.eq.s32.totalorder %s37, 0
    %p211 = por %p209, %p210
    %s213 = sadd.s32 %s212, 1
    %p216 = scmp.eq.s32.totalorder %s31, 1
    %p217 = scmp.ne.s32.totalorder %s212, %s214
    %p218 = scmp.eq.s32.totalorder %s31, 0
    %p219 = por %p217, %p218
    %p220 = scmp.ne.s32.totalorder %s212, %s214
    %p221 = scmp.eq.s32.totalorder %s36, 1
    %p222 = por %p220, %p221
    %p223 = scmp.ne.s32.totalorder %s214, %s215
    %p224 = scmp.eq.s32.totalorder %s36, 0
    %p225 = por %p223, %p224
    %p226 = scmp.ne.s32.totalorder %s214, %s215
    %p227 = scmp.eq.s32.totalorder %s37, 1
    %p228 = por %p226, %p227
    %p230 = scmp.ne.s32.totalorder %s215, %s229
    %p231 = scmp.eq.s32.totalorder %s37, 0
    %p232 = por %p230, %p231
    %s234 = sadd.s32 %s233, 1
    %p237 = scmp.eq.s32.totalorder %s31, 1
    %p238 = scmp.ne.s32.totalorder %s233, %s235
    %p239 = scmp.eq.s32.totalorder %s31, 0
    %p240 = por %p238, %p239
    %p241 = scmp.ne.s32.totalorder %s233, %s235
    %p242 = scmp.eq.s32.totalorder %s36, 1
    %p243 = por %p241, %p242
    %p244 = scmp.ne.s32.totalorder %s235, %s236
    %p245 = scmp.eq.s32.totalorder %s36, 0
    %p246 = por %p244, %p245
    %p247 = scmp.ne.s32.totalorder %s235, %s236
    %p248 = scmp.eq.s32.totalorder %s37, 1
    %p249 = por %p247, %p248
    %p251 = scmp.ne.s32.totalorder %s236, %s250
    %p252 = scmp.eq.s32.totalorder %s37, 0
    %p253 = por %p251, %p252
    %s255 = sadd.s32 %s254, 1
    %p258 = scmp.eq.s32.totalorder %s31, 1
    %p259 = scmp.ne.s32.totalorder %s254, %s256
    %p260 = scmp.eq.s32.totalorder %s31, 0
    %p261 = por %p259, %p260
    %p262 = scmp.ne.s32.totalorder %s254, %s256
    %p263 = scmp.eq.s32.totalorder %s36, 1
    %p264 = por %p262, %p263
    %p265 = scmp.ne.s32.totalorder %s256, %s257
    %p266 = scmp.eq.s32.totalorder %s36, 0
    %p267 = por %p265, %p266
    %p268 = scmp.ne.s32.totalorder %s256, %s257
    %p269 = scmp.eq.s32.totalorder %s37, 1
    %p270 = por %p268, %p269
    %p272 = scmp.ne.s32.totalorder %s257, %s271
    %p273 = scmp.eq.s32.totalorder %s37, 0
    %p274 = por %p272, %p273
    %s276 = sadd.s32 %s275, 1
    %p279 = scmp.eq.s32.totalorder %s31, 1
    %p280 = scmp.ne.s32.totalorder %s275, %s277
    %p281 = scmp.eq.s32.totalorder %s31, 0
    %p282 = por %p280, %p281
    %p283 = scmp.ne.s32.totalorder %s275, %s277
    %p284 = scmp.eq.s32.totalorder %s36, 1
    %p285 = por %p283, %p284
    %p286 = scmp.ne.s32.totalorder %s277, %s278
    %p287 = scmp.eq.s32.totalorder %s36, 0
    %p288 = por %p286, %p287
    %p289 = scmp.ne.s32.totalorder %s277, %s278
    %p290 = scmp.eq.s32.totalorder %s37, 1
    %p291 = por %p289, %p290
    %p293 = scmp.ne.s32.totalorder %s278, %s292
    %p294 = scmp.eq.s32.totalorder %s37, 0
    %p295 = por %p293, %p294
    %s297 = sadd.s32 %s296, 1
    %p300 = scmp.eq.s32.totalorder %s31, 1
    %p301 = scmp.ne.s32.totalorder %s296, %s298
    %p302 = scmp.eq.s32.totalorder %s31, 0
    %p303 = por %p301, %p302
    %p304 = scmp.ne.s32.totalorder %s296, %s298
    %p305 = scmp.eq.s32.totalorder %s36, 1
    %p306 = por %p304, %p305
    %p307 = scmp.ne.s32.totalorder %s298, %s299
    %p308 = scmp.eq.s32.totalorder %s36, 0
    %p309 = por %p307, %p308
    %p310 = scmp.ne.s32.totalorder %s298, %s299
    %p311 = scmp.eq.s32.totalorder %s37, 1
    %p312 = por %p310, %p311
    %p314 = scmp.ne.s32.totalorder %s299, %s313
    %p315 = scmp.eq.s32.totalorder %s37, 0
    %p316 = por %p314, %p315
    %s318 = sadd.s32 %s317, 1
    %p321 = scmp.eq.s32.totalorder %s31, 1
    %p322 = scmp.ne.s32.totalorder %s317, %s319
    %p323 = scmp.eq.s32.totalorder %s31, 0
    %p324 = por %p322, %p323
    %p325 = scmp.ne.s32.totalorder %s317, %s319
    %p326 = scmp.eq.s32.totalorder %s36, 1
    %p327 = por %p325, %p326
    %p328 = scmp.ne.s32.totalorder %s319, %s320
    %p329 = scmp.eq.s32.totalorder %s36, 0
    %p330 = por %p328, %p329
    %p331 = scmp.ne.s32.totalorder %s319, %s320
    %p332 = scmp.eq.s32.totalorder %s37, 1
    %p333 = por %p331, %p332
    %p335 = scmp.ne.s32.totalorder %s320, %s334
    %p336 = scmp.eq.s32.totalorder %s37, 0
    %p337 = por %p335, %p336
    %s339 = sadd.s32 %s338, 1
    %p342 = scmp.eq.s32.totalorder %s31, 1
    %p343 = scmp.ne.s32.totalorder %s338, %s340
    %p344 = scmp.eq.s32.totalorder %s31, 0
    %p345 = por %p343, %p344
    %p346 = scmp.ne.s32.totalorder %s338, %s340
    %p347 = scmp.eq.s32.totalorder %s36, 1
    %p348 = por %p346, %p347
    %p349 = scmp.ne.s32.totalorder %s340, %s341
    %p350 = scmp.eq.s32.totalorder %s36, 0
    %p351 = por %p349, %p350
    %p352 = scmp.ne.s32.totalorder %s340, %s341
    %p353 = scmp.eq.s32.totalorder %s37, 1
    %p354 = por %p352, %p353
    %p356 = scmp.ne.s32.totalorder %s341, %s355
    %p357 = scmp.eq.s32.totalorder %s37, 0
    %p358 = por %p356, %p357
    %s360 = sadd.s32 %s359, 1
    %p363 = scmp.eq.s32.totalorder %s31, 1
    %p364 = scmp.ne.s32.totalorder %s359, %s361
    %p365 = scmp.eq.s32.totalorder %s31, 0
    %p366 = por %p364, %p365
    %p367 = scmp.ne.s32.totalorder %s359, %s361
    %p368 = scmp.eq.s32.totalorder %s36, 1
    %p369 = por %p367, %p368
    %p370 = scmp.ne.s32.totalorder %s361, %s362
    %p371 = scmp.eq.s32.totalorder %s36, 0
    %p372 = por %p370, %p371
    %p373 = scmp.ne.s32.totalorder %s361, %s362
    %p374 = scmp.eq.s32.totalorder %s37, 1
    %p375 = por %p373, %p374
    %p377 = scmp.ne.s32.totalorder %s362, %s376
    %p378 = scmp.eq.s32.totalorder %s37, 0
    %p379 = por %p377, %p378
    %s381 = sadd.s32 %s380, 1
    %p384 = scmp.eq.s32.totalorder %s31, 1
    %p385 = scmp.ne.s32.totalorder %s380, %s382
    %p386 = scmp.eq.s32.totalorder %s31, 0
    %p387 = por %p385, %p386
    %p388 = scmp.ne.s32.totalorder %s380, %s382
    %p389 = scmp.eq.s32.totalorder %s36, 1
    %p390 = por %p388, %p389
    %p391 = scmp.ne.s32.totalorder %s382, %s383
    %p392 = scmp.eq.s32.totalorder %s36, 0
    %p393 = por %p391, %p392
    %p394 = scmp.ne.s32.totalorder %s382, %s383
    %p395 = scmp.eq.s32.totalorder %s37, 1
    %p396 = por %p394, %p395
    %p398 = scmp.ne.s32.totalorder %s383, %s397
    %p399 = scmp.eq.s32.totalorder %s37, 0
    %p400 = por %p398, %p399
    %s402 = sadd.s32 %s401, 1
    %p405 = scmp.eq.s32.totalorder %s31, 1
    %p406 = scmp.ne.s32.totalorder %s401, %s403
    %p407 = scmp.eq.s32.totalorder %s31, 0
    %p408 = por %p406, %p407
    %p409 = scmp.ne.s32.totalorder %s401, %s403
    %p410 = scmp.eq.s32.totalorder %s36, 1
    %p411 = por %p409, %p410
    %p412 = scmp.ne.s32.totalorder %s403, %s404
    %p413 = scmp.eq.s32.totalorder %s36, 0
    %p414 = por %p412, %p413
    %p415 = scmp.ne.s32.totalorder %s403, %s404
    %p416 = scmp.eq.s32.totalorder %s37, 1
    %p417 = por %p415, %p416
    %p419 = scmp.ne.s32.totalorder %s404, %s418
    %p420 = scmp.eq.s32.totalorder %s37, 0
    %p421 = por %p419, %p420
    %s422 = ssub.s32 %s31, %s38
    %p423 = scmp.eq.s32.totalorder %s422, 0
    %s425 = sadd.s32 %s424, 1
    %s426 = scalar_select %p423, %s424, %s425
    %p429 = pneg %p423
    %p430 = scmp.eq.s32.totalorder %s31, 1
    %p431 = por %p429, %p430
    %p432 = scmp.ne.s32.totalorder %s424, %s427
    %p433 = scmp.eq.s32.totalorder %s31, 0
    %p434 = por %p432, %p433
    %p435 = scmp.ne.s32.totalorder %s424, %s427
    %p436 = scmp.eq.s32.totalorder %s36, 1
    %p437 = por %p435, %p436
    %p438 = scmp.ne.s32.totalorder %s427, %s428
    %p439 = scmp.eq.s32.totalorder %s36, 0
    %p440 = por %p438, %p439
    %p441 = scmp.ne.s32.totalorder %s427, %s428
    %p442 = scmp.eq.s32.totalorder %s37, 1
    %p443 = por %p441, %p442
    %p445 = scmp.ne.s32.totalorder %s428, %s444
    %p446 = scmp.eq.s32.totalorder %s37, 0
    %p447 = por %p445, %p446
    %p448 = scmp.le.s32.totalorder 1, %s31
    %p449 = scmp.lt.s32.totalorder %s31, 3
    %p450 = pnand %p448, %p449
    %p451 = pneg %p450
    // Predicated region
    $region9: #{attn_encoder_xl.1} parent=5 // pred_check
      _
    $region10: #{attn_encoder_xl.1} parent=5 // pred_check_branch
      %453 = sbr.rel (%p450) target = $region12
    $region11: #{attn_encoder_xl.1} parent=5 // pred_region
      %s454 = ssub.s32 %s31, 1
      // Predicated region
      $region13: #{attn_encoder_xl.1} parent=11 // pred_check
        %p455 = pneg %p78
      $region14: #{attn_encoder_xl.1} parent=11 // pred_check_branch
        %457 = sbr.rel (%p455) target = $region16
      $region15: #{attn_encoder_xl.1} parent=11 // pred_region
        _
      $region16: #{attn_encoder_xl.1} parent=11 // pred_fallthru
        _
      // Predicated region
      $region17: #{attn_encoder_xl.1} parent=11 // pred_check
        %p458 = pneg %p99
      $region18: #{attn_encoder_xl.1} parent=11 // pred_check_branch
        %460 = sbr.rel (%p458) target = $region20
      $region19: #{attn_encoder_xl.1} parent=11 // pred_region
        _
      $region20: #{attn_encoder_xl.1} parent=11 // pred_fallthru
        _
      // Predicated region
      $region21: #{attn_encoder_xl.1} parent=11 // pred_check
        %p461 = pneg %p120
      $region22: #{attn_encoder_xl.1} parent=11 // pred_check_branch
        %463 = sbr.rel (%p461) target = $region24
      $region23: #{attn_encoder_xl.1} parent=11 // pred_region
        _
      $region24: #{attn_encoder_xl.1} parent=11 // pred_fallthru
        _
      // Predicated region
      $region25: #{attn_encoder_xl.1} parent=11 // pred_check
        %p464 = pneg %p141
      $region26: #{attn_encoder_xl.1} parent=11 // pred_check_branch
        %466 = sbr.rel (%p464) target = $region28
      $region27: #{attn_encoder_xl.1} parent=11 // pred_region
        _
      $region28: #{attn_encoder_xl.1} parent=11 // pred_fallthru
        _
      // Predicated region
      $region29: #{attn_encoder_xl.1} parent=11 // pred_check
        %p467 = pneg %p162
      $region30: #{attn_encoder_xl.1} parent=11 // pred_check_branch
        %469 = sbr.rel (%p467) target = $region32
      $region31: #{attn_encoder_xl.1} parent=11 // pred_region
        _
      $region32: #{attn_encoder_xl.1} parent=11 // pred_fallthru
        _
      // Predicated region
      $region33: #{attn_encoder_xl.1} parent=11 // pred_check
        %p470 = pneg %p183
      $region34: #{attn_encoder_xl.1} parent=11 // pred_check_branch
        %472 = sbr.rel (%p470) target = $region36
      $region35: #{attn_encoder_xl.1} parent=11 // pred_region
        _
      $region36: #{attn_encoder_xl.1} parent=11 // pred_fallthru
        _
      // Predicated region
      $region37: #{attn_encoder_xl.1} parent=11 // pred_check
        %p473 = pneg %p204
      $region38: #{attn_encoder_xl.1} parent=11 // pred_check_branch
        %475 = sbr.rel (%p473) target = $region40
      $region39: #{attn_encoder_xl.1} parent=11 // pred_region
        _
      $region40: #{attn_encoder_xl.1} parent=11 // pred_fallthru
        _
      // Predicated region
      $region41: #{attn_encoder_xl.1} parent=11 // pred_check
        %p476 = pneg %p225
      $region42: #{attn_encoder_xl.1} parent=11 // pred_check_branch
        %478 = sbr.rel (%p476) target = $region44
      $region43: #{attn_encoder_xl.1} parent=11 // pred_region
        _
      $region44: #{attn_encoder_xl.1} parent=11 // pred_fallthru
        _
      // Predicated region
      $region45: #{attn_encoder_xl.1} parent=11 // pred_check
        %p479 = pneg %p246
      $region46: #{attn_encoder_xl.1} parent=11 // pred_check_branch
        %481 = sbr.rel (%p479) target = $region48
      $region47: #{attn_encoder_xl.1} parent=11 // pred_region
        _
      $region48: #{attn_encoder_xl.1} parent=11 // pred_fallthru
        _
      // Predicated region
      $region49: #{attn_encoder_xl.1} parent=11 // pred_check
        %p482 = pneg %p267
      $region50: #{attn_encoder_xl.1} parent=11 // pred_check_branch
        %484 = sbr.rel (%p482) target = $region52
      $region51: #{attn_encoder_xl.1} parent=11 // pred_region
        _
      $region52: #{attn_encoder_xl.1} parent=11 // pred_fallthru
        _
      // Predicated region
      $region53: #{attn_encoder_xl.1} parent=11 // pred_check
        %p485 = pneg %p288
      $region54: #{attn_encoder_xl.1} parent=11 // pred_check_branch
        %487 = sbr.rel (%p485) target = $region56
      $region55: #{attn_encoder_xl.1} parent=11 // pred_region
        _
      $region56: #{attn_encoder_xl.1} parent=11 // pred_fallthru
        _
      // Predicated region
      $region57: #{attn_encoder_xl.1} parent=11 // pred_check
        %p488 = pneg %p309
      $region58: #{attn_encoder_xl.1} parent=11 // pred_check_branch
        %490 = sbr.rel (%p488) target = $region60
      $region59: #{attn_encoder_xl.1} parent=11 // pred_region
        _
      $region60: #{attn_encoder_xl.1} parent=11 // pred_fallthru
        _
      // Predicated region
      $region61: #{attn_encoder_xl.1} parent=11 // pred_check
        %p491 = pneg %p330
      $region62: #{attn_encoder_xl.1} parent=11 // pred_check_branch
        %493 = sbr.rel (%p491) target = $region64
      $region63: #{attn_encoder_xl.1} parent=11 // pred_region
        _
      $region64: #{attn_encoder_xl.1} parent=11 // pred_fallthru
        _
      // Predicated region
      $region65: #{attn_encoder_xl.1} parent=11 // pred_check
        %p494 = pneg %p351
      $region66: #{attn_encoder_xl.1} parent=11 // pred_check_branch
        %496 = sbr.rel (%p494) target = $region68
      $region67: #{attn_encoder_xl.1} parent=11 // pred_region
        _
      $region68: #{attn_encoder_xl.1} parent=11 // pred_fallthru
        _
      // Predicated region
      $region69: #{attn_encoder_xl.1} parent=11 // pred_check
        %p497 = pneg %p372
      $region70: #{attn_encoder_xl.1} parent=11 // pred_check_branch
        %499 = sbr.rel (%p497) target = $region72
      $region71: #{attn_encoder_xl.1} parent=11 // pred_region
        _
      $region72: #{attn_encoder_xl.1} parent=11 // pred_fallthru
        _
      // Predicated region
      $region73: #{attn_encoder_xl.1} parent=11 // pred_check
        %p500 = pneg %p393
      $region74: #{attn_encoder_xl.1} parent=11 // pred_check_branch
        %502 = sbr.rel (%p500) target = $region76
      $region75: #{attn_encoder_xl.1} parent=11 // pred_region
        _
      $region76: #{attn_encoder_xl.1} parent=11 // pred_fallthru
        _
      // Predicated region
      $region77: #{attn_encoder_xl.1} parent=11 // pred_check
        %p503 = pneg %p414
      $region78: #{attn_encoder_xl.1} parent=11 // pred_check_branch
        %505 = sbr.rel (%p503) target = $region80
      $region79: #{attn_encoder_xl.1} parent=11 // pred_region
        _
      $region80: #{attn_encoder_xl.1} parent=11 // pred_fallthru
        _
    $region12: #{attn_encoder_xl.1} parent=5 // pred_fallthru
      _
    %p506 = scmp.lt.s32.totalorder %s31, 2
    // Predicated region
    $region81: #{attn_encoder_xl.1} parent=5 // pred_check
      %p507 = pneg %p506
    $region82: #{attn_encoder_xl.1} parent=5 // pred_check_branch
      %509 = sbr.rel (%p507) target = $region84
    $region83: #{attn_encoder_xl.1} parent=5 // pred_region
      // Predicated region
      $region85: #{attn_encoder_xl.1} parent=83 // pred_check
        %p510 = pneg %p51
      $region86: #{attn_encoder_xl.1} parent=83 // pred_check_branch
        %512 = sbr.rel (%p510) target = $region88
      $region87: #{attn_encoder_xl.1} parent=83 // pred_region
        %p513 = scmp.lt.s32.totalorder %s31, 1
        %s514 = scalar_select %p513, %s31, 1
        %s515 = smul.addr %s514, 8
        %s516 = scalar_lea.vmem %s1, %s515
      $region88: #{attn_encoder_xl.1} parent=83 // pred_fallthru
        _
    $region84: #{attn_encoder_xl.1} parent=5 // pred_fallthru
      _
    %p517 = scmp.le.s32.totalorder 1, %s31
    %p518 = scmp.lt.s32.totalorder %s31, 3
    %p519 = pnand %p517, %p518
    %p520 = pneg %p519
    // Predicated region
    $region89: #{attn_encoder_xl.1} parent=5 // pred_check
      _
    $region90: #{attn_encoder_xl.1} parent=5 // pred_check_branch
      %522 = sbr.rel (%p519) target = $region92
    $region91: #{attn_encoder_xl.1} parent=5 // pred_region
      %s523 = ssub.s32 %s31, 1
      %p524 = scmp.lt.s32.totalorder %s36, 1
      %s525 = scalar_select %p524, %s36, 1
      %s526 = smul.addr %s525, 8
      %s527 = scalar_lea.vmem %s1, %s526
      %p528 = pneg %p57
      %p529 = pneg %p54
      %p530 = pneg %p78
      %p531 = pneg %p75
      %p532 = pneg %p99
      %p533 = pneg %p96
      %p534 = pneg %p120
      %p535 = pneg %p117
      %p536 = pneg %p141
      %p537 = pneg %p138
      %p538 = pneg %p162
      %p539 = pneg %p159
      %p540 = pneg %p183
      %p541 = pneg %p180
      %p542 = pneg %p204
      %p543 = pneg %p201
      %p544 = pneg %p225
      %p545 = pneg %p222
      %p546 = pneg %p246
      %p547 = pneg %p243
      %p548 = pneg %p267
      %p549 = pneg %p264
      %p550 = pneg %p288
      %p551 = pneg %p285
      %p552 = pneg %p309
      %p553 = pneg %p306
      %p554 = pneg %p330
      %p555 = pneg %p327
      %p556 = pneg %p351
      %p557 = pneg %p348
      %p558 = pneg %p372
      %p559 = pneg %p369
      %p560 = pneg %p393
      %p561 = pneg %p390
      %p562 = pneg %p414
      %p563 = pneg %p411
      %p564 = pneg %p440
      %p565 = pneg %p437
      %p566 = scmp.lt.s32.totalorder %s36, 1
      %s567 = scalar_select %p566, %s36, 1
      %s568 = smul.addr %s567, 8
      %s569 = scalar_lea.vmem %s19, %s568
      %p570 = scmp.lt.s32.totalorder %s36, 1
      %s571 = scalar_select %p570, %s36, 1
      %s572 = smul.addr %s571, 8
      %s573 = scalar_lea.vmem %s1, %s572
      %p574 = scmp.lt.s32.totalorder %s36, 1
      %s575 = scalar_select %p574, %s36, 1
      %s576 = smul.addr %s575, 8
      %s577 = scalar_lea.vmem %s19, %s576
      %v579 = vld [vmem:[%s573] sm:$0xff]
      %v580 = vmul.f32 %v579, 5.656854
      %s581 = sld [smem:[#allocation4 + %s36]]
      %v582 = vlaneseq
      %v583 = vand.u32 %v582, 127
      %v584 = vstv %s581
      %vm585 = vcmp.lt.s32.totalorder %v583, %v584
      %v586 = vsel %vm585, 0.0, -1e+18
      %v587 = vld [vmem:[%s2] sm:$0xff]
      %v588 = vld [vmem:[%s3] sm:$0xff]
      %v589 = vld [vmem:[%s4] sm:$0xf]
      %v590 = vld [vmem:[%s4 + $0x4] sm:$0xf]
      %v591 = vld [vmem:[%s4 + $0x8] sm:$0xf]
      %v592 = vld [vmem:[%s4 + $0xc] sm:$0xf]
      %v593 = vld [vmem:[%s4 + $0x10] sm:$0xf]
      %v594 = vld [vmem:[%s4 + $0x14] sm:$0xf]
      %v595 = vld [vmem:[%s4 + $0x18] sm:$0xf]
      %v596 = vld [vmem:[%s4 + $0x1c] sm:$0xf]
      %v597 = vld [vmem:[%s5] sm:$0x1]
      %v598 = vld [vmem:[%s6] sm:$0x1]
      %vm599 = vcmask 261120
      %v600 = vsel %vm599, %v580, 0.0
      %601 = vadd.xlane.f32.xlu0 %v600
      %v602 = vpop.xlane.xlu0 %601
      %v603 = vrcp.pop 32.0
      %v604 = vmul.f32 %v602, %v603
      %v605 = vsub.f32 %v580, %v604
      %v606 = vmul.f32 %v605, %v605
      %v607 = vsel %vm599, %v606, 0.0
      %608 = vadd.xlane.f32.xlu0 %v607
      %v609 = vpop.xlane.xlu0 %608
      %v610 = vmul.f32 %v609, %v603
      %v611 = vadd.f32 %v610, 1e-06
      %v612 = vrsqrt.pop %v611
      %v613 = vmul.f32 %v605, %v612
      %v615 = vlaneseq
      %v616 = vshrl.u32 %v615, 7
      %v617 = vsub.s32 0, %v616
      %v618 = vrot.slane %v597, %v617
      %v620 = vmul.f32 %v613, %v618
      %v622 = vlaneseq
      %v623 = vshrl.u32 %v622, 7
      %v624 = vsub.s32 0, %v623
      %v625 = vrot.slane %v598, %v624
      %v627 = vadd.f32 %v620, %v625
      %v628 = vpack.c.bf16 %v627, %v627
      %v629 = vld [vmem:[%s7] sm:$0xf]
      %v630 = vld [vmem:[%s7 + $0x4] sm:$0xf]
      %v631 = vld [vmem:[%s7 + $0x8] sm:$0xf]
      %v632 = vld [vmem:[%s7 + $0xc] sm:$0xf]
      %v633 = vld [vmem:[%s8] sm:$0x1]
      %v635 = vlaneseq
      %v636 = vshrl.u32 %v635, 7
      %v637 = vsub.s32 0, %v636
      %v638 = vrot.slane %v633, %v637
      %v644 = vunpack.c.l.b16 %v629
      %v645 = vunpack.c.l.b16 %v630
      %v646 = vunpack.c.l.b16 %v631
      %v647 = vunpack.c.l.b16 %v632
      %v648 = vpack.c.b16 %v645, %v644
      %v649 = vpack.c.b16 %v647, %v646
      %v653 = vsel %vm599, %v628, 0
      %655 = vmatprep.subr.bf16.mxu0 0
      %656 = vmatpush1.bf16.msra.mxu0 0
      %657 = vmatprep.subr.bf16.mxu0 0
      %658 = vmatpush1.bf16.msra.mxu0 0
      %659 = vmatprep.subr.bf16.mxu0 0
      %660 = vmatpush1.bf16.msra.mxu0 0
      %661 = vmatprep.subr.bf16.mxu0 0
      %662 = vmatpush1.bf16.msra.mxu0 0
      %663 = vmatprep.subr.bf16.mxu0 0
      %664 = vmatpush1.bf16.msra.mxu0 0
      %665 = vmatprep.subr.bf16.mxu0 0
      %666 = vmatpush1.bf16.msra.mxu0 0
      %667 = vmatprep.subr.bf16.mxu0 0
      %668 = vmatpush1.bf16.msra.mxu0 %v649
      %669 = vmatprep.subr.bf16.mxu0 0
      %670 = vmatpush1.bf16.msra.mxu0 %v648
      %671 = vmatprep.subr.bf16.mxu0 0
      %672 = vmatpush2.bf16.msra.mxu0 0
      %673 = vmatprep.subr.bf16.mxu0 0
      %674 = vmatpush2.bf16.msra.mxu0 0
      %675 = vmatprep.subr.bf16.mxu0 0
      %676 = vmatpush2.bf16.msra.mxu0 0
      %677 = vmatprep.subr.bf16.mxu0 0
      %678 = vmatpush2.bf16.msra.mxu0 0
      %679 = vmatprep.subr.bf16.mxu0 0
      %680 = vmatpush2.bf16.msra.mxu0 0
      %681 = vmatprep.subr.bf16.mxu0 0
      %682 = vmatpush2.bf16.msra.mxu0 0
      %683 = vmatprep.subr.bf16.mxu0 0
      %684 = vmatpush2.bf16.msra.mxu0 0
      %685 = vmatprep.subr.bf16.mxu0 0
      %686 = vmatpush2.bf16.msra.mxu0 0
      %687 = vmatprep.mubr.bf16.mxu0 0
      %688 = vmatmul.mubr.bf16.gmra.mxu0 %v653
      %v689 = vpop.f32.mrf.mxu0
      %v690 = vadd.f32 %v638, %v689
      %v691 = vpop.f32.mrf.mxu0
      %v692 = vpop.f32.mrf.mxu0
      %v693 = vpop.f32.mrf.mxu0
      %694 = vdwg.mxu0
      %v695 = vpack.c.bf16 %v690, %v690
      %v704 = vunpack.c.l.b16 %v589
      %v705 = vunpack.c.l.b16 %v590
      %v706 = vunpack.c.l.b16 %v591
      %v707 = vunpack.c.l.b16 %v592
      %v708 = vunpack.c.l.b16 %v593
      %v709 = vunpack.c.l.b16 %v594
      %v710 = vunpack.c.l.b16 %v595
      %v711 = vunpack.c.l.b16 %v596
      %v712 = vpack.c.b16 %v705, %v704
      %v713 = vpack.c.b16 %v707, %v706
      %v714 = vpack.c.b16 %v709, %v708
      %v715 = vpack.c.b16 %v711, %v710
      %vm720 = vcmask 523264
      %v722 = vsel %vm720, %v695, 0
      %724 = vmatprep.subr.bf16.mxu0 0
      %725 = vmatpush1.bf16.msra.mxu0 0
      %726 = vmatprep.subr.bf16.mxu0 0
      %727 = vmatpush1.bf16.msra.mxu0 0
      %728 = vmatprep.subr.bf16.mxu0 0
      %729 = vmatpush1.bf16.msra.mxu0 0
      %730 = vmatprep.subr.bf16.mxu0 0
      %731 = vmatpush1.bf16.msra.mxu0 0
      %732 = vmatprep.subr.bf16.mxu0 0
      %733 = vmatpush1.bf16.msra.mxu0 %v715
      %734 = vmatprep.subr.bf16.mxu0 0
      %735 = vmatpush1.bf16.msra.mxu0 %v714
      %736 = vmatprep.subr.bf16.mxu0 0
      %737 = vmatpush1.bf16.msra.mxu0 %v713
      %738 = vmatprep.subr.bf16.mxu0 0
      %739 = vmatpush1.bf16.msra.mxu0 %v712
      %740 = vmatprep.subr.bf16.mxu0 0
      %741 = vmatpush2.bf16.msra.mxu0 0
      %742 = vmatprep.subr.bf16.mxu0 0
      %743 = vmatpush2.bf16.msra.mxu0 0
      %744 = vmatprep.subr.bf16.mxu0 0
      %745 = vmatpush2.bf16.msra.mxu0 0
      %746 = vmatprep.subr.bf16.mxu0 0
      %747 = vmatpush2.bf16.msra.mxu0 0
      %748 = vmatprep.subr.bf16.mxu0 0
      %749 = vmatpush2.bf16.msra.mxu0 0
      %750 = vmatprep.subr.bf16.mxu0 0
      %751 = vmatpush2.bf16.msra.mxu0 0
      %752 = vmatprep.subr.bf16.mxu0 0
      %753 = vmatpush2.bf16.msra.mxu0 0
      %754 = vmatprep.subr.bf16.mxu0 0
      %755 = vmatpush2.bf16.msra.mxu0 0
      %756 = vmatprep.mubr.bf16.mxu0 0
      %757 = vmatmul.mubr.bf16.gmra.mxu0 %v722
      %v758 = vpop.f32.mrf.mxu0
      %v759 = vadd.f32 0.0, %v758
      %v760 = vpop.f32.mrf.mxu0
      %v761 = vpop.f32.mrf.mxu0
      %v762 = vpop.f32.mrf.mxu0
      %763 = vdwg.mxu0
      %v764 = vmul.f32 %v690, %v587
      %v765 = vmul.f32 %v759, %v588
      %v766 = vadd.f32 %v764, %v765
      %v767 = vmul.f32 %v766, 0.35355338
      %769 = vrot.lane.b32.xlu0 %v587, 32
      %v770 = vpop.permute.xlu0 %769
      %v772 = vmul.f32 %v690, %v770
      %774 = vrot.lane.b32.xlu0 %v588, 32
      %v775 = vpop.permute.xlu0 %774
      %v777 = vmul.f32 %v759, %v775
      %v778 = vadd.f32 %v772, %v777
      %v779 = vpack.c.bf16 %v767, %v767
      %v780 = vpack.c.bf16 %v778, %v778
      %782 = vrot.lane.b32.xlu0 %v780, 96
      %v783 = vpop.permute.xlu0 %782
      %vm784 = vcmask 64512
      %v786 = vsel %vm784, %v779, 0
      %v789 = vsel %vm784, %v783, 0
      %791 = vmatprep.subr.bf16.mxu0 0
      %792 = vmatpush1.bf16.xpose.msra.mxu0 0
      %793 = vmatprep.subr.bf16.mxu0 0
      %794 = vmatpush1.bf16.xpose.msra.mxu0 0
      %795 = vmatprep.subr.bf16.mxu0 0
      %796 = vmatpush1.bf16.xpose.msra.mxu0 0
      %797 = vmatprep.subr.bf16.mxu0 0
      %798 = vmatpush1.bf16.xpose.msra.mxu0 0
      %799 = vmatprep.subr.bf16.mxu0 0
      %800 = vmatpush1.bf16.xpose.msra.mxu0 0
      %801 = vmatprep.subr.bf16.mxu0 0
      %802 = vmatpush1.bf16.xpose.msra.mxu0 0
      %803 = vmatprep.subr.bf16.mxu0 0
      %804 = vmatpush1.bf16.xpose.msra.mxu0 0
      %805 = vmatprep.subr.bf16.mxu0 0
      %806 = vmatpush1.bf16.xpose.msra.mxu0 %v789
      %807 = vmatprep.subr.bf16.mxu0 0
      %808 = vmatpush2.bf16.xpose.msra.mxu0 0
      %809 = vmatprep.subr.bf16.mxu0 0
      %810 = vmatpush2.bf16.xpose.msra.mxu0 0
      %811 = vmatprep.subr.bf16.mxu0 0
      %812 = vmatpush2.bf16.xpose.msra.mxu0 0
      %813 = vmatprep.subr.bf16.mxu0 0
      %814 = vmatpush2.bf16.xpose.msra.mxu0 0
      %815 = vmatprep.subr.bf16.mxu0 0
      %816 = vmatpush2.bf16.xpose.msra.mxu0 0
      %817 = vmatprep.subr.bf16.mxu0 0
      %818 = vmatpush2.bf16.xpose.msra.mxu0 0
      %819 = vmatprep.subr.bf16.mxu0 0
      %820 = vmatpush2.bf16.xpose.msra.mxu0 0
      %821 = vmatprep.subr.bf16.mxu0 0
      %822 = vmatpush2.bf16.xpose.msra.mxu0 0
      %823 = vmatprep.mubr.bf16.mxu0 0
      %824 = vmatmul.mubr.bf16.gmra.mxu0 %v786
      %v825 = vpop.f32.mrf.mxu0
      %v826 = vadd.f32 %v586, %v825
      %v827 = vpop.f32.mrf.mxu0
      %v828 = vpop.f32.mrf.mxu0
      %v829 = vpop.f32.mrf.mxu0
      %830 = vdwg.mxu0
      %v831 = vsel %vm784, %v826, -inf
      %832 = vmax.xlane.f32.xlu0 %v831
      %v833 = vpop.xlane.xlu0 %832
      %v834 = vsub.f32 %v826, %v833
      %v835 = vmul.f32 %v834, 1.442695
      %v836 = vpow.pop %v835
      %v837 = vsel %vm784, %v836, 0.0
      %838 = vadd.xlane.f32.xlu0 %v837
      %v839 = vpop.xlane.xlu0 %838
      %v840 = vrcp.pop %v839
      %v841 = vmul.f32 %v836, %v840
      %v842 = vpack.c.bf16 %v841, %v841
      %844 = vrot.lane.b32.xlu0 %v695, 64
      %v845 = vpop.permute.xlu0 %844
      %v847 = vsel %vm784, %v842, 0
      %vm849 = vcmask 1043456
      %v851 = vsel %vm849, %v845, 0
      %853 = vmatprep.subr.bf16.mxu0 0
      %854 = vmatpush1.bf16.msra.mxu0 0
      %855 = vmatprep.subr.bf16.mxu0 0
      %856 = vmatpush1.bf16.msra.mxu0 0
      %857 = vmatprep.subr.bf16.mxu0 0
      %858 = vmatpush1.bf16.msra.mxu0 0
      %859 = vmatprep.subr.bf16.mxu0 0
      %860 = vmatpush1.bf16.msra.mxu0 0
      %861 = vmatprep.subr.bf16.mxu0 0
      %862 = vmatpush1.bf16.msra.mxu0 0
      %863 = vmatprep.subr.bf16.mxu0 0
      %864 = vmatpush1.bf16.msra.mxu0 0
      %865 = vmatprep.subr.bf16.mxu0 0
      %866 = vmatpush1.bf16.msra.mxu0 0
      %867 = vmatprep.subr.bf16.mxu0 0
      %868 = vmatpush1.bf16.msra.mxu0 %v851
      %869 = vmatprep.subr.bf16.mxu0 0
      %870 = vmatpush2.bf16.msra.mxu0 0
      %871 = vmatprep.subr.bf16.mxu0 0
      %872 = vmatpush2.bf16.msra.mxu0 0
      %873 = vmatprep.subr.bf16.mxu0 0
      %874 = vmatpush2.bf16.msra.mxu0 0
      %875 = vmatprep.subr.bf16.mxu0 0
      %876 = vmatpush2.bf16.msra.mxu0 0
      %877 = vmatprep.subr.bf16.mxu0 0
      %878 = vmatpush2.bf16.msra.mxu0 0
      %879 = vmatprep.subr.bf16.mxu0 0
      %880 = vmatpush2.bf16.msra.mxu0 0
      %881 = vmatprep.subr.bf16.mxu0 0
      %882 = vmatpush2.bf16.msra.mxu0 0
      %883 = vmatprep.subr.bf16.mxu0 0
      %884 = vmatpush2.bf16.msra.mxu0 0
      %885 = vmatprep.mubr.bf16.mxu0 0
      %886 = vmatmul.mubr.bf16.gmra.mxu0 %v847
      %v887 = vpop.f32.mrf.mxu0
      %v888 = vadd.f32 0.0, %v887
      %v889 = vpop.f32.mrf.mxu0
      %v890 = vpop.f32.mrf.mxu0
      %v891 = vpop.f32.mrf.mxu0
      %892 = vdwg.mxu0
      %893 = vst.msk [vmem:[#allocation2] sm:$0xff] %vm784, %v888
      %895 = vrot.lane.b32.xlu0 %v779, 120
      %v896 = vpop.permute.xlu0 %895
      %897 = vrot.lane.b32.xlu0 %v780, 88
      %v898 = vpop.permute.xlu0 %897
      %v900 = vsel %vm784, %v896, 0
      %v903 = vsel %vm784, %v898, 0
      %905 = vmatprep.subr.bf16.mxu0 0
      %906 = vmatpush1.bf16.xpose.msra.mxu0 0
      %907 = vmatprep.subr.bf16.mxu0 0
      %908 = vmatpush1.bf16.xpose.msra.mxu0 0
      %909 = vmatprep.subr.bf16.mxu0 0
      %910 = vmatpush1.bf16.xpose.msra.mxu0 0
      %911 = vmatprep.subr.bf16.mxu0 0
      %912 = vmatpush1.bf16.xpose.msra.mxu0 0
      %913 = vmatprep.subr.bf16.mxu0 0
      %914 = vmatpush1.bf16.xpose.msra.mxu0 0
      %915 = vmatprep.subr.bf16.mxu0 0
      %916 = vmatpush1.bf16.xpose.msra.mxu0 0
      %917 = vmatprep.subr.bf16.mxu0 0
      %918 = vmatpush1.bf16.xpose.msra.mxu0 0
      %919 = vmatprep.subr.bf16.mxu0 0
      %920 = vmatpush1.bf16.xpose.msra.mxu0 %v903
      %921 = vmatprep.subr.bf16.mxu0 0
      %922 = vmatpush2.bf16.xpose.msra.mxu0 0
      %923 = vmatprep.subr.bf16.mxu0 0
      %924 = vmatpush2.bf16.xpose.msra.mxu0 0
      %925 = vmatprep.subr.bf16.mxu0 0
      %926 = vmatpush2.bf16.xpose.msra.mxu0 0
      %927 = vmatprep.subr.bf16.mxu0 0
      %928 = vmatpush2.bf16.xpose.msra.mxu0 0
      %929 = vmatprep.subr.bf16.mxu0 0
      %930 = vmatpush2.bf16.xpose.msra.mxu0 0
      %931 = vmatprep.subr.bf16.mxu0 0
      %932 = vmatpush2.bf16.xpose.msra.mxu0 0
      %933 = vmatprep.subr.bf16.mxu0 0
      %934 = vmatpush2.bf16.xpose.msra.mxu0 0
      %935 = vmatprep.subr.bf16.mxu0 0
      %936 = vmatpush2.bf16.xpose.msra.mxu0 0
      %937 = vmatprep.mubr.bf16.mxu0 0
      %938 = vmatmul.mubr.bf16.gmra.mxu0 %v900
      %v939 = vpop.f32.mrf.mxu0
      %v940 = vadd.f32 %v586, %v939
      %v941 = vpop.f32.mrf.mxu0
      %v942 = vpop.f32.mrf.mxu0
      %v943 = vpop.f32.mrf.mxu0
      %944 = vdwg.mxu0
      %v945 = vsel %vm784, %v940, -inf
      %946 = vmax.xlane.f32.xlu0 %v945
      %v947 = vpop.xlane.xlu0 %946
      %v948 = vsub.f32 %v940, %v947
      %v949 = vmul.f32 %v948, 1.442695
      %v950 = vpow.pop %v949
      %v951 = vsel %vm784, %v950, 0.0
      %952 = vadd.xlane.f32.xlu0 %v951
      %v953 = vpop.xlane.xlu0 %952
      %v954 = vrcp.pop %v953
      %v955 = vmul.f32 %v950, %v954
      %v956 = vpack.c.bf16 %v955, %v955
      %957 = vrot.lane.b32.xlu0 %v695, 56
      %v958 = vpop.permute.xlu0 %957
      %v960 = vsel %vm784, %v956, 0
      %v963 = vsel %vm849, %v958, 0
      %965 = vmatprep.subr.bf16.mxu0 0
      %966 = vmatpush1.bf16.msra.mxu0 0
      %967 = vmatprep.subr.bf16.mxu0 0
      %968 = vmatpush1.bf16.msra.mxu0 0
      %969 = vmatprep.subr.bf16.mxu0 0
      %970 = vmatpush1.bf16.msra.mxu0 0
      %971 = vmatprep.subr.bf16.mxu0 0
      %972 = vmatpush1.bf16.msra.mxu0 0
      %973 = vmatprep.subr.bf16.mxu0 0
      %974 = vmatpush1.bf16.msra.mxu0 0
      %975 = vmatprep.subr.bf16.mxu0 0
      %976 = vmatpush1.bf16.msra.mxu0 0
      %977 = vmatprep.subr.bf16.mxu0 0
      %978 = vmatpush1.bf16.msra.mxu0 0
      %979 = vmatprep.subr.bf16.mxu0 0
      %980 = vmatpush1.bf16.msra.mxu0 %v963
      %981 = vmatprep.subr.bf16.mxu0 0
      %982 = vmatpush2.bf16.msra.mxu0 0
      %983 = vmatprep.subr.bf16.mxu0 0
      %984 = vmatpush2.bf16.msra.mxu0 0
      %985 = vmatprep.subr.bf16.mxu0 0
      %986 = vmatpush2.bf16.msra.mxu0 0
      %987 = vmatprep.subr.bf16.mxu0 0
      %988 = vmatpush2.bf16.msra.mxu0 0
      %989 = vmatprep.subr.bf16.mxu0 0
      %990 = vmatpush2.bf16.msra.mxu0 0
      %991 = vmatprep.subr.bf16.mxu0 0
      %992 = vmatpush2.bf16.msra.mxu0 0
      %993 = vmatprep.subr.bf16.mxu0 0
      %994 = vmatpush2.bf16.msra.mxu0 0
      %995 = vmatprep.subr.bf16.mxu0 0
      %996 = vmatpush2.bf16.msra.mxu0 0
      %997 = vmatprep.mubr.bf16.mxu0 0
      %998 = vmatmul.mubr.bf16.gmra.mxu0 %v960
      %v999 = vpop.f32.mrf.mxu0
      %v1000 = vadd.f32 0.0, %v999
      %v1001 = vpop.f32.mrf.mxu0
      %v1002 = vpop.f32.mrf.mxu0
      %v1003 = vpop.f32.mrf.mxu0
      %1004 = vdwg.mxu0
      %1006 = vrot.lane.b32.xlu0 %v1000, 8
      %v1007 = vpop.permute.xlu0 %1006
      %vm1009 = vcmask 130112
      %1010 = vst.msk [vmem:[#allocation2] sm:$0xff] %vm1009, %v1007
      %1011 = vrot.lane.b32.xlu0 %v779, 112
      %v1012 = vpop.permute.xlu0 %1011
      %1013 = vrot.lane.b32.xlu0 %v780, 80
      %v1014 = vpop.permute.xlu0 %1013
      %v1016 = vsel %vm784, %v1012, 0
      %v1019 = vsel %vm784, %v1014, 0
      %1021 = vmatprep.subr.bf16.mxu0 0
      %1022 = vmatpush1.bf16.xpose.msra.mxu0 0
      %1023 = vmatprep.subr.bf16.mxu0 0
      %1024 = vmatpush1.bf16.xpose.msra.mxu0 0
      %1025 = vmatprep.subr.bf16.mxu0 0
      %1026 = vmatpush1.bf16.xpose.msra.mxu0 0
      %1027 = vmatprep.subr.bf16.mxu0 0
      %1028 = vmatpush1.bf16.xpose.msra.mxu0 0
      %1029 = vmatprep.subr.bf16.mxu0 0
      %1030 = vmatpush1.bf16.xpose.msra.mxu0 0
      %1031 = vmatprep.subr.bf16.mxu0 0
      %1032 = vmatpush1.bf16.xpose.msra.mxu0 0
      %1033 = vmatprep.subr.bf16.mxu0 0
      %1034 = vmatpush1.bf16.xpose.msra.mxu0 0
      %1035 = vmatprep.subr.bf16.mxu0 0
      %1036 = vmatpush1.bf16.xpose.msra.mxu0 %v1019
      %1037 = vmatprep.subr.bf16.mxu0 0
      %1038 = vmatpush2.bf16.xpose.msra.mxu0 0
      %1039 = vmatprep.subr.bf16.mxu0 0
      %1040 = vmatpush2.bf16.xpose.msra.mxu0 0
      %1041 = vmatprep.subr.bf16.mxu0 0
      %1042 = vmatpush2.bf16.xpose.msra.mxu0 0
      %1043 = vmatprep.subr.bf16.mxu0 0
      %1044 = vmatpush2.bf16.xpose.msra.mxu0 0
      %1045 = vmatprep.subr.bf16.mxu0 0
      %1046 = vmatpush2.bf16.xpose.msra.mxu0 0
      %1047 = vmatprep.subr.bf16.mxu0 0
      %1048 = vmatpush2.bf16.xpose.msra.mxu0 0
      %1049 = vmatprep.subr.bf16.mxu0 0
      %1050 = vmatpush2.bf16.xpose.msra.mxu0 0
      %1051 = vmatprep.subr.bf16.mxu0 0
      %1052 = vmatpush2.bf16.xpose.msra.mxu0 0
      %1053 = vmatprep.mubr.bf16.mxu0 0
      %1054 = vmatmul.mubr.bf16.gmra.mxu0 %v1016
      %v1055 = vpop.f32.mrf.mxu0
      %v1056 = vadd.f32 %v586, %v1055
      %v1057 = vpop.f32.mrf.mxu0
      %v1058 = vpop.f32.mrf.mxu0
      %v1059 = vpop.f32.mrf.mxu0
      %1060 = vdwg.mxu0
      %v1061 = vsel %vm784, %v1056, -inf
      %1062 = vmax.xlane.f32.xlu0 %v1061
      %v1063 = vpop.xlane.xlu0 %1062
      %v1064 = vsub.f32 %v1056, %v1063
      %v1065 = vmul.f32 %v1064, 1.442695
      %v1066 = vpow.pop %v1065
      %v1067 = vsel %vm784, %v1066, 0.0
      %1068 = vadd.xlane.f32.xlu0 %v1067
      %v1069 = vpop.xlane.xlu0 %1068
      %v1070 = vrcp.pop %v1069
      %v1071 = vmul.f32 %v1066, %v1070
      %v1072 = vpack.c.bf16 %v1071, %v1071
      %1073 = vrot.lane.b32.xlu0 %v695, 48
      %v1074 = vpop.permute.xlu0 %1073
      %v1076 = vsel %vm784, %v1072, 0
      %v1079 = vsel %vm849, %v1074, 0
      %1081 = vmatprep.subr.bf16.mxu0 0
      %1082 = vmatpush1.bf16.msra.mxu0 0
      %1083 = vmatprep.subr.bf16.mxu0 0
      %1084 = vmatpush1.bf16.msra.mxu0 0
      %1085 = vmatprep.subr.bf16.mxu0 0
      %1086 = vmatpush1.bf16.msra.mxu0 0
      %1087 = vmatprep.subr.bf16.mxu0 0
      %1088 = vmatpush1.bf16.msra.mxu0 0
      %1089 = vmatprep.subr.bf16.mxu0 0
      %1090 = vmatpush1.bf16.msra.mxu0 0
      %1091 = vmatprep.subr.bf16.mxu0 0
      %1092 = vmatpush1.bf16.msra.mxu0 0
      %1093 = vmatprep.subr.bf16.mxu0 0
      %1094 = vmatpush1.bf16.msra.mxu0 0
      %1095 = vmatprep.subr.bf16.mxu0 0
      %1096 = vmatpush1.bf16.msra.mxu0 %v1079
      %1097 = vmatprep.subr.bf16.mxu0 0
      %1098 = vmatpush2.bf16.msra.mxu0 0
      %1099 = vmatprep.subr.bf16.mxu0 0
      %1100 = vmatpush2.bf16.msra.mxu0 0
      %1101 = vmatprep.subr.bf16.mxu0 0
      %1102 = vmatpush2.bf16.msra.mxu0 0
      %1103 = vmatprep.subr.bf16.mxu0 0
      %1104 = vmatpush2.bf16.msra.mxu0 0
      %1105 = vmatprep.subr.bf16.mxu0 0
      %1106 = vmatpush2.bf16.msra.mxu0 0
      %1107 = vmatprep.subr.bf16.mxu0 0
      %1108 = vmatpush2.bf16.msra.mxu0 0
      %1109 = vmatprep.subr.bf16.mxu0 0
      %1110 = vmatpush2.bf16.msra.mxu0 0
      %1111 = vmatprep.subr.bf16.mxu0 0
      %1112 = vmatpush2.bf16.msra.mxu0 0
      %1113 = vmatprep.mubr.bf16.mxu0 0
      %1114 = vmatmul.mubr.bf16.gmra.mxu0 %v1076
      %v1115 = vpop.f32.mrf.mxu0
      %v1116 = vadd.f32 0.0, %v1115
      %v1117 = vpop.f32.mrf.mxu0
      %v1118 = vpop.f32.mrf.mxu0
      %v1119 = vpop.f32.mrf.mxu0
      %1120 = vdwg.mxu0
      %1122 = vrot.lane.b32.xlu0 %v1116, 16
      %v1123 = vpop.permute.xlu0 %1122
      %vm1125 = vcmask 195712
      %1126 = vst.msk [vmem:[#allocation2] sm:$0xff] %vm1125, %v1123
      %1127 = vrot.lane.b32.xlu0 %v779, 104
      %v1128 = vpop.permute.xlu0 %1127
      %1129 = vrot.lane.b32.xlu0 %v780, 72
      %v1130 = vpop.permute.xlu0 %1129
      %v1132 = vsel %vm784, %v1128, 0
      %v1135 = vsel %vm784, %v1130, 0
      %1137 = vmatprep.subr.bf16.mxu0 0
      %1138 = vmatpush1.bf16.xpose.msra.mxu0 0
      %1139 = vmatprep.subr.bf16.mxu0 0
      %1140 = vmatpush1.bf16.xpose.msra.mxu0 0
      %1141 = vmatprep.subr.bf16.mxu0 0
      %1142 = vmatpush1.bf16.xpose.msra.mxu0 0
      %1143 = vmatprep.subr.bf16.mxu0 0
      %1144 = vmatpush1.bf16.xpose.msra.mxu0 0
      %1145 = vmatprep.subr.bf16.mxu0 0
      %1146 = vmatpush1.bf16.xpose.msra.mxu0 0
      %1147 = vmatprep.subr.bf16.mxu0 0
      %1148 = vmatpush1.bf16.xpose.msra.mxu0 0
      %1149 = vmatprep.subr.bf16.mxu0 0
      %1150 = vmatpush1.bf16.xpose.msra.mxu0 0
      %1151 = vmatprep.subr.bf16.mxu0 0
      %1152 = vmatpush1.bf16.xpose.msra.mxu0 %v1135
      %1153 = vmatprep.subr.bf16.mxu0 0
      %1154 = vmatpush2.bf16.xpose.msra.mxu0 0
      %1155 = vmatprep.subr.bf16.mxu0 0
      %1156 = vmatpush2.bf16.xpose.msra.mxu0 0
      %1157 = vmatprep.subr.bf16.mxu0 0
      %1158 = vmatpush2.bf16.xpose.msra.mxu0 0
      %1159 = vmatprep.subr.bf16.mxu0 0
      %1160 = vmatpush2.bf16.xpose.msra.mxu0 0
      %1161 = vmatprep.subr.bf16.mxu0 0
      %1162 = vmatpush2.bf16.xpose.msra.mxu0 0
      %1163 = vmatprep.subr.bf16.mxu0 0
      %1164 = vmatpush2.bf16.xpose.msra.mxu0 0
      %1165 = vmatprep.subr.bf16.mxu0 0
      %1166 = vmatpush2.bf16.xpose.msra.mxu0 0
      %1167 = vmatprep.subr.bf16.mxu0 0
      %1168 = vmatpush2.bf16.xpose.msra.mxu0 0
      %1169 = vmatprep.mubr.bf16.mxu0 0
      %1170 = vmatmul.mubr.bf16.gmra.mxu0 %v1132
      %v1171 = vpop.f32.mrf.mxu0
      %v1172 = vadd.f32 %v586, %v1171
      %v1173 = vpop.f32.mrf.mxu0
      %v1174 = vpop.f32.mrf.mxu0
      %v1175 = vpop.f32.mrf.mxu0
      %1176 = vdwg.mxu0
      %v1177 = vsel %vm784, %v1172, -inf
      %1178 = vmax.xlane.f32.xlu0 %v1177
      %v1179 = vpop.xlane.xlu0 %1178
      %v1180 = vsub.f32 %v1172, %v1179
      %v1181 = vmul.f32 %v1180, 1.442695
      %v1182 = vpow.pop %v1181
      %v1183 = vsel %vm784, %v1182, 0.0
      %1184 = vadd.xlane.f32.xlu0 %v1183
      %v1185 = vpop.xlane.xlu0 %1184
      %v1186 = vrcp.pop %v1185
      %v1187 = vmul.f32 %v1182, %v1186
      %v1188 = vpack.c.bf16 %v1187, %v1187
      %1189 = vrot.lane.b32.xlu0 %v695, 40
      %v1190 = vpop.permute.xlu0 %1189
      %v1192 = vsel %vm784, %v1188, 0
      %v1195 = vsel %vm849, %v1190, 0
      %1197 = vmatprep.subr.bf16.mxu0 0
      %1198 = vmatpush1.bf16.msra.mxu0 0
      %1199 = vmatprep.subr.bf16.mxu0 0
      %1200 = vmatpush1.bf16.msra.mxu0 0
      %1201 = vmatprep.subr.bf16.mxu0 0
      %1202 = vmatpush1.bf16.msra.mxu0 0
      %1203 = vmatprep.subr.bf16.mxu0 0
      %1204 = vmatpush1.bf16.msra.mxu0 0
      %1205 = vmatprep.subr.bf16.mxu0 0
      %1206 = vmatpush1.bf16.msra.mxu0 0
      %1207 = vmatprep.subr.bf16.mxu0 0
      %1208 = vmatpush1.bf16.msra.mxu0 0
      %1209 = vmatprep.subr.bf16.mxu0 0
      %1210 = vmatpush1.bf16.msra.mxu0 0
      %1211 = vmatprep.subr.bf16.mxu0 0
      %1212 = vmatpush1.bf16.msra.mxu0 %v1195
      %1213 = vmatprep.subr.bf16.mxu0 0
      %1214 = vmatpush2.bf16.msra.mxu0 0
      %1215 = vmatprep.subr.bf16.mxu0 0
      %1216 = vmatpush2.bf16.msra.mxu0 0
      %1217 = vmatprep.subr.bf16.mxu0 0
      %1218 = vmatpush2.bf16.msra.mxu0 0
      %1219 = vmatprep.subr.bf16.mxu0 0
      %1220 = vmatpush2.bf16.msra.mxu0 0
      %1221 = vmatprep.subr.bf16.mxu0 0
      %1222 = vmatpush2.bf16.msra.mxu0 0
      %1223 = vmatprep.subr.bf16.mxu0 0
      %1224 = vmatpush2.bf16.msra.mxu0 0
      %1225 = vmatprep.subr.bf16.mxu0 0
      %1226 = vmatpush2.bf16.msra.mxu0 0
      %1227 = vmatprep.subr.bf16.mxu0 0
      %1228 = vmatpush2.bf16.msra.mxu0 0
      %1229 = vmatprep.mubr.bf16.mxu0 0
      %1230 = vmatmul.mubr.bf16.gmra.mxu0 %v1192
      %v1231 = vpop.f32.mrf.mxu0
      %v1232 = vadd.f32 0.0, %v1231
      %v1233 = vpop.f32.mrf.mxu0
      %v1234 = vpop.f32.mrf.mxu0
      %v1235 = vpop.f32.mrf.mxu0
      %1236 = vdwg.mxu0
      %1238 = vrot.lane.b32.xlu0 %v1232, 24
      %v1239 = vpop.permute.xlu0 %1238
      %vm1241 = vcmask 261312
      %1242 = vst.msk [vmem:[#allocation2] sm:$0xff] %vm1241, %v1239
      %v1243 = vld [vmem:[#allocation2] sm:$0xff]
      %v1244 = vpack.c.bf16 %v1243, %v1243
      %v1245 = vld [vmem:[%s9] sm:$0xf]
      %v1246 = vld [vmem:[%s9 + $0x4] sm:$0xf]
      %v1247 = vld [vmem:[%s9 + $0x8] sm:$0xf]
      %v1248 = vld [vmem:[%s9 + $0xc] sm:$0xf]
      %v1249 = vld [vmem:[%s10] sm:$0x1]
      %v1251 = vlaneseq
      %v1252 = vshrl.u32 %v1251, 7
      %v1253 = vsub.s32 0, %v1252
      %v1254 = vrot.slane %v1249, %v1253
      %v1260 = vunpack.c.l.b16 %v1245
      %v1261 = vunpack.c.l.b16 %v1246
      %v1262 = vunpack.c.l.b16 %v1247
      %v1263 = vunpack.c.l.b16 %v1248
      %v1264 = vpack.c.b16 %v1261, %v1260
      %v1265 = vpack.c.b16 %v1263, %v1262
      %v1269 = vsel %vm599, %v1244, 0
      %1271 = vmatprep.subr.bf16.mxu0 0
      %1272 = vmatpush1.bf16.msra.mxu0 0
      %1273 = vmatprep.subr.bf16.mxu0 0
      %1274 = vmatpush1.bf16.msra.mxu0 0
      %1275 = vmatprep.subr.bf16.mxu0 0
      %1276 = vmatpush1.bf16.msra.mxu0 0
      %1277 = vmatprep.subr.bf16.mxu0 0
      %1278 = vmatpush1.bf16.msra.mxu0 0
      %1279 = vmatprep.subr.bf16.mxu0 0
      %1280 = vmatpush1.bf16.msra.mxu0 0
      %1281 = vmatprep.subr.bf16.mxu0 0
      %1282 = vmatpush1.bf16.msra.mxu0 0
      %1283 = vmatprep.subr.bf16.mxu0 0
      %1284 = vmatpush1.bf16.msra.mxu0 %v1265
      %1285 = vmatprep.subr.bf16.mxu0 0
      %1286 = vmatpush1.bf16.msra.mxu0 %v1264
      %1287 = vmatprep.subr.bf16.mxu0 0
      %1288 = vmatpush2.bf16.msra.mxu0 0
      %1289 = vmatprep.subr.bf16.mxu0 0
      %1290 = vmatpush2.bf16.msra.mxu0 0
      %1291 = vmatprep.subr.bf16.mxu0 0
      %1292 = vmatpush2.bf16.msra.mxu0 0
      %1293 = vmatprep.subr.bf16.mxu0 0
      %1294 = vmatpush2.bf16.msra.mxu0 0
      %1295 = vmatprep.subr.bf16.mxu0 0
      %1296 = vmatpush2.bf16.msra.mxu0 0
      %1297 = vmatprep.subr.bf16.mxu0 0
      %1298 = vmatpush2.bf16.msra.mxu0 0
      %1299 = vmatprep.subr.bf16.mxu0 0
      %1300 = vmatpush2.bf16.msra.mxu0 0
      %1301 = vmatprep.subr.bf16.mxu0 0
      %1302 = vmatpush2.bf16.msra.mxu0 0
      %1303 = vmatprep.mubr.bf16.mxu0 0
      %1304 = vmatmul.mubr.bf16.gmra.mxu0 %v1269
      %v1305 = vpop.f32.mrf.mxu0
      %v1306 = vadd.f32 %v1254, %v1305
      %v1307 = vpop.f32.mrf.mxu0
      %v1308 = vpop.f32.mrf.mxu0
      %v1309 = vpop.f32.mrf.mxu0
      %1310 = vdwg.mxu0
      %v1311 = vadd.f32 %v1306, %v580
      %v1312 = vld [vmem:[%s11] sm:$0x1]
      %v1313 = vld [vmem:[%s12] sm:$0x1]
      %v1314 = vsel %vm599, %v1311, 0.0
      %1315 = vadd.xlane.f32.xlu0 %v1314
      %v1316 = vpop.xlane.xlu0 %1315
      %v1317 = vmul.f32 %v1316, %v603
      %v1318 = vsub.f32 %v1311, %v1317
      %v1319 = vmul.f32 %v1318, %v1318
      %v1320 = vsel %vm599, %v1319, 0.0
      %1321 = vadd.xlane.f32.xlu0 %v1320
      %v1322 = vpop.xlane.xlu0 %1321
      %v1323 = vmul.f32 %v1322, %v603
      %v1324 = vadd.f32 %v1323, 1e-06
      %v1325 = vrsqrt.pop %v1324
      %v1326 = vmul.f32 %v1318, %v1325
      %v1328 = vlaneseq
      %v1329 = vshrl.u32 %v1328, 7
      %v1330 = vsub.s32 0, %v1329
      %v1331 = vrot.slane %v1312, %v1330
      %v1333 = vmul.f32 %v1326, %v1331
      %v1335 = vlaneseq
      %v1336 = vshrl.u32 %v1335, 7
      %v1337 = vsub.s32 0, %v1336
      %v1338 = vrot.slane %v1313, %v1337
      %v1340 = vadd.f32 %v1333, %v1338
      %v1341 = vpack.c.bf16 %v1340, %v1340
      %v1342 = vld [vmem:[%s13] sm:$0xf]
      %v1343 = vld [vmem:[%s13 + $0x4] sm:$0xf]
      %v1344 = vld [vmem:[%s13 + $0x8] sm:$0xf]
      %v1345 = vld [vmem:[%s13 + $0xc] sm:$0xf]
      %v1346 = vld [vmem:[%s14] sm:$0x1]
      %v1348 = vlaneseq
      %v1349 = vshrl.u32 %v1348, 7
      %v1350 = vsub.s32 0, %v1349
      %v1351 = vrot.slane %v1346, %v1350
      %v1357 = vunpack.c.l.b16 %v1342
      %v1358 = vunpack.c.l.b16 %v1343
      %v1359 = vunpack.c.l.b16 %v1344
      %v1360 = vunpack.c.l.b16 %v1345
      %v1361 = vpack.c.b16 %v1358, %v1357
      %v1362 = vpack.c.b16 %v1360, %v1359
      %v1366 = vsel %vm599, %v1341, 0
      %1368 = vmatprep.subr.bf16.mxu0 0
      %1369 = vmatpush1.bf16.msra.mxu0 0
      %1370 = vmatprep.subr.bf16.mxu0 0
      %1371 = vmatpush1.bf16.msra.mxu0 0
      %1372 = vmatprep.subr.bf16.mxu0 0
      %1373 = vmatpush1.bf16.msra.mxu0 0
      %1374 = vmatprep.subr.bf16.mxu0 0
      %1375 = vmatpush1.bf16.msra.mxu0 0
      %1376 = vmatprep.subr.bf16.mxu0 0
      %1377 = vmatpush1.bf16.msra.mxu0 0
      %1378 = vmatprep.subr.bf16.mxu0 0
      %1379 = vmatpush1.bf16.msra.mxu0 0
      %1380 = vmatprep.subr.bf16.mxu0 0
      %1381 = vmatpush1.bf16.msra.mxu0 %v1362
      %1382 = vmatprep.subr.bf16.mxu0 0
      %1383 = vmatpush1.bf16.msra.mxu0 %v1361
      %1384 = vmatprep.subr.bf16.mxu0 0
      %1385 = vmatpush2.bf16.msra.mxu0 0
      %1386 = vmatprep.subr.bf16.mxu0 0
      %1387 = vmatpush2.bf16.msra.mxu0 0
      %1388 = vmatprep.subr.bf16.mxu0 0
      %1389 = vmatpush2.bf16.msra.mxu0 0
      %1390 = vmatprep.subr.bf16.mxu0 0
      %1391 = vmatpush2.bf16.msra.mxu0 0
      %1392 = vmatprep.subr.bf16.mxu0 0
      %1393 = vmatpush2.bf16.msra.mxu0 0
      %1394 = vmatprep.subr.bf16.mxu0 0
      %1395 = vmatpush2.bf16.msra.mxu0 0
      %1396 = vmatprep.subr.bf16.mxu0 0
      %1397 = vmatpush2.bf16.msra.mxu0 0
      %1398 = vmatprep.subr.bf16.mxu0 0
      %1399 = vmatpush2.bf16.msra.mxu0 0
      %1400 = vmatprep.mubr.bf16.mxu0 0
      %1401 = vmatmul.mubr.bf16.gmra.mxu0 %v1366
      %v1402 = vpop.f32.mrf.mxu0
      %v1403 = vadd.f32 %v1351, %v1402
      %v1404 = vpop.f32.mrf.mxu0
      %v1405 = vpop.f32.mrf.mxu0
      %v1406 = vpop.f32.mrf.mxu0
      %1407 = vdwg.mxu0
      %v1408 = vmax.f32 %v1403, 0.0
      %v1409 = vpack.c.bf16 %v1408, %v1408
      %v1410 = vld [vmem:[%s15] sm:$0xf]
      %v1411 = vld [vmem:[%s15 + $0x4] sm:$0xf]
      %v1412 = vld [vmem:[%s15 + $0x8] sm:$0xf]
      %v1413 = vld [vmem:[%s15 + $0xc] sm:$0xf]
      %v1414 = vld [vmem:[%s15 + $0x10] sm:$0xf]
      %v1415 = vld [vmem:[%s15 + $0x14] sm:$0xf]
      %v1416 = vld [vmem:[%s15 + $0x18] sm:$0xf]
      %v1417 = vld [vmem:[%s15 + $0x1c] sm:$0xf]
      %v1418 = vld [vmem:[%s16] sm:$0x1]
      %v1420 = vlaneseq
      %v1421 = vshrl.u32 %v1420, 7
      %v1422 = vsub.s32 0, %v1421
      %v1423 = vrot.slane %v1418, %v1422
      %v1433 = vunpack.c.l.b16 %v1410
      %v1434 = vunpack.c.l.b16 %v1411
      %v1435 = vunpack.c.l.b16 %v1412
      %v1436 = vunpack.c.l.b16 %v1413
      %v1437 = vunpack.c.l.b16 %v1414
      %v1438 = vunpack.c.l.b16 %v1415
      %v1439 = vunpack.c.l.b16 %v1416
      %v1440 = vunpack.c.l.b16 %v1417
      %v1441 = vpack.c.b16 %v1434, %v1433
      %v1442 = vpack.c.b16 %v1436, %v1435
      %v1443 = vpack.c.b16 %v1438, %v1437
      %v1444 = vpack.c.b16 %v1440, %v1439
      %v1450 = vsel %vm720, %v1409, 0
      %1452 = vmatprep.subr.bf16.mxu0 0
      %1453 = vmatpush1.bf16.msra.mxu0 0
      %1454 = vmatprep.subr.bf16.mxu0 0
      %1455 = vmatpush1.bf16.msra.mxu0 0
      %1456 = vmatprep.subr.bf16.mxu0 0
      %1457 = vmatpush1.bf16.msra.mxu0 0
      %1458 = vmatprep.subr.bf16.mxu0 0
      %1459 = vmatpush1.bf16.msra.mxu0 0
      %1460 = vmatprep.subr.bf16.mxu0 0
      %1461 = vmatpush1.bf16.msra.mxu0 %v1444
      %1462 = vmatprep.subr.bf16.mxu0 0
      %1463 = vmatpush1.bf16.msra.mxu0 %v1443
      %1464 = vmatprep.subr.bf16.mxu0 0
      %1465 = vmatpush1.bf16.msra.mxu0 %v1442
      %1466 = vmatprep.subr.bf16.mxu0 0
      %1467 = vmatpush1.bf16.msra.mxu0 %v1441
      %1468 = vmatprep.subr.bf16.mxu0 0
      %1469 = vmatpush2.bf16.msra.mxu0 0
      %1470 = vmatprep.subr.bf16.mxu0 0
      %1471 = vmatpush2.bf16.msra.mxu0 0
      %1472 = vmatprep.subr.bf16.mxu0 0
      %1473 = vmatpush2.bf16.msra.mxu0 0
      %1474 = vmatprep.subr.bf16.mxu0 0
      %1475 = vmatpush2.bf16.msra.mxu0 0
      %1476 = vmatprep.subr.bf16.mxu0 0
      %1477 = vmatpush2.bf16.msra.mxu0 0
      %1478 = vmatprep.subr.bf16.mxu0 0
      %1479 = vmatpush2.bf16.msra.mxu0 0
      %1480 = vmatprep.subr.bf16.mxu0 0
      %1481 = vmatpush2.bf16.msra.mxu0 0
      %1482 = vmatprep.subr.bf16.mxu0 0
      %1483 = vmatpush2.bf16.msra.mxu0 0
      %1484 = vmatprep.mubr.bf16.mxu0 0
      %1485 = vmatmul.mubr.bf16.gmra.mxu0 %v1450
      %v1486 = vpop.f32.mrf.mxu0
      %v1487 = vadd.f32 %v1423, %v1486
      %v1488 = vpop.f32.mrf.mxu0
      %v1489 = vpop.f32.mrf.mxu0
      %v1490 = vpop.f32.mrf.mxu0
      %1491 = vdwg.mxu0
      %v1492 = vadd.f32 %v1487, %v1311
      %s1493 = scalar_lea.vmem %s5, 1
      %v1494 = vld [vmem:[%s1493] sm:$0x1]
      %s1495 = scalar_lea.vmem %s6, 1
      %v1496 = vld [vmem:[%s1495] sm:$0x1]
      %v1497 = vsel %vm599, %v1492, 0.0
      %1498 = vadd.xlane.f32.xlu0 %v1497
      %v1499 = vpop.xlane.xlu0 %1498
      %v1500 = vmul.f32 %v1499, %v603
      %v1501 = vsub.f32 %v1492, %v1500
      %v1502 = vmul.f32 %v1501, %v1501
      %v1503 = vsel %vm599, %v1502, 0.0
      %1504 = vadd.xlane.f32.xlu0 %v1503
      %v1505 = vpop.xlane.xlu0 %1504
      %v1506 = vmul.f32 %v1505, %v603
      %v1507 = vadd.f32 %v1506, 1e-06
      %v1508 = vrsqrt.pop %v1507
      %v1509 = vmul.f32 %v1501, %v1508
      %v1511 = vlaneseq
      %v1512 = vshrl.u32 %v1511, 7
      %v1513 = vsub.s32 0, %v1512
      %v1514 = vrot.slane %v1494, %v1513
      %v1516 = vmul.f32 %v1509, %v1514
      %v1518 = vlaneseq
      %v1519 = vshrl.u32 %v1518, 7
      %v1520 = vsub.s32 0, %v1519
      %v1521 = vrot.slane %v1496, %v1520
      %v1523 = vadd.f32 %v1516, %v1521
      %v1524 = vpack.c.bf16 %v1523, %v1523
      %s1525 = scalar_lea.vmem %s7, 16
      %v1526 = vld [vmem:[%s1525] sm:$0xf]
      %v1527 = vld [vmem:[%s1525 + $0x4] sm:$0xf]
      %v1528 = vld [vmem:[%s1525 + $0x8] sm:$0xf]
      %v1529 = vld [vmem:[%s1525 + $0xc] sm:$0xf]
      %s1530 = scalar_lea.vmem %s8, 1
      %v1531 = vld [vmem:[%s1530] sm:$0x1]
      %v1533 = vlaneseq
      %v1534 = vshrl.u32 %v1533, 7
      %v1535 = vsub.s32 0, %v1534
      %v1536 = vrot.slane %v1531, %v1535
      %v1542 = vunpack.c.l.b16 %v1526
      %v1543 = vunpack.c.l.b16 %v1527
      %v1544 = vunpack.c.l.b16 %v1528
      %v1545 = vunpack.c.l.b16 %v1529
      %v1546 = vpack.c.b16 %v1543, %v1542
      %v1547 = vpack.c.b16 %v1545, %v1544
      %v1551 = vsel %vm599, %v1524, 0
      %1553 = vmatprep.subr.bf16.mxu0 0
      %1554 = vmatpush1.bf16.msra.mxu0 0
      %1555 = vmatprep.subr.bf16.mxu0 0
      %1556 = vmatpush1.bf16.msra.mxu0 0
      %1557 = vmatprep.subr.bf16.mxu0 0
      %1558 = vmatpush1.bf16.msra.mxu0 0
      %1559 = vmatprep.subr.bf16.mxu0 0
      %1560 = vmatpush1.bf16.msra.mxu0 0
      %1561 = vmatprep.subr.bf16.mxu0 0
      %1562 = vmatpush1.bf16.msra.mxu0 0
      %1563 = vmatprep.subr.bf16.mxu0 0
      %1564 = vmatpush1.bf16.msra.mxu0 0
      %1565 = vmatprep.subr.bf16.mxu0 0
      %1566 = vmatpush1.bf16.msra.mxu0 %v1547
      %1567 = vmatprep.subr.bf16.mxu0 0
      %1568 = vmatpush1.bf16.msra.mxu0 %v1546
      %1569 = vmatprep.subr.bf16.mxu0 0
      %1570 = vmatpush2.bf16.msra.mxu0 0
      %1571 = vmatprep.subr.bf16.mxu0 0
      %1572 = vmatpush2.bf16.msra.mxu0 0
      %1573 = vmatprep.subr.bf16.mxu0 0
      %1574 = vmatpush2.bf16.msra.mxu0 0
      %1575 = vmatprep.subr.bf16.mxu0 0
      %1576 = vmatpush2.bf16.msra.mxu0 0
      %1577 = vmatprep.subr.bf16.mxu0 0
      %1578 = vmatpush2.bf16.msra.mxu0 0
      %1579 = vmatprep.subr.bf16.mxu0 0
      %1580 = vmatpush2.bf16.msra.mxu0 0
      %1581 = vmatprep.subr.bf16.mxu0 0
      %1582 = vmatpush2.bf16.msra.mxu0 0
      %1583 = vmatprep.subr.bf16.mxu0 0
      %1584 = vmatpush2.bf16.msra.mxu0 0
      %1585 = vmatprep.mubr.bf16.mxu0 0
      %1586 = vmatmul.mubr.bf16.gmra.mxu0 %v1551
      %v1587 = vpop.f32.mrf.mxu0
      %v1588 = vadd.f32 %v1536, %v1587
      %v1589 = vpop.f32.mrf.mxu0
      %v1590 = vpop.f32.mrf.mxu0
      %v1591 = vpop.f32.mrf.mxu0
      %1592 = vdwg.mxu0
      %v1593 = vpack.c.bf16 %v1588, %v1588
      %v1595 = vsel %vm720, %v1593, 0
      %1597 = vmatprep.subr.bf16.mxu0 0
      %1598 = vmatpush1.bf16.msra.mxu0 0
      %1599 = vmatprep.subr.bf16.mxu0 0
      %1600 = vmatpush1.bf16.msra.mxu0 0
      %1601 = vmatprep.subr.bf16.mxu0 0
      %1602 = vmatpush1.bf16.msra.mxu0 0
      %1603 = vmatprep.subr.bf16.mxu0 0
      %1604 = vmatpush1.bf16.msra.mxu0 0
      %1605 = vmatprep.subr.bf16.mxu0 0
      %1606 = vmatpush1.bf16.msra.mxu0 %v715
      %1607 = vmatprep.subr.bf16.mxu0 0
      %1608 = vmatpush1.bf16.msra.mxu0 %v714
      %1609 = vmatprep.subr.bf16.mxu0 0
      %1610 = vmatpush1.bf16.msra.mxu0 %v713
      %1611 = vmatprep.subr.bf16.mxu0 0
      %1612 = vmatpush1.bf16.msra.mxu0 %v712
      %1613 = vmatprep.subr.bf16.mxu0 0
      %1614 = vmatpush2.bf16.msra.mxu0 0
      %1615 = vmatprep.subr.bf16.mxu0 0
      %1616 = vmatpush2.bf16.msra.mxu0 0
      %1617 = vmatprep.subr.bf16.mxu0 0
      %1618 = vmatpush2.bf16.msra.mxu0 0
      %1619 = vmatprep.subr.bf16.mxu0 0
      %1620 = vmatpush2.bf16.msra.mxu0 0
      %1621 = vmatprep.subr.bf16.mxu0 0
      %1622 = vmatpush2.bf16.msra.mxu0 0
      %1623 = vmatprep.subr.bf16.mxu0 0
      %1624 = vmatpush2.bf16.msra.mxu0 0
      %1625 = vmatprep.subr.bf16.mxu0 0
      %1626 = vmatpush2.bf16.msra.mxu0 0
      %1627 = vmatprep.subr.bf16.mxu0 0
      %1628 = vmatpush2.bf16.msra.mxu0 0
      %1629 = vmatprep.mubr.bf16.mxu0 0
      %1630 = vmatmul.mubr.bf16.gmra.mxu0 %v1595
      %v1631 = vpop.f32.mrf.mxu0
      %v1632 = vadd.f32 0.0, %v1631
      %v1633 = vpop.f32.mrf.mxu0
      %v1634 = vpop.f32.mrf.mxu0
      %v1635 = vpop.f32.mrf.mxu0
      %1636 = vdwg.mxu0
      %v1637 = vmul.f32 %v1588, %v587
      %v1638 = vmul.f32 %v1632, %v588
      %v1639 = vadd.f32 %v1637, %v1638
      %v1640 = vmul.f32 %v1639, 0.35355338
      %v1641 = vmul.f32 %v1588, %v770
      %v1642 = vmul.f32 %v1632, %v775
      %v1643 = vadd.f32 %v1641, %v1642
      %v1644 = vpack.c.bf16 %v1640, %v1640
      %v1645 = vpack.c.bf16 %v1643, %v1643
      %1647 = vrot.lane.b32.xlu0 %v1645, 96
      %v1648 = vpop.permute.xlu0 %1647
      %v1650 = vsel %vm784, %v1644, 0
      %v1653 = vsel %vm784, %v1648, 0
      %1655 = vmatprep.subr.bf16.mxu0 0
      %1656 = vmatpush1.bf16.xpose.msra.mxu0 0
      %1657 = vmatprep.subr.bf16.mxu0 0
      %1658 = vmatpush1.bf16.xpose.msra.mxu0 0
      %1659 = vmatprep.subr.bf16.mxu0 0
      %1660 = vmatpush1.bf16.xpose.msra.mxu0 0
      %1661 = vmatprep.subr.bf16.mxu0 0
      %1662 = vmatpush1.bf16.xpose.msra.mxu0 0
      %1663 = vmatprep.subr.bf16.mxu0 0
      %1664 = vmatpush1.bf16.xpose.msra.mxu0 0
      %1665 = vmatprep.subr.bf16.mxu0 0
      %1666 = vmatpush1.bf16.xpose.msra.mxu0 0
      %1667 = vmatprep.subr.bf16.mxu0 0
      %1668 = vmatpush1.bf16.xpose.msra.mxu0 0
      %1669 = vmatprep.subr.bf16.mxu0 0
      %1670 = vmatpush1.bf16.xpose.msra.mxu0 %v1653
      %1671 = vmatprep.subr.bf16.mxu0 0
      %1672 = vmatpush2.bf16.xpose.msra.mxu0 0
      %1673 = vmatprep.subr.bf16.mxu0 0
      %1674 = vmatpush2.bf16.xpose.msra.mxu0 0
      %1675 = vmatprep.subr.bf16.mxu0 0
      %1676 = vmatpush2.bf16.xpose.msra.mxu0 0
      %1677 = vmatprep.subr.bf16.mxu0 0
      %1678 = vmatpush2.bf16.xpose.msra.mxu0 0
      %1679 = vmatprep.subr.bf16.mxu0 0
      %1680 = vmatpush2.bf16.xpose.msra.mxu0 0
      %1681 = vmatprep.subr.bf16.mxu0 0
      %1682 = vmatpush2.bf16.xpose.msra.mxu0 0
      %1683 = vmatprep.subr.bf16.mxu0 0
      %1684 = vmatpush2.bf16.xpose.msra.mxu0 0
      %1685 = vmatprep.subr.bf16.mxu0 0
      %1686 = vmatpush2.bf16.xpose.msra.mxu0 0
      %1687 = vmatprep.mubr.bf16.mxu0 0
      %1688 = vmatmul.mubr.bf16.gmra.mxu0 %v1650
      %v1689 = vpop.f32.mrf.mxu0
      %v1690 = vadd.f32 %v586, %v1689
      %v1691 = vpop.f32.mrf.mxu0
      %v1692 = vpop.f32.mrf.mxu0
      %v1693 = vpop.f32.mrf.mxu0
      %1694 = vdwg.mxu0
      %v1695 = vsel %vm784, %v1690, -inf
      %1696 = vmax.xlane.f32.xlu0 %v1695
      %v1697 = vpop.xlane.xlu0 %1696
      %v1698 = vsub.f32 %v1690, %v1697
      %v1699 = vmul.f32 %v1698, 1.442695
      %v1700 = vpow.pop %v1699
      %v1701 = vsel %vm784, %v1700, 0.0
      %1702 = vadd.xlane.f32.xlu0 %v1701
      %v1703 = vpop.xlane.xlu0 %1702
      %v1704 = vrcp.pop %v1703
      %v1705 = vmul.f32 %v1700, %v1704
      %v1706 = vpack.c.bf16 %v1705, %v1705
      %1708 = vrot.lane.b32.xlu0 %v1593, 64
      %v1709 = vpop.permute.xlu0 %1708
      %v1711 = vsel %vm784, %v1706, 0
      %v1714 = vsel %vm849, %v1709, 0
      %1716 = vmatprep.subr.bf16.mxu0 0
      %1717 = vmatpush1.bf16.msra.mxu0 0
      %1718 = vmatprep.subr.bf16.mxu0 0
      %1719 = vmatpush1.bf16.msra.mxu0 0
      %1720 = vmatprep.subr.bf16.mxu0 0
      %1721 = vmatpush1.bf16.msra.mxu0 0
      %1722 = vmatprep.subr.bf16.mxu0 0
      %1723 = vmatpush1.bf16.msra.mxu0 0
      %1724 = vmatprep.subr.bf16.mxu0 0
      %1725 = vmatpush1.bf16.msra.mxu0 0
      %1726 = vmatprep.subr.bf16.mxu0 0
      %1727 = vmatpush1.bf16.msra.mxu0 0
      %1728 = vmatprep.subr.bf16.mxu0 0
      %1729 = vmatpush1.bf16.msra.mxu0 0
      %1730 = vmatprep.subr.bf16.mxu0 0
      %1731 = vmatpush1.bf16.msra.mxu0 %v1714
      %1732 = vmatprep.subr.bf16.mxu0 0
      %1733 = vmatpush2.bf16.msra.mxu0 0
      %1734 = vmatprep.subr.bf16.mxu0 0
      %1735 = vmatpush2.bf16.msra.mxu0 0
      %1736 = vmatprep.subr.bf16.mxu0 0
      %1737 = vmatpush2.bf16.msra.mxu0 0
      %1738 = vmatprep.subr.bf16.mxu0 0
      %1739 = vmatpush2.bf16.msra.mxu0 0
      %1740 = vmatprep.subr.bf16.mxu0 0
      %1741 = vmatpush2.bf16.msra.mxu0 0
      %1742 = vmatprep.subr.bf16.mxu0 0
      %1743 = vmatpush2.bf16.msra.mxu0 0
      %1744 = vmatprep.subr.bf16.mxu0 0
      %1745 = vmatpush2.bf16.msra.mxu0 0
      %1746 = vmatprep.subr.bf16.mxu0 0
      %1747 = vmatpush2.bf16.msra.mxu0 0
      %1748 = vmatprep.mubr.bf16.mxu0 0
      %1749 = vmatmul.mubr.bf16.gmra.mxu0 %v1711
      %v1750 = vpop.f32.mrf.mxu0
      %v1751 = vadd.f32 0.0, %v1750
      %v1752 = vpop.f32.mrf.mxu0
      %v1753 = vpop.f32.mrf.mxu0
      %v1754 = vpop.f32.mrf.mxu0
      %1755 = vdwg.mxu0
      %1756 = vst.msk [vmem:[#allocation2] sm:$0xff] %vm784, %v1751
      %1758 = vrot.lane.b32.xlu0 %v1644, 120
      %v1759 = vpop.permute.xlu0 %1758
      %1760 = vrot.lane.b32.xlu0 %v1645, 88
      %v1761 = vpop.permute.xlu0 %1760
      %v1763 = vsel %vm784, %v1759, 0
      %v1766 = vsel %vm784, %v1761, 0
      %1768 = vmatprep.subr.bf16.mxu0 0
      %1769 = vmatpush1.bf16.xpose.msra.mxu0 0
      %1770 = vmatprep.subr.bf16.mxu0 0
      %1771 = vmatpush1.bf16.xpose.msra.mxu0 0
      %1772 = vmatprep.subr.bf16.mxu0 0
      %1773 = vmatpush1.bf16.xpose.msra.mxu0 0
      %1774 = vmatprep.subr.bf16.mxu0 0
      %1775 = vmatpush1.bf16.xpose.msra.mxu0 0
      %1776 = vmatprep.subr.bf16.mxu0 0
      %1777 = vmatpush1.bf16.xpose.msra.mxu0 0
      %1778 = vmatprep.subr.bf16.mxu0 0
      %1779 = vmatpush1.bf16.xpose.msra.mxu0 0
      %1780 = vmatprep.subr.bf16.mxu0 0
      %1781 = vmatpush1.bf16.xpose.msra.mxu0 0
      %1782 = vmatprep.subr.bf16.mxu0 0
      %1783 = vmatpush1.bf16.xpose.msra.mxu0 %v1766
      %1784 = vmatprep.subr.bf16.mxu0 0
      %1785 = vmatpush2.bf16.xpose.msra.mxu0 0
      %1786 = vmatprep.subr.bf16.mxu0 0
      %1787 = vmatpush2.bf16.xpose.msra.mxu0 0
      %1788 = vmatprep.subr.bf16.mxu0 0
      %1789 = vmatpush2.bf16.xpose.msra.mxu0 0
      %1790 = vmatprep.subr.bf16.mxu0 0
      %1791 = vmatpush2.bf16.xpose.msra.mxu0 0
      %1792 = vmatprep.subr.bf16.mxu0 0
      %1793 = vmatpush2.bf16.xpose.msra.mxu0 0
      %1794 = vmatprep.subr.bf16.mxu0 0
      %1795 = vmatpush2.bf16.xpose.msra.mxu0 0
      %1796 = vmatprep.subr.bf16.mxu0 0
      %1797 = vmatpush2.bf16.xpose.msra.mxu0 0
      %1798 = vmatprep.subr.bf16.mxu0 0
      %1799 = vmatpush2.bf16.xpose.msra.mxu0 0
      %1800 = vmatprep.mubr.bf16.mxu0 0
      %1801 = vmatmul.mubr.bf16.gmra.mxu0 %v1763
      %v1802 = vpop.f32.mrf.mxu0
      %v1803 = vadd.f32 %v586, %v1802
      %v1804 = vpop.f32.mrf.mxu0
      %v1805 = vpop.f32.mrf.mxu0
      %v1806 = vpop.f32.mrf.mxu0
      %1807 = vdwg.mxu0
      %v1808 = vsel %vm784, %v1803, -inf
      %1809 = vmax.xlane.f32.xlu0 %v1808
      %v1810 = vpop.xlane.xlu0 %1809
      %v1811 = vsub.f32 %v1803, %v1810
      %v1812 = vmul.f32 %v1811, 1.442695
      %v1813 = vpow.pop %v1812
      %v1814 = vsel %vm784, %v1813, 0.0
      %1815 = vadd.xlane.f32.xlu0 %v1814
      %v1816 = vpop.xlane.xlu0 %1815
      %v1817 = vrcp.pop %v1816
      %v1818 = vmul.f32 %v1813, %v1817
      %v1819 = vpack.c.bf16 %v1818, %v1818
      %1820 = vrot.lane.b32.xlu0 %v1593, 56
      %v1821 = vpop.permute.xlu0 %1820
      %v1823 = vsel %vm784, %v1819, 0
      %v1826 = vsel %vm849, %v1821, 0
      %1828 = vmatprep.subr.bf16.mxu0 0
      %1829 = vmatpush1.bf16.msra.mxu0 0
      %1830 = vmatprep.subr.bf16.mxu0 0
      %1831 = vmatpush1.bf16.msra.mxu0 0
      %1832 = vmatprep.subr.bf16.mxu0 0
      %1833 = vmatpush1.bf16.msra.mxu0 0
      %1834 = vmatprep.subr.bf16.mxu0 0
      %1835 = vmatpush1.bf16.msra.mxu0 0
      %1836 = vmatprep.subr.bf16.mxu0 0
      %1837 = vmatpush1.bf16.msra.mxu0 0
      %1838 = vmatprep.subr.bf16.mxu0 0
      %1839 = vmatpush1.bf16.msra.mxu0 0
      %1840 = vmatprep.subr.bf16.mxu0 0
      %1841 = vmatpush1.bf16.msra.mxu0 0
      %1842 = vmatprep.subr.bf16.mxu0 0
      %1843 = vmatpush1.bf16.msra.mxu0 %v1826
      %1844 = vmatprep.subr.bf16.mxu0 0
      %1845 = vmatpush2.bf16.msra.mxu0 0
      %1846 = vmatprep.subr.bf16.mxu0 0
      %1847 = vmatpush2.bf16.msra.mxu0 0
      %1848 = vmatprep.subr.bf16.mxu0 0
      %1849 = vmatpush2.bf16.msra.mxu0 0
      %1850 = vmatprep.subr.bf16.mxu0 0
      %1851 = vmatpush2.bf16.msra.mxu0 0
      %1852 = vmatprep.subr.bf16.mxu0 0
      %1853 = vmatpush2.bf16.msra.mxu0 0
      %1854 = vmatprep.subr.bf16.mxu0 0
      %1855 = vmatpush2.bf16.msra.mxu0 0
      %1856 = vmatprep.subr.bf16.mxu0 0
      %1857 = vmatpush2.bf16.msra.mxu0 0
      %1858 = vmatprep.subr.bf16.mxu0 0
      %1859 = vmatpush2.bf16.msra.mxu0 0
      %1860 = vmatprep.mubr.bf16.mxu0 0
      %1861 = vmatmul.mubr.bf16.gmra.mxu0 %v1823
      %v1862 = vpop.f32.mrf.mxu0
      %v1863 = vadd.f32 0.0, %v1862
      %v1864 = vpop.f32.mrf.mxu0
      %v1865 = vpop.f32.mrf.mxu0
      %v1866 = vpop.f32.mrf.mxu0
      %1867 = vdwg.mxu0
      %1869 = vrot.lane.b32.xlu0 %v1863, 8
      %v1870 = vpop.permute.xlu0 %1869
      %1872 = vst.msk [vmem:[#allocation2] sm:$0xff] %vm1009, %v1870
      %1873 = vrot.lane.b32.xlu0 %v1644, 112
      %v1874 = vpop.permute.xlu0 %1873
      %1875 = vrot.lane.b32.xlu0 %v1645, 80
      %v1876 = vpop.permute.xlu0 %1875
      %v1878 = vsel %vm784, %v1874, 0
      %v1881 = vsel %vm784, %v1876, 0
      %1883 = vmatprep.subr.bf16.mxu0 0
      %1884 = vmatpush1.bf16.xpose.msra.mxu0 0
      %1885 = vmatprep.subr.bf16.mxu0 0
      %1886 = vmatpush1.bf16.xpose.msra.mxu0 0
      %1887 = vmatprep.subr.bf16.mxu0 0
      %1888 = vmatpush1.bf16.xpose.msra.mxu0 0
      %1889 = vmatprep.subr.bf16.mxu0 0
      %1890 = vmatpush1.bf16.xpose.msra.mxu0 0
      %1891 = vmatprep.subr.bf16.mxu0 0
      %1892 = vmatpush1.bf16.xpose.msra.mxu0 0
      %1893 = vmatprep.subr.bf16.mxu0 0
      %1894 = vmatpush1.bf16.xpose.msra.mxu0 0
      %1895 = vmatprep.subr.bf16.mxu0 0
      %1896 = vmatpush1.bf16.xpose.msra.mxu0 0
      %1897 = vmatprep.subr.bf16.mxu0 0
      %1898 = vmatpush1.bf16.xpose.msra.mxu0 %v1881
      %1899 = vmatprep.subr.bf16.mxu0 0
      %1900 = vmatpush2.bf16.xpose.msra.mxu0 0
      %1901 = vmatprep.subr.bf16.mxu0 0
      %1902 = vmatpush2.bf16.xpose.msra.mxu0 0
      %1903 = vmatprep.subr.bf16.mxu0 0
      %1904 = vmatpush2.bf16.xpose.msra.mxu0 0
      %1905 = vmatprep.subr.bf16.mxu0 0
      %1906 = vmatpush2.bf16.xpose.msra.mxu0 0
      %1907 = vmatprep.subr.bf16.mxu0 0
      %1908 = vmatpush2.bf16.xpose.msra.mxu0 0
      %1909 = vmatprep.subr.bf16.mxu0 0
      %1910 = vmatpush2.bf16.xpose.msra.mxu0 0
      %1911 = vmatprep.subr.bf16.mxu0 0
      %1912 = vmatpush2.bf16.xpose.msra.mxu0 0
      %1913 = vmatprep.subr.bf16.mxu0 0
      %1914 = vmatpush2.bf16.xpose.msra.mxu0 0
      %1915 = vmatprep.mubr.bf16.mxu0 0
      %1916 = vmatmul.mubr.bf16.gmra.mxu0 %v1878
      %v1917 = vpop.f32.mrf.mxu0
      %v1918 = vadd.f32 %v586, %v1917
      %v1919 = vpop.f32.mrf.mxu0
      %v1920 = vpop.f32.mrf.mxu0
      %v1921 = vpop.f32.mrf.mxu0
      %1922 = vdwg.mxu0
      %v1923 = vsel %vm784, %v1918, -inf
      %1924 = vmax.xlane.f32.xlu0 %v1923
      %v1925 = vpop.xlane.xlu0 %1924
      %v1926 = vsub.f32 %v1918, %v1925
      %v1927 = vmul.f32 %v1926, 1.442695
      %v1928 = vpow.pop %v1927
      %v1929 = vsel %vm784, %v1928, 0.0
      %1930 = vadd.xlane.f32.xlu0 %v1929
      %v1931 = vpop.xlane.xlu0 %1930
      %v1932 = vrcp.pop %v1931
      %v1933 = vmul.f32 %v1928, %v1932
      %v1934 = vpack.c.bf16 %v1933, %v1933
      %1935 = vrot.lane.b32.xlu0 %v1593, 48
      %v1936 = vpop.permute.xlu0 %1935
      %v1938 = vsel %vm784, %v1934, 0
      %v1941 = vsel %vm849, %v1936, 0
      %1943 = vmatprep.subr.bf16.mxu0 0
      %1944 = vmatpush1.bf16.msra.mxu0 0
      %1945 = vmatprep.subr.bf16.mxu0 0
      %1946 = vmatpush1.bf16.msra.mxu0 0
      %1947 = vmatprep.subr.bf16.mxu0 0
      %1948 = vmatpush1.bf16.msra.mxu0 0
      %1949 = vmatprep.subr.bf16.mxu0 0
      %1950 = vmatpush1.bf16.msra.mxu0 0
      %1951 = vmatprep.subr.bf16.mxu0 0
      %1952 = vmatpush1.bf16.msra.mxu0 0
      %1953 = vmatprep.subr.bf16.mxu0 0
      %1954 = vmatpush1.bf16.msra.mxu0 0
      %1955 = vmatprep.subr.bf16.mxu0 0
      %1956 = vmatpush1.bf16.msra.mxu0 0
      %1957 = vmatprep.subr.bf16.mxu0 0
      %1958 = vmatpush1.bf16.msra.mxu0 %v1941
      %1959 = vmatprep.subr.bf16.mxu0 0
      %1960 = vmatpush2.bf16.msra.mxu0 0
      %1961 = vmatprep.subr.bf16.mxu0 0
      %1962 = vmatpush2.bf16.msra.mxu0 0
      %1963 = vmatprep.subr.bf16.mxu0 0
      %1964 = vmatpush2.bf16.msra.mxu0 0
      %1965 = vmatprep.subr.bf16.mxu0 0
      %1966 = vmatpush2.bf16.msra.mxu0 0
      %1967 = vmatprep.subr.bf16.mxu0 0
      %1968 = vmatpush2.bf16.msra.mxu0 0
      %1969 = vmatprep.subr.bf16.mxu0 0
      %1970 = vmatpush2.bf16.msra.mxu0 0
      %1971 = vmatprep.subr.bf16.mxu0 0
      %1972 = vmatpush2.bf16.msra.mxu0 0
      %1973 = vmatprep.subr.bf16.mxu0 0
      %1974 = vmatpush2.bf16.msra.mxu0 0
      %1975 = vmatprep.mubr.bf16.mxu0 0
      %1976 = vmatmul.mubr.bf16.gmra.mxu0 %v1938
      %v1977 = vpop.f32.mrf.mxu0
      %v1978 = vadd.f32 0.0, %v1977
      %v1979 = vpop.f32.mrf.mxu0
      %v1980 = vpop.f32.mrf.mxu0
      %v1981 = vpop.f32.mrf.mxu0
      %1982 = vdwg.mxu0
      %1984 = vrot.lane.b32.xlu0 %v1978, 16
      %v1985 = vpop.permute.xlu0 %1984
      %1987 = vst.msk [vmem:[#allocation2] sm:$0xff] %vm1125, %v1985
      %1988 = vrot.lane.b32.xlu0 %v1644, 104
      %v1989 = vpop.permute.xlu0 %1988
      %1990 = vrot.lane.b32.xlu0 %v1645, 72
      %v1991 = vpop.permute.xlu0 %1990
      %v1993 = vsel %vm784, %v1989, 0
      %v1996 = vsel %vm784, %v1991, 0
      %1998 = vmatprep.subr.bf16.mxu0 0
      %1999 = vmatpush1.bf16.xpose.msra.mxu0 0
      %2000 = vmatprep.subr.bf16.mxu0 0
      %2001 = vmatpush1.bf16.xpose.msra.mxu0 0
      %2002 = vmatprep.subr.bf16.mxu0 0
      %2003 = vmatpush1.bf16.xpose.msra.mxu0 0
      %2004 = vmatprep.subr.bf16.mxu0 0
      %2005 = vmatpush1.bf16.xpose.msra.mxu0 0
      %2006 = vmatprep.subr.bf16.mxu0 0
      %2007 = vmatpush1.bf16.xpose.msra.mxu0 0
      %2008 = vmatprep.subr.bf16.mxu0 0
      %2009 = vmatpush1.bf16.xpose.msra.mxu0 0
      %2010 = vmatprep.subr.bf16.mxu0 0
      %2011 = vmatpush1.bf16.xpose.msra.mxu0 0
      %2012 = vmatprep.subr.bf16.mxu0 0
      %2013 = vmatpush1.bf16.xpose.msra.mxu0 %v1996
      %2014 = vmatprep.subr.bf16.mxu0 0
      %2015 = vmatpush2.bf16.xpose.msra.mxu0 0
      %2016 = vmatprep.subr.bf16.mxu0 0
      %2017 = vmatpush2.bf16.xpose.msra.mxu0 0
      %2018 = vmatprep.subr.bf16.mxu0 0
      %2019 = vmatpush2.bf16.xpose.msra.mxu0 0
      %2020 = vmatprep.subr.bf16.mxu0 0
      %2021 = vmatpush2.bf16.xpose.msra.mxu0 0
      %2022 = vmatprep.subr.bf16.mxu0 0
      %2023 = vmatpush2.bf16.xpose.msra.mxu0 0
      %2024 = vmatprep.subr.bf16.mxu0 0
      %2025 = vmatpush2.bf16.xpose.msra.mxu0 0
      %2026 = vmatprep.subr.bf16.mxu0 0
      %2027 = vmatpush2.bf16.xpose.msra.mxu0 0
      %2028 = vmatprep.subr.bf16.mxu0 0
      %2029 = vmatpush2.bf16.xpose.msra.mxu0 0
      %2030 = vmatprep.mubr.bf16.mxu0 0
      %2031 = vmatmul.mubr.bf16.gmra.mxu0 %v1993
      %v2032 = vpop.f32.mrf.mxu0
      %v2033 = vadd.f32 %v586, %v2032
      %v2034 = vpop.f32.mrf.mxu0
      %v2035 = vpop.f32.mrf.mxu0
      %v2036 = vpop.f32.mrf.mxu0
      %2037 = vdwg.mxu0
      %v2038 = vsel %vm784, %v2033, -inf
      %2039 = vmax.xlane.f32.xlu0 %v2038
      %v2040 = vpop.xlane.xlu0 %2039
      %v2041 = vsub.f32 %v2033, %v2040
      %v2042 = vmul.f32 %v2041, 1.442695
      %v2043 = vpow.pop %v2042
      %v2044 = vsel %vm784, %v2043, 0.0
      %2045 = vadd.xlane.f32.xlu0 %v2044
      %v2046 = vpop.xlane.xlu0 %2045
      %v2047 = vrcp.pop %v2046
      %v2048 = vmul.f32 %v2043, %v2047
      %v2049 = vpack.c.bf16 %v2048, %v2048
      %2050 = vrot.lane.b32.xlu0 %v1593, 40
      %v2051 = vpop.permute.xlu0 %2050
      %v2053 = vsel %vm784, %v2049, 0
      %v2056 = vsel %vm849, %v2051, 0
      %2058 = vmatprep.subr.bf16.mxu0 0
      %2059 = vmatpush1.bf16.msra.mxu0 0
      %2060 = vmatprep.subr.bf16.mxu0 0
      %2061 = vmatpush1.bf16.msra.mxu0 0
      %2062 = vmatprep.subr.bf16.mxu0 0
      %2063 = vmatpush1.bf16.msra.mxu0 0
      %2064 = vmatprep.subr.bf16.mxu0 0
      %2065 = vmatpush1.bf16.msra.mxu0 0
      %2066 = vmatprep.subr.bf16.mxu0 0
      %2067 = vmatpush1.bf16.msra.mxu0 0
      %2068 = vmatprep.subr.bf16.mxu0 0
      %2069 = vmatpush1.bf16.msra.mxu0 0
      %2070 = vmatprep.subr.bf16.mxu0 0
      %2071 = vmatpush1.bf16.msra.mxu0 0
      %2072 = vmatprep.subr.bf16.mxu0 0
      %2073 = vmatpush1.bf16.msra.mxu0 %v2056
      %2074 = vmatprep.subr.bf16.mxu0 0
      %2075 = vmatpush2.bf16.msra.mxu0 0
      %2076 = vmatprep.subr.bf16.mxu0 0
      %2077 = vmatpush2.bf16.msra.mxu0 0
      %2078 = vmatprep.subr.bf16.mxu0 0
      %2079 = vmatpush2.bf16.msra.mxu0 0
      %2080 = vmatprep.subr.bf16.mxu0 0
      %2081 = vmatpush2.bf16.msra.mxu0 0
      %2082 = vmatprep.subr.bf16.mxu0 0
      %2083 = vmatpush2.bf16.msra.mxu0 0
      %2084 = vmatprep.subr.bf16.mxu0 0
      %2085 = vmatpush2.bf16.msra.mxu0 0
      %2086 = vmatprep.subr.bf16.mxu0 0
      %2087 = vmatpush2.bf16.msra.mxu0 0
      %2088 = vmatprep.subr.bf16.mxu0 0
      %2089 = vmatpush2.bf16.msra.mxu0 0
      %2090 = vmatprep.mubr.bf16.mxu0 0
      %2091 = vmatmul.mubr.bf16.gmra.mxu0 %v2053
      %v2092 = vpop.f32.mrf.mxu0
      %v2093 = vadd.f32 0.0, %v2092
      %v2094 = vpop.f32.mrf.mxu0
      %v2095 = vpop.f32.mrf.mxu0
      %v2096 = vpop.f32.mrf.mxu0
      %2097 = vdwg.mxu0
      %2099 = vrot.lane.b32.xlu0 %v2093, 24
      %v2100 = vpop.permute.xlu0 %2099
      %2102 = vst.msk [vmem:[#allocation2] sm:$0xff] %vm1241, %v2100
      %v2103 = vld [vmem:[#allocation2] sm:$0xff]
      %v2104 = vpack.c.bf16 %v2103, %v2103
      %s2105 = scalar_lea.vmem %s9, 16
      %v2106 = vld [vmem:[%s2105] sm:$0xf]
      %v2107 = vld [vmem:[%s2105 + $0x4] sm:$0xf]
      %v2108 = vld [vmem:[%s2105 + $0x8] sm:$0xf]
      %v2109 = vld [vmem:[%s2105 + $0xc] sm:$0xf]
      %s2110 = scalar_lea.vmem %s10, 1
      %v2111 = vld [vmem:[%s2110] sm:$0x1]
      %v2113 = vlaneseq
      %v2114 = vshrl.u32 %v2113, 7
      %v2115 = vsub.s32 0, %v2114
      %v2116 = vrot.slane %v2111, %v2115
      %v2122 = vunpack.c.l.b16 %v2106
      %v2123 = vunpack.c.l.b16 %v2107
      %v2124 = vunpack.c.l.b16 %v2108
      %v2125 = vunpack.c.l.b16 %v2109
      %v2126 = vpack.c.b16 %v2123, %v2122
      %v2127 = vpack.c.b16 %v2125, %v2124
      %v2131 = vsel %vm599, %v2104, 0
      %2133 = vmatprep.subr.bf16.mxu0 0
      %2134 = vmatpush1.bf16.msra.mxu0 0
      %2135 = vmatprep.subr.bf16.mxu0 0
      %2136 = vmatpush1.bf16.msra.mxu0 0
      %2137 = vmatprep.subr.bf16.mxu0 0
      %2138 = vmatpush1.bf16.msra.mxu0 0
      %2139 = vmatprep.subr.bf16.mxu0 0
      %2140 = vmatpush1.bf16.msra.mxu0 0
      %2141 = vmatprep.subr.bf16.mxu0 0
      %2142 = vmatpush1.bf16.msra.mxu0 0
      %2143 = vmatprep.subr.bf16.mxu0 0
      %2144 = vmatpush1.bf16.msra.mxu0 0
      %2145 = vmatprep.subr.bf16.mxu0 0
      %2146 = vmatpush1.bf16.msra.mxu0 %v2127
      %2147 = vmatprep.subr.bf16.mxu0 0
      %2148 = vmatpush1.bf16.msra.mxu0 %v2126
      %2149 = vmatprep.subr.bf16.mxu0 0
      %2150 = vmatpush2.bf16.msra.mxu0 0
      %2151 = vmatprep.subr.bf16.mxu0 0
      %2152 = vmatpush2.bf16.msra.mxu0 0
      %2153 = vmatprep.subr.bf16.mxu0 0
      %2154 = vmatpush2.bf16.msra.mxu0 0
      %2155 = vmatprep.subr.bf16.mxu0 0
      %2156 = vmatpush2.bf16.msra.mxu0 0
      %2157 = vmatprep.subr.bf16.mxu0 0
      %2158 = vmatpush2.bf16.msra.mxu0 0
      %2159 = vmatprep.subr.bf16.mxu0 0
      %2160 = vmatpush2.bf16.msra.mxu0 0
      %2161 = vmatprep.subr.bf16.mxu0 0
      %2162 = vmatpush2.bf16.msra.mxu0 0
      %2163 = vmatprep.subr.bf16.mxu0 0
      %2164 = vmatpush2.bf16.msra.mxu0 0
      %2165 = vmatprep.mubr.bf16.mxu0 0
      %2166 = vmatmul.mubr.bf16.gmra.mxu0 %v2131
      %v2167 = vpop.f32.mrf.mxu0
      %v2168 = vadd.f32 %v2116, %v2167
      %v2169 = vpop.f32.mrf.mxu0
      %v2170 = vpop.f32.mrf.mxu0
      %v2171 = vpop.f32.mrf.mxu0
      %2172 = vdwg.mxu0
      %v2173 = vadd.f32 %v2168, %v1492
      %s2174 = scalar_lea.vmem %s11, 1
      %v2175 = vld [vmem:[%s2174] sm:$0x1]
      %s2176 = scalar_lea.vmem %s12, 1
      %v2177 = vld [vmem:[%s2176] sm:$0x1]
      %v2178 = vsel %vm599, %v2173, 0.0
      %2179 = vadd.xlane.f32.xlu0 %v2178
      %v2180 = vpop.xlane.xlu0 %2179
      %v2181 = vmul.f32 %v2180, %v603
      %v2182 = vsub.f32 %v2173, %v2181
      %v2183 = vmul.f32 %v2182, %v2182
      %v2184 = vsel %vm599, %v2183, 0.0
      %2185 = vadd.xlane.f32.xlu0 %v2184
      %v2186 = vpop.xlane.xlu0 %2185
      %v2187 = vmul.f32 %v2186, %v603
      %v2188 = vadd.f32 %v2187, 1e-06
      %v2189 = vrsqrt.pop %v2188
      %v2190 = vmul.f32 %v2182, %v2189
      %v2192 = vlaneseq
      %v2193 = vshrl.u32 %v2192, 7
      %v2194 = vsub.s32 0, %v2193
      %v2195 = vrot.slane %v2175, %v2194
      %v2197 = vmul.f32 %v2190, %v2195
      %v2199 = vlaneseq
      %v2200 = vshrl.u32 %v2199, 7
      %v2201 = vsub.s32 0, %v2200
      %v2202 = vrot.slane %v2177, %v2201
      %v2204 = vadd.f32 %v2197, %v2202
      %v2205 = vpack.c.bf16 %v2204, %v2204
      %s2206 = scalar_lea.vmem %s13, 16
      %v2207 = vld [vmem:[%s2206] sm:$0xf]
      %v2208 = vld [vmem:[%s2206 + $0x4] sm:$0xf]
      %v2209 = vld [vmem:[%s2206 + $0x8] sm:$0xf]
      %v2210 = vld [vmem:[%s2206 + $0xc] sm:$0xf]
      %s2211 = scalar_lea.vmem %s14, 1
      %v2212 = vld [vmem:[%s2211] sm:$0x1]
      %v2214 = vlaneseq
      %v2215 = vshrl.u32 %v2214, 7
      %v2216 = vsub.s32 0, %v2215
      %v2217 = vrot.slane %v2212, %v2216
      %v2223 = vunpack.c.l.b16 %v2207
      %v2224 = vunpack.c.l.b16 %v2208
      %v2225 = vunpack.c.l.b16 %v2209
      %v2226 = vunpack.c.l.b16 %v2210
      %v2227 = vpack.c.b16 %v2224, %v2223
      %v2228 = vpack.c.b16 %v2226, %v2225
      %v2232 = vsel %vm599, %v2205, 0
      %2234 = vmatprep.subr.bf16.mxu0 0
      %2235 = vmatpush1.bf16.msra.mxu0 0
      %2236 = vmatprep.subr.bf16.mxu0 0
      %2237 = vmatpush1.bf16.msra.mxu0 0
      %2238 = vmatprep.subr.bf16.mxu0 0
      %2239 = vmatpush1.bf16.msra.mxu0 0
      %2240 = vmatprep.subr.bf16.mxu0 0
      %2241 = vmatpush1.bf16.msra.mxu0 0
      %2242 = vmatprep.subr.bf16.mxu0 0
      %2243 = vmatpush1.bf16.msra.mxu0 0
      %2244 = vmatprep.subr.bf16.mxu0 0
      %2245 = vmatpush1.bf16.msra.mxu0 0
      %2246 = vmatprep.subr.bf16.mxu0 0
      %2247 = vmatpush1.bf16.msra.mxu0 %v2228
      %2248 = vmatprep.subr.bf16.mxu0 0
      %2249 = vmatpush1.bf16.msra.mxu0 %v2227
      %2250 = vmatprep.subr.bf16.mxu0 0
      %2251 = vmatpush2.bf16.msra.mxu0 0
      %2252 = vmatprep.subr.bf16.mxu0 0
      %2253 = vmatpush2.bf16.msra.mxu0 0
      %2254 = vmatprep.subr.bf16.mxu0 0
      %2255 = vmatpush2.bf16.msra.mxu0 0
      %2256 = vmatprep.subr.bf16.mxu0 0
      %2257 = vmatpush2.bf16.msra.mxu0 0
      %2258 = vmatprep.subr.bf16.mxu0 0
      %2259 = vmatpush2.bf16.msra.mxu0 0
      %2260 = vmatprep.subr.bf16.mxu0 0
      %2261 = vmatpush2.bf16.msra.mxu0 0
      %2262 = vmatprep.subr.bf16.mxu0 0
      %2263 = vmatpush2.bf16.msra.mxu0 0
      %2264 = vmatprep.subr.bf16.mxu0 0
      %2265 = vmatpush2.bf16.msra.mxu0 0
      %2266 = vmatprep.mubr.bf16.mxu0 0
      %2267 = vmatmul.mubr.bf16.gmra.mxu0 %v2232
      %v2268 = vpop.f32.mrf.mxu0
      %v2269 = vadd.f32 %v2217, %v2268
      %v2270 = vpop.f32.mrf.mxu0
      %v2271 = vpop.f32.mrf.mxu0
      %v2272 = vpop.f32.mrf.mxu0
      %2273 = vdwg.mxu0
      %v2274 = vmax.f32 %v2269, 0.0
      %v2275 = vpack.c.bf16 %v2274, %v2274
      %s2276 = scalar_lea.vmem %s15, 32
      %v2277 = vld [vmem:[%s2276] sm:$0xf]
      %v2278 = vld [vmem:[%s2276 + $0x4] sm:$0xf]
      %v2279 = vld [vmem:[%s2276 + $0x8] sm:$0xf]
      %v2280 = vld [vmem:[%s2276 + $0xc] sm:$0xf]
      %v2281 = vld [vmem:[%s2276 + $0x10] sm:$0xf]
      %v2282 = vld [vmem:[%s2276 + $0x14] sm:$0xf]
      %v2283 = vld [vmem:[%s2276 + $0x18] sm:$0xf]
      %v2284 = vld [vmem:[%s2276 + $0x1c] sm:$0xf]
      %s2285 = scalar_lea.vmem %s16, 1
      %v2286 = vld [vmem:[%s2285] sm:$0x1]
      %v2288 = vlaneseq
      %v2289 = vshrl.u32 %v2288, 7
      %v2290 = vsub.s32 0, %v2289
      %v2291 = vrot.slane %v2286, %v2290
      %v2301 = vunpack.c.l.b16 %v2277
      %v2302 = vunpack.c.l.b16 %v2278
      %v2303 = vunpack.c.l.b16 %v2279
      %v2304 = vunpack.c.l.b16 %v2280
      %v2305 = vunpack.c.l.b16 %v2281
      %v2306 = vunpack.c.l.b16 %v2282
      %v2307 = vunpack.c.l.b16 %v2283
      %v2308 = vunpack.c.l.b16 %v2284
      %v2309 = vpack.c.b16 %v2302, %v2301
      %v2310 = vpack.c.b16 %v2304, %v2303
      %v2311 = vpack.c.b16 %v2306, %v2305
      %v2312 = vpack.c.b16 %v2308, %v2307
      %v2318 = vsel %vm720, %v2275, 0
      %2320 = vmatprep.subr.bf16.mxu0 0
      %2321 = vmatpush1.bf16.msra.mxu0 0
      %2322 = vmatprep.subr.bf16.mxu0 0
      %2323 = vmatpush1.bf16.msra.mxu0 0
      %2324 = vmatprep.subr.bf16.mxu0 0
      %2325 = vmatpush1.bf16.msra.mxu0 0
      %2326 = vmatprep.subr.bf16.mxu0 0
      %2327 = vmatpush1.bf16.msra.mxu0 0
      %2328 = vmatprep.subr.bf16.mxu0 0
      %2329 = vmatpush1.bf16.msra.mxu0 %v2312
      %2330 = vmatprep.subr.bf16.mxu0 0
      %2331 = vmatpush1.bf16.msra.mxu0 %v2311
      %2332 = vmatprep.subr.bf16.mxu0 0
      %2333 = vmatpush1.bf16.msra.mxu0 %v2310
      %2334 = vmatprep.subr.bf16.mxu0 0
      %2335 = vmatpush1.bf16.msra.mxu0 %v2309
      %2336 = vmatprep.subr.bf16.mxu0 0
      %2337 = vmatpush2.bf16.msra.mxu0 0
      %2338 = vmatprep.subr.bf16.mxu0 0
      %2339 = vmatpush2.bf16.msra.mxu0 0
      %2340 = vmatprep.subr.bf16.mxu0 0
      %2341 = vmatpush2.bf16.msra.mxu0 0
      %2342 = vmatprep.subr.bf16.mxu0 0
      %2343 = vmatpush2.bf16.msra.mxu0 0
      %2344 = vmatprep.subr.bf16.mxu0 0
      %2345 = vmatpush2.bf16.msra.mxu0 0
      %2346 = vmatprep.subr.bf16.mxu0 0
      %2347 = vmatpush2.bf16.msra.mxu0 0
      %2348 = vmatprep.subr.bf16.mxu0 0
      %2349 = vmatpush2.bf16.msra.mxu0 0
      %2350 = vmatprep.subr.bf16.mxu0 0
      %2351 = vmatpush2.bf16.msra.mxu0 0
      %2352 = vmatprep.mubr.bf16.mxu0 0
      %2353 = vmatmul.mubr.bf16.gmra.mxu0 %v2318
      %v2354 = vpop.f32.mrf.mxu0
      %v2355 = vadd.f32 %v2291, %v2354
      %v2356 = vpop.f32.mrf.mxu0
      %v2357 = vpop.f32.mrf.mxu0
      %v2358 = vpop.f32.mrf.mxu0
      %2359 = vdwg.mxu0
      %v2360 = vadd.f32 %v2355, %v2173
      %v2361 = vld [vmem:[%s17] sm:$0x1]
      %v2362 = vld [vmem:[%s18] sm:$0x1]
      %v2363 = vsel %vm599, %v2360, 0.0
      %2364 = vadd.xlane.f32.xlu0 %v2363
      %v2365 = vpop.xlane.xlu0 %2364
      %v2366 = vmul.f32 %v2365, %v603
      %v2367 = vsub.f32 %v2360, %v2366
      %v2368 = vmul.f32 %v2367, %v2367
      %v2369 = vsel %vm599, %v2368, 0.0
      %2370 = vadd.xlane.f32.xlu0 %v2369
      %v2371 = vpop.xlane.xlu0 %2370
      %v2372 = vmul.f32 %v2371, %v603
      %v2373 = vadd.f32 %v2372, 1e-06
      %v2374 = vrsqrt.pop %v2373
      %v2375 = vmul.f32 %v2367, %v2374
      %v2377 = vlaneseq
      %v2378 = vshrl.u32 %v2377, 7
      %v2379 = vsub.s32 0, %v2378
      %v2380 = vrot.slane %v2361, %v2379
      %v2382 = vmul.f32 %v2375, %v2380
      %v2384 = vlaneseq
      %v2385 = vshrl.u32 %v2384, 7
      %v2386 = vsub.s32 0, %v2385
      %v2387 = vrot.slane %v2362, %v2386
      %v2389 = vadd.f32 %v2382, %v2387
      %2390 = vst.msk [vmem:[%s577] sm:$0xff] %vm599, %v2389
      %p2391 = scmp.lt.s32.totalorder %s36, 1
      %s2392 = scalar_select %p2391, %s36, 1
      %s2393 = smul.addr %s2392, 8
      %s2394 = scalar_lea.vmem %s19, %s2393
      // Predicated region
      $region93: #{attn_encoder_xl.1} parent=91 // pred_check
        %p2395 = pneg %p437
      $region94: #{attn_encoder_xl.1} parent=91 // pred_check_branch
        %2397 = sbr.rel (%p2395) target = $region96
      $region95: #{attn_encoder_xl.1} parent=91 // pred_region
        _
      $region96: #{attn_encoder_xl.1} parent=91 // pred_fallthru
        _
    $region92: #{attn_encoder_xl.1} parent=5 // pred_fallthru
      _
    %p2398 = scmp.le.s32.totalorder 2, %s31
    // Predicated region
    $region97: #{attn_encoder_xl.1} parent=5 // pred_check
      %p2399 = pneg %p2398
    $region98: #{attn_encoder_xl.1} parent=5 // pred_check_branch
      %2401 = sbr.rel (%p2399) target = $region100
    $region99: #{attn_encoder_xl.1} parent=5 // pred_region
      %s2402 = ssub.s32 %s31, 2
      // Predicated region
      $region101: #{attn_encoder_xl.1} parent=99 // pred_check
        %p2403 = pneg %p443
      $region102: #{attn_encoder_xl.1} parent=99 // pred_check_branch
        %2405 = sbr.rel (%p2403) target = $region104
      $region103: #{attn_encoder_xl.1} parent=99 // pred_region
        %p2406 = scmp.lt.s32.totalorder %s37, 1
        %s2407 = scalar_select %p2406, %s37, 1
        %s2408 = smul.addr %s2407, 8
        %s2409 = scalar_lea.vmem %s19, %s2408
      $region104: #{attn_encoder_xl.1} parent=99 // pred_fallthru
        _
    $region100: #{attn_encoder_xl.1} parent=5 // pred_fallthru
      _
  $region6: #{attn_encoder_xl.1} parent=0 // loop_footer
    %s35 = sadd.s32 1, %s31
  $region7: #{attn_encoder_xl.1} parent=0 // loop_footer_branch
    %30 = sbr.rel target = $region3
  $region8: #{attn_encoder_xl.1} parent=0 // loop_exit
    _

</llo_original>
